<compile_context>
chip_gen: v7x
topology: tpu7x:2x2x1
jax: 0.10.0
libtpu: 0.0.40
codegen_flags: <defaults>
</compile_context>

<pallas_src>
import functools

import jax
import jax.numpy as jnp
from jax.experimental import pallas as pl
from jax.experimental.pallas import tpu as pltpu


def _round_up(x, m):
    return (x + m - 1) // m * m


def _conv_block_kernel(mask_ref, x_ref, w1_ref, s1_ref, b1_ref,
                       w2_ref, s2_ref, b2_ref, o_ref,
                       pk1_ref, h1_ref, pk2_ref, *,
                       taps1, taps2, m1_len, m2_len, stride,
                       store_off, wp1, wp2, wo1, ho1):
    """Fused (conv3x3 + BN + ReLU) x2 for one image.

    mask_ref : (m1_len, 1) f32   1.0 on valid extended-grid rows, else 0.0
    x_ref    : (R1, Cin) bf16    flattened, spatially padded input image
    w1_ref   : (9*Cin, C) bf16   layer-1 weights, tap-major along K
    s1/b1    : (1, C) f32        folded BN scale / shift (incl. conv bias)
    w2_ref   : (9*C, C) bf16     layer-2 weights, tap-major along K
    s2/b2    : (1, C) f32
    o_ref    : (m2_len, C)       output block (real channels only)
    pk1_ref  : (m1_len, 9*Cin) bf16  packed layer-1 matmul operand
    h1_ref   : (R2, C) bf16          layer-1 output, layer-2 padded layout
    pk2_ref  : (m2_len, 9*C) bf16    packed layer-2 matmul operand
    """
    cin = x_ref.shape[-1]
    c1 = h1_ref.shape[-1]

    # ---- layer 1: pack 9 taps along K (pure bf16 copies), one matmul ----
    for t, off in enumerate(taps1):
        if stride == 1:
            pk1_ref[:, t * cin:(t + 1) * cin] = x_ref[pl.ds(off, m1_len), :]
        else:
            pk1_ref[:, t * cin:(t + 1) * cin] = (
                x_ref[pl.ds(off, m1_len, stride=stride), :])
    h1 = jnp.dot(pk1_ref[...], w1_ref[...],
                 preferred_element_type=jnp.float32)
    h1 = jnp.maximum(h1 * s1_ref[...] + b1_ref[...], 0.0)
    # Zero the extended-grid garbage columns/rows; single cast to bf16.
    h1 = (h1 * mask_ref[...]).astype(h1_ref.dtype)

    # ---- layer-1 -> layer-2 handoff stays entirely in VMEM ----
    h1_ref[...] = jnp.zeros_like(h1_ref)
    if stride == 1:
        # Wp2 == Wp1: a single shifted bulk store reproduces exactly the flat
        # spatially-padded layer-2 input (masked columns land on padding).
        h1_ref[pl.ds(store_off, m1_len), :] = h1
    else:
        # TODO(synk): stride>1 fused path (row-wise copy) is untested.
        for oh in range(ho1):
            h1_ref[pl.ds((oh + 1) * wp2 + 1, wo1), :] = (
                h1[oh * wp1:oh * wp1 + wo1, :])

    # ---- layer 2: pack 9 taps along K, one matmul, BN + ReLU, store ----
    for t, off in enumerate(taps2):
        pk2_ref[:, t * c1:(t + 1) * c1] = h1_ref[pl.ds(off, m2_len), :]
    h2 = jnp.dot(pk2_ref[...], w2_ref[...],
                 preferred_element_type=jnp.float32)
    h2 = jnp.maximum(h2 * s2_ref[...] + b2_ref[...], 0.0)
    o_ref[...] = h2.astype(o_ref.dtype)


def _fold_bn(bias, gamma, beta, mean, var, eps):
    inv_std = 1.0 / jnp.sqrt(var + eps)
    scale = gamma * inv_std
    shift = beta + (bias - mean) * scale
    return scale, shift


def conv_block_nhwc(x, params, *, stride=1, eps=1e-5):
    """Fused ConvBlock forward. x: (N, H, W, Cin) -> (N, Ho, Wo, Cout)."""
    N, H, W, Cin = x.shape
    Cout = params["w1"].shape[0]
    s = stride

    # Layer-1 geometry: extended output grid of width Wp1 so every 3x3 tap is
    # a single (strided) row slice of the flattened padded image.
    Hp1, Wp1 = H + 2, W + 2
    Ho1 = (H + 2 - 3) // s + 1
    Wo1 = (W + 2 - 3) // s + 1
    m1_ext = Ho1 * Wp1
    m1_len = _round_up(m1_ext, 8)
    taps1 = tuple(kh * Wp1 + kw for kh in range(3) for kw in range(3))
    rows1 = taps1[-1] + s * (m1_len - 1) + 1
    R1 = _round_up(max(Hp1 * Wp1, rows1), 16)

    # Layer-2 geometry (stride 1, padding 1 -> same spatial size as layer 1).
    Hp2, Wp2 = Ho1 + 2, Wo1 + 2
    Ho2, Wo2 = Ho1, Wo1
    m2_ext = Ho2 * Wp2
    m2_len = _round_up(m2_ext, 8)
    taps2 = tuple(kh * Wp2 + kw for kh in range(3) for kw in range(3))
    rows2 = taps2[-1] + (m2_len - 1) + 1
    store_off = Wp1 + 1
    store_end = store_off + m1_len if s == 1 else Hp2 * Wp2
    R2 = _round_up(max(Hp2 * Wp2, rows2, store_end), 16)

    # --- glue: pad + flatten + bf16-cast the activation (no im2col in HBM) ---
    xp = jnp.pad(x, ((0, 0), (1, 1), (1, 1), (0, 0)))        # (N,Hp1,Wp1,Cin)
    xf = xp.reshape(N, Hp1 * Wp1, Cin)
    xf = jnp.pad(xf, ((0, 0), (0, R1 - Hp1 * Wp1), (0, 0)))
    xf = xf.reshape(N * R1, Cin).astype(jnp.bfloat16)

    # PyTorch (Cout, Cin, 3, 3) -> (9*Cin, Cout), tap-major along K, bf16.
    def _prep_w(w):
        cin = w.shape[1]
        return (jnp.transpose(w, (2, 3, 1, 0))
                .reshape(9 * cin, Cout).astype(jnp.bfloat16))

    w1 = _prep_w(params["w1"])
    w2 = _prep_w(params["w2"])

    s1, b1 = _fold_bn(params["b1"], params["g1"], params["beta1"],
                      params["mean1"], params["var1"], eps)
    s2, b2 = _fold_bn(params["b2"], params["g2"], params["beta2"],
                      params["mean2"], params["var2"], eps)
    s1 = s1.reshape(1, Cout).astype(jnp.float32)
    b1 = b1.reshape(1, Cout).astype(jnp.float32)
    s2 = s2.reshape(1, Cout).astype(jnp.float32)
    b2 = b2.reshape(1, Cout).astype(jnp.float32)

    # Validity mask for the extended layer-1 grid: zeros the columns >= Wo1
    # and the rounding rows so they land as zeros on layer-2's padding.
    rows = jnp.arange(m1_len)
    mask1 = (((rows % Wp1) < Wo1) & (rows < m1_ext)).astype(jnp.float32)
    mask1 = mask1.reshape(m1_len, 1)

    kernel = functools.partial(
        _conv_block_kernel, taps1=taps1, taps2=taps2, m1_len=m1_len,
        m2_len=m2_len, stride=s, store_off=store_off, wp1=Wp1, wp2=Wp2,
        wo1=Wo1, ho1=Ho1)

    out_dtype = x.dtype
    flops = 2 * N * (Ho1 * Wo1 * 9 * Cin * Cout + Ho2 * Wo2 * 9 * Cout * Cout)
    bytes_accessed = int(
        xf.size * xf.dtype.itemsize
        + (w1.size + w2.size) * 2
        + (s1.size + b1.size + s2.size + b2.size + mask1.size) * 4
        + N * m2_len * Cout * jnp.dtype(out_dtype).itemsize)

    out = pl.pallas_call(
        kernel,
        out_shape=jax.ShapeDtypeStruct((N * m2_len, Cout), out_dtype),
        grid_spec=pltpu.PrefetchScalarGridSpec(
            num_scalar_prefetch=0,
            grid=(N,),
            in_specs=[
                pl.BlockSpec((m1_len, 1), lambda n: (0, 0)),        # mask
                pl.BlockSpec((R1, Cin), lambda n: (n, 0)),          # activation
                pl.BlockSpec((9 * Cin, Cout), lambda n: (0, 0)),    # w1
                pl.BlockSpec((1, Cout), lambda n: (0, 0)),          # scale1
                pl.BlockSpec((1, Cout), lambda n: (0, 0)),          # shift1
                pl.BlockSpec((9 * Cout, Cout), lambda n: (0, 0)),   # w2
                pl.BlockSpec((1, Cout), lambda n: (0, 0)),          # scale2
                pl.BlockSpec((1, Cout), lambda n: (0, 0)),          # shift2
            ],
            out_specs=pl.BlockSpec((m2_len, Cout), lambda n: (n, 0)),
            scratch_shapes=[
                pltpu.VMEM((m1_len, 9 * Cin), jnp.bfloat16),   # packed K1
                pltpu.VMEM((R2, Cout), jnp.bfloat16),          # padded layer-1
                pltpu.VMEM((m2_len, 9 * Cout), jnp.bfloat16),  # packed K2
            ],
        ),
        compiler_params=pltpu.CompilerParams(
            dimension_semantics=("parallel",),
            # Explicit scoped-VMEM budget; working set here is < 1 MiB.
            vmem_limit_bytes=32 * 1024 * 1024,
        ),
        cost_estimate=pl.CostEstimate(
            flops=flops, transcendentals=0, bytes_accessed=bytes_accessed),
    )(mask1, xf, w1, s1, b1, w2, s2, b2)

    # Strip row rounding and the extended columns (>= Wo2).
    y = out.reshape(N, m2_len, Cout)[:, :m2_ext, :]
    y = y.reshape(N, Ho2, Wp2, Cout)[:, :, :Wo2, :]
    return y


def conv_block(x_nchw, params, *, stride=1):
    """Pallas implementation of ConvBlock.forward (NCHW in / NCHW out)."""
    x = jnp.transpose(x_nchw, (0, 2, 3, 1))            # NCHW -> NHWC (once)
    y = conv_block_nhwc(x, params, stride=stride)
    return jnp.transpose(y, (0, 3, 1, 2))               # NHWC -> NCHW (once)


# ----------------------------- pure-JAX reference -----------------------------
def _ref_conv_bn_relu(x, w, b, gamma, beta, mean, var, stride, eps=1e-5):
    y = jax.lax.conv_general_dilated(
        x, w, window_strides=(stride, stride), padding=((1, 1), (1, 1)),
        dimension_numbers=("NCHW", "OIHW", "NCHW"))
    y = y + b.reshape(1, -1, 1, 1)
    y = (y - mean.reshape(1, -1, 1, 1)) / jnp.sqrt(
        var.reshape(1, -1, 1, 1) + eps)
    y = y * gamma.reshape(1, -1, 1, 1) + beta.reshape(1, -1, 1, 1)
    return jnp.maximum(y, 0.0)


def _ref_conv_block(x, p, stride):
    y = _ref_conv_bn_relu(x, p["w1"], p["b1"], p["g1"], p["beta1"],
                          p["mean1"], p["var1"], stride)
    y = _ref_conv_bn_relu(y, p["w2"], p["b2"], p["g2"], p["beta2"],
                          p["mean2"], p["var2"], 1)
    return y


def _init_params(key, in_ch, out_ch):
    ks = jax.random.split(key, 12)
    f32 = jnp.float32
    return {
        "w1": 0.1 * jax.random.normal(ks[0], (out_ch, in_ch, 3, 3), f32),
        "b1": 0.1 * jax.random.normal(ks[1], (out_ch,), f32),
        "g1": 1.0 + 0.1 * jax.random.normal(ks[2], (out_ch,), f32),
        "beta1": 0.1 * jax.random.normal(ks[3], (out_ch,), f32),
        "mean1": 0.1 * jax.random.normal(ks[4], (out_ch,), f32),
        "var1": 1.0 + 0.1 * jnp.abs(jax.random.normal(ks[5], (out_ch,), f32)),
        "w2": 0.1 * jax.random.normal(ks[6], (out_ch, out_ch, 3, 3), f32),
        "b2": 0.1 * jax.random.normal(ks[7], (out_ch,), f32),
        "g2": 1.0 + 0.1 * jax.random.normal(ks[8], (out_ch,), f32),
        "beta2": 0.1 * jax.random.normal(ks[9], (out_ch,), f32),
        "mean2": 0.1 * jax.random.normal(ks[10], (out_ch,), f32),
        "var2": 1.0 + 0.1 * jnp.abs(jax.random.normal(ks[11], (out_ch,), f32)),
    }


if __name__ == "__main__":
    key = jax.random.PRNGKey(0)
    k_x, k_p = jax.random.split(key)

    batch, in_ch, out_ch, hw, stride = 2, 4, 8, 16, 1
    x = jax.random.normal(k_x, (batch, in_ch, hw, hw), jnp.float32)
    params = _init_params(k_p, in_ch, out_ch)

    fwd = jax.jit(functools.partial(conv_block, stride=stride))
    out = jax.block_until_ready(fwd(x, params))

    ref = jax.block_until_ready(_ref_conv_block(x, params, stride))

    assert out.shape == ref.shape == (batch, out_ch, hw, hw), out.shape
    # bf16 MXU operands + bf16 VMEM intermediate (f32 accumulation) -> the
    # tolerance is looser than pure-f32 conv accuracy.
    assert jnp.allclose(out, ref, rtol=3e-2, atol=3e-2), (
        float(jnp.max(jnp.abs(out - ref))))

    print("KERNEL_OK")
</pallas_src>

<mosaic_0001>
module attributes {stable_mosaic.version = 11 : i64} {
  func.func @_conv_block_kernel(%arg0: i32, %arg1: memref<288x1xf32, #tpu.memory_space<vmem>>, %arg2: memref<336x4xbf16, #tpu.memory_space<vmem>>, %arg3: memref<36x8xbf16, #tpu.memory_space<vmem>>, %arg4: memref<1x8xf32, #tpu.memory_space<vmem>>, %arg5: memref<1x8xf32, #tpu.memory_space<vmem>>, %arg6: memref<72x8xbf16, #tpu.memory_space<vmem>>, %arg7: memref<1x8xf32, #tpu.memory_space<vmem>>, %arg8: memref<1x8xf32, #tpu.memory_space<vmem>>, %arg9: memref<288x8xf32, #tpu.memory_space<vmem>>, %arg10: memref<288x36xbf16, #tpu.memory_space<vmem>>, %arg11: memref<336x8xbf16, #tpu.memory_space<vmem>>, %arg12: memref<288x72xbf16, #tpu.memory_space<vmem>>) attributes {dimension_semantics = [#tpu.dimension_semantics<parallel>], iteration_bounds = array<i64: 2>, scalar_prefetch = 0 : i64, scratch_operands = 3 : i64, tpu.core_type = #tpu.core_type<tc>, window_params = [{pipeline_mode = #tpu.pipeline_mode<synchronous>, transform_indices = @transform_0, window_bounds = array<i64: 288, 1>}, {transform_indices = @transform_1, window_bounds = array<i64: 336, 4>}, {pipeline_mode = #tpu.pipeline_mode<synchronous>, transform_indices = @transform_2, window_bounds = array<i64: 36, 8>}, {pipeline_mode = #tpu.pipeline_mode<synchronous>, transform_indices = @transform_3, window_bounds = array<i64: 1, 8>}, {pipeline_mode = #tpu.pipeline_mode<synchronous>, transform_indices = @transform_4, window_bounds = array<i64: 1, 8>}, {pipeline_mode = #tpu.pipeline_mode<synchronous>, transform_indices = @transform_5, window_bounds = array<i64: 72, 8>}, {pipeline_mode = #tpu.pipeline_mode<synchronous>, transform_indices = @transform_6, window_bounds = array<i64: 1, 8>}, {pipeline_mode = #tpu.pipeline_mode<synchronous>, transform_indices = @transform_7, window_bounds = array<i64: 1, 8>}, {transform_indices = @transform_8, window_bounds = array<i64: 288, 8>}]} {
    %c0 = arith.constant 0 : index
    %c0_0 = arith.constant 0 : index
    %0 = vector.load %arg2[%c0, %c0_0] : memref<336x4xbf16, #tpu.memory_space<vmem>>, vector<288x4xbf16>
    %c0_1 = arith.constant 0 : index
    %c0_2 = arith.constant 0 : index
    %1 = vector.load %arg10[%c0_1, %c0_2] : memref<288x36xbf16, #tpu.memory_space<vmem>>, vector<288x4xbf16>
    tpu.vector_store %arg10[%c0_1, %c0_2], %0 {strides = array<i32>} : memref<288x36xbf16, #tpu.memory_space<vmem>>, vector<288x4xbf16>,
    %c1 = arith.constant 1 : index
    %c0_3 = arith.constant 0 : index
    %2 = vector.load %arg2[%c1, %c0_3] : memref<336x4xbf16, #tpu.memory_space<vmem>>, vector<288x4xbf16>
    %c0_4 = arith.constant 0 : index
    %c4 = arith.constant 4 : index
    %3 = vector.load %arg10[%c0_4, %c4] : memref<288x36xbf16, #tpu.memory_space<vmem>>, vector<288x4xbf16>
    tpu.vector_store %arg10[%c0_4, %c4], %2 {strides = array<i32>} : memref<288x36xbf16, #tpu.memory_space<vmem>>, vector<288x4xbf16>,
    %c2 = arith.constant 2 : index
    %c0_5 = arith.constant 0 : index
    %4 = vector.load %arg2[%c2, %c0_5] : memref<336x4xbf16, #tpu.memory_space<vmem>>, vector<288x4xbf16>
    %c0_6 = arith.constant 0 : index
    %c8 = arith.constant 8 : index
    %5 = vector.load %arg10[%c0_6, %c8] : memref<288x36xbf16, #tpu.memory_space<vmem>>, vector<288x4xbf16>
    tpu.vector_store %arg10[%c0_6, %c8], %4 {strides = array<i32>} : memref<288x36xbf16, #tpu.memory_space<vmem>>, vector<288x4xbf16>,
    %c18 = arith.constant 18 : index
    %c0_7 = arith.constant 0 : index
    %6 = vector.load %arg2[%c18, %c0_7] : memref<336x4xbf16, #tpu.memory_space<vmem>>, vector<288x4xbf16>
    %c0_8 = arith.constant 0 : index
    %c12 = arith.constant 12 : index
    %7 = vector.load %arg10[%c0_8, %c12] : memref<288x36xbf16, #tpu.memory_space<vmem>>, vector<288x4xbf16>
    tpu.vector_store %arg10[%c0_8, %c12], %6 {strides = array<i32>} : memref<288x36xbf16, #tpu.memory_space<vmem>>, vector<288x4xbf16>,
    %c19 = arith.constant 19 : index
    %c0_9 = arith.constant 0 : index
    %8 = vector.load %arg2[%c19, %c0_9] : memref<336x4xbf16, #tpu.memory_space<vmem>>, vector<288x4xbf16>
    %c0_10 = arith.constant 0 : index
    %c16 = arith.constant 16 : index
    %9 = vector.load %arg10[%c0_10, %c16] : memref<288x36xbf16, #tpu.memory_space<vmem>>, vector<288x4xbf16>
    tpu.vector_store %arg10[%c0_10, %c16], %8 {strides = array<i32>} : memref<288x36xbf16, #tpu.memory_space<vmem>>, vector<288x4xbf16>,
    %c20 = arith.constant 20 : index
    %c0_11 = arith.constant 0 : index
    %10 = vector.load %arg2[%c20, %c0_11] : memref<336x4xbf16, #tpu.memory_space<vmem>>, vector<288x4xbf16>
    %c0_12 = arith.constant 0 : index
    %c20_13 = arith.constant 20 : index
    %11 = vector.load %arg10[%c0_12, %c20_13] : memref<288x36xbf16, #tpu.memory_space<vmem>>, vector<288x4xbf16>
    tpu.vector_store %arg10[%c0_12, %c20_13], %10 {strides = array<i32>} : memref<288x36xbf16, #tpu.memory_space<vmem>>, vector<288x4xbf16>,
    %c36 = arith.constant 36 : index
    %c0_14 = arith.constant 0 : index
    %12 = vector.load %arg2[%c36, %c0_14] : memref<336x4xbf16, #tpu.memory_space<vmem>>, vector<288x4xbf16>
    %c0_15 = arith.constant 0 : index
    %c24 = arith.constant 24 : index
    %13 = vector.load %arg10[%c0_15, %c24] : memref<288x36xbf16, #tpu.memory_space<vmem>>, vector<288x4xbf16>
    tpu.vector_store %arg10[%c0_15, %c24], %12 {strides = array<i32>} : memref<288x36xbf16, #tpu.memory_space<vmem>>, vector<288x4xbf16>,
    %c37 = arith.constant 37 : index
    %c0_16 = arith.constant 0 : index
    %14 = vector.load %arg2[%c37, %c0_16] : memref<336x4xbf16, #tpu.memory_space<vmem>>, vector<288x4xbf16>
    %c0_17 = arith.constant 0 : index
    %c28 = arith.constant 28 : index
    %15 = vector.load %arg10[%c0_17, %c28] : memref<288x36xbf16, #tpu.memory_space<vmem>>, vector<288x4xbf16>
    tpu.vector_store %arg10[%c0_17, %c28], %14 {strides = array<i32>} : memref<288x36xbf16, #tpu.memory_space<vmem>>, vector<288x4xbf16>,
    %c38 = arith.constant 38 : index
    %c0_18 = arith.constant 0 : index
    %16 = vector.load %arg2[%c38, %c0_18] : memref<336x4xbf16, #tpu.memory_space<vmem>>, vector<288x4xbf16>
    %c0_19 = arith.constant 0 : index
    %c32 = arith.constant 32 : index
    %17 = vector.load %arg10[%c0_19, %c32] : memref<288x36xbf16, #tpu.memory_space<vmem>>, vector<288x4xbf16>
    tpu.vector_store %arg10[%c0_19, %c32], %16 {strides = array<i32>} : memref<288x36xbf16, #tpu.memory_space<vmem>>, vector<288x4xbf16>,
    %c0_20 = arith.constant 0 : index
    %c0_21 = arith.constant 0 : index
    %18 = vector.load %arg10[%c0_20, %c0_21] : memref<288x36xbf16, #tpu.memory_space<vmem>>, vector<288x36xbf16>
    %c0_22 = arith.constant 0 : index
    %c0_23 = arith.constant 0 : index
    %19 = vector.load %arg3[%c0_22, %c0_23] : memref<36x8xbf16, #tpu.memory_space<vmem>>, vector<36x8xbf16>
    %cst = arith.constant dense<0.000000e+00> : vector<288x8xf32>
    %20 = tpu.matmul %18, %19, %cst {dimension_numbers = #tpu.dot_dimension_numbers<[1], [0], [0], [1], [0, 0, 1, 1], [], []>} : vector<288x36xbf16>, vector<36x8xbf16>, vector<288x8xf32> -> vector<288x8xf32>
    %c0_24 = arith.constant 0 : index
    %c0_25 = arith.constant 0 : index
    %21 = vector.load %arg4[%c0_24, %c0_25] : memref<1x8xf32, #tpu.memory_space<vmem>>, vector<1x8xf32>
    %22 = vector.broadcast %21 : vector<1x8xf32> to vector<288x8xf32>
    %23 = arith.mulf %20, %22 : vector<288x8xf32>
    %c0_26 = arith.constant 0 : index
    %c0_27 = arith.constant 0 : index
    %24 = vector.load %arg5[%c0_26, %c0_27] : memref<1x8xf32, #tpu.memory_space<vmem>>, vector<1x8xf32>
    %25 = vector.broadcast %24 : vector<1x8xf32> to vector<288x8xf32>
    %26 = arith.addf %23, %25 : vector<288x8xf32>
    %cst_28 = arith.constant 0.000000e+00 : f32
    %27 = vector.broadcast %cst_28 : f32 to vector<288x8xf32>
    %28 = arith.maximumf %26, %27 : vector<288x8xf32>
    %c0_29 = arith.constant 0 : index
    %c0_30 = arith.constant 0 : index
    %29 = vector.load %arg1[%c0_29, %c0_30] : memref<288x1xf32, #tpu.memory_space<vmem>>, vector<288x1xf32>
    %30 = vector.broadcast %29 : vector<288x1xf32> to vector<288x8xf32>
    %31 = arith.mulf %28, %30 : vector<288x8xf32>
    %32 = arith.truncf %31 : vector<288x8xf32> to vector<288x8xbf16>
    %cst_31 = arith.constant 0.000000e+00 : bf16
    %33 = vector.broadcast %cst_31 : bf16 to vector<336x8xbf16>
    %c0_32 = arith.constant 0 : index
    %c0_33 = arith.constant 0 : index
    %34 = vector.load %arg11[%c0_32, %c0_33] : memref<336x8xbf16, #tpu.memory_space<vmem>>, vector<336x8xbf16>
    tpu.vector_store %arg11[%c0_32, %c0_33], %33 {strides = array<i32>} : memref<336x8xbf16, #tpu.memory_space<vmem>>, vector<336x8xbf16>,
    %c19_34 = arith.constant 19 : index
    %c0_35 = arith.constant 0 : index
    %35 = vector.load %arg11[%c19_34, %c0_35] : memref<336x8xbf16, #tpu.memory_space<vmem>>, vector<288x8xbf16>
    tpu.vector_store %arg11[%c19_34, %c0_35], %32 {strides = array<i32>} : memref<336x8xbf16, #tpu.memory_space<vmem>>, vector<288x8xbf16>,
    %c0_36 = arith.constant 0 : index
    %c0_37 = arith.constant 0 : index
    %36 = vector.load %arg11[%c0_36, %c0_37] : memref<336x8xbf16, #tpu.memory_space<vmem>>, vector<288x8xbf16>
    %c0_38 = arith.constant 0 : index
    %c0_39 = arith.constant 0 : index
    %37 = vector.load %arg12[%c0_38, %c0_39] : memref<288x72xbf16, #tpu.memory_space<vmem>>, vector<288x8xbf16>
    tpu.vector_store %arg12[%c0_38, %c0_39], %36 {strides = array<i32>} : memref<288x72xbf16, #tpu.memory_space<vmem>>, vector<288x8xbf16>,
    %c1_40 = arith.constant 1 : index
    %c0_41 = arith.constant 0 : index
    %38 = vector.load %arg11[%c1_40, %c0_41] : memref<336x8xbf16, #tpu.memory_space<vmem>>, vector<288x8xbf16>
    %c0_42 = arith.constant 0 : index
    %c8_43 = arith.constant 8 : index
    %39 = vector.load %arg12[%c0_42, %c8_43] : memref<288x72xbf16, #tpu.memory_space<vmem>>, vector<288x8xbf16>
    tpu.vector_store %arg12[%c0_42, %c8_43], %38 {strides = array<i32>} : memref<288x72xbf16, #tpu.memory_space<vmem>>, vector<288x8xbf16>,
    %c2_44 = arith.constant 2 : index
    %c0_45 = arith.constant 0 : index
    %40 = vector.load %arg11[%c2_44, %c0_45] : memref<336x8xbf16, #tpu.memory_space<vmem>>, vector<288x8xbf16>
    %c0_46 = arith.constant 0 : index
    %c16_47 = arith.constant 16 : index
    %41 = vector.load %arg12[%c0_46, %c16_47] : memref<288x72xbf16, #tpu.memory_space<vmem>>, vector<288x8xbf16>
    tpu.vector_store %arg12[%c0_46, %c16_47], %40 {strides = array<i32>} : memref<288x72xbf16, #tpu.memory_space<vmem>>, vector<288x8xbf16>,
    %c18_48 = arith.constant 18 : index
    %c0_49 = arith.constant 0 : index
    %42 = vector.load %arg11[%c18_48, %c0_49] : memref<336x8xbf16, #tpu.memory_space<vmem>>, vector<288x8xbf16>
    %c0_50 = arith.constant 0 : index
    %c24_51 = arith.constant 24 : index
    %43 = vector.load %arg12[%c0_50, %c24_51] : memref<288x72xbf16, #tpu.memory_space<vmem>>, vector<288x8xbf16>
    tpu.vector_store %arg12[%c0_50, %c24_51], %42 {strides = array<i32>} : memref<288x72xbf16, #tpu.memory_space<vmem>>, vector<288x8xbf16>,
    %c19_52 = arith.constant 19 : index
    %c0_53 = arith.constant 0 : index
    %44 = vector.load %arg11[%c19_52, %c0_53] : memref<336x8xbf16, #tpu.memory_space<vmem>>, vector<288x8xbf16>
    %c0_54 = arith.constant 0 : index
    %c32_55 = arith.constant 32 : index
    %45 = vector.load %arg12[%c0_54, %c32_55] : memref<288x72xbf16, #tpu.memory_space<vmem>>, vector<288x8xbf16>
    tpu.vector_store %arg12[%c0_54, %c32_55], %44 {strides = array<i32>} : memref<288x72xbf16, #tpu.memory_space<vmem>>, vector<288x8xbf16>,
    %c20_56 = arith.constant 20 : index
    %c0_57 = arith.constant 0 : index
    %46 = vector.load %arg11[%c20_56, %c0_57] : memref<336x8xbf16, #tpu.memory_space<vmem>>, vector<288x8xbf16>
    %c0_58 = arith.constant 0 : index
    %c40 = arith.constant 40 : index
    %47 = vector.load %arg12[%c0_58, %c40] : memref<288x72xbf16, #tpu.memory_space<vmem>>, vector<288x8xbf16>
    tpu.vector_store %arg12[%c0_58, %c40], %46 {strides = array<i32>} : memref<288x72xbf16, #tpu.memory_space<vmem>>, vector<288x8xbf16>,
    %c36_59 = arith.constant 36 : index
    %c0_60 = arith.constant 0 : index
    %48 = vector.load %arg11[%c36_59, %c0_60] : memref<336x8xbf16, #tpu.memory_space<vmem>>, vector<288x8xbf16>
    %c0_61 = arith.constant 0 : index
    %c48 = arith.constant 48 : index
    %49 = vector.load %arg12[%c0_61, %c48] : memref<288x72xbf16, #tpu.memory_space<vmem>>, vector<288x8xbf16>
    tpu.vector_store %arg12[%c0_61, %c48], %48 {strides = array<i32>} : memref<288x72xbf16, #tpu.memory_space<vmem>>, vector<288x8xbf16>,
    %c37_62 = arith.constant 37 : index
    %c0_63 = arith.constant 0 : index
    %50 = vector.load %arg11[%c37_62, %c0_63] : memref<336x8xbf16, #tpu.memory_space<vmem>>, vector<288x8xbf16>
    %c0_64 = arith.constant 0 : index
    %c56 = arith.constant 56 : index
    %51 = vector.load %arg12[%c0_64, %c56] : memref<288x72xbf16, #tpu.memory_space<vmem>>, vector<288x8xbf16>
    tpu.vector_store %arg12[%c0_64, %c56], %50 {strides = array<i32>} : memref<288x72xbf16, #tpu.memory_space<vmem>>, vector<288x8xbf16>,
    %c38_65 = arith.constant 38 : index
    %c0_66 = arith.constant 0 : index
    %52 = vector.load %arg11[%c38_65, %c0_66] : memref<336x8xbf16, #tpu.memory_space<vmem>>, vector<288x8xbf16>
    %c0_67 = arith.constant 0 : index
    %c64 = arith.constant 64 : index
    %53 = vector.load %arg12[%c0_67, %c64] : memref<288x72xbf16, #tpu.memory_space<vmem>>, vector<288x8xbf16>
    tpu.vector_store %arg12[%c0_67, %c64], %52 {strides = array<i32>} : memref<288x72xbf16, #tpu.memory_space<vmem>>, vector<288x8xbf16>,
    %c0_68 = arith.constant 0 : index
    %c0_69 = arith.constant 0 : index
    %54 = vector.load %arg12[%c0_68, %c0_69] : memref<288x72xbf16, #tpu.memory_space<vmem>>, vector<288x72xbf16>
    %c0_70 = arith.constant 0 : index
    %c0_71 = arith.constant 0 : index
    %55 = vector.load %arg6[%c0_70, %c0_71] : memref<72x8xbf16, #tpu.memory_space<vmem>>, vector<72x8xbf16>
    %cst_72 = arith.constant dense<0.000000e+00> : vector<288x8xf32>
    %56 = tpu.matmul %54, %55, %cst_72 {dimension_numbers = #tpu.dot_dimension_numbers<[1], [0], [0], [1], [0, 0, 1, 1], [], []>} : vector<288x72xbf16>, vector<72x8xbf16>, vector<288x8xf32> -> vector<288x8xf32>
    %c0_73 = arith.constant 0 : index
    %c0_74 = arith.constant 0 : index
    %57 = vector.load %arg7[%c0_73, %c0_74] : memref<1x8xf32, #tpu.memory_space<vmem>>, vector<1x8xf32>
    %58 = vector.broadcast %57 : vector<1x8xf32> to vector<288x8xf32>
    %59 = arith.mulf %56, %58 : vector<288x8xf32>
    %c0_75 = arith.constant 0 : index
    %c0_76 = arith.constant 0 : index
    %60 = vector.load %arg8[%c0_75, %c0_76] : memref<1x8xf32, #tpu.memory_space<vmem>>, vector<1x8xf32>
    %61 = vector.broadcast %60 : vector<1x8xf32> to vector<288x8xf32>
    %62 = arith.addf %59, %61 : vector<288x8xf32>
    %cst_77 = arith.constant 0.000000e+00 : f32
    %63 = vector.broadcast %cst_77 : f32 to vector<288x8xf32>
    %64 = arith.maximumf %62, %63 : vector<288x8xf32>
    %c0_78 = arith.constant 0 : index
    %c0_79 = arith.constant 0 : index
    %65 = vector.load %arg9[%c0_78, %c0_79] : memref<288x8xf32, #tpu.memory_space<vmem>>, vector<288x8xf32>
    tpu.vector_store %arg9[%c0_78, %c0_79], %64 {strides = array<i32>} : memref<288x8xf32, #tpu.memory_space<vmem>>, vector<288x8xf32>,
    return
  }
  func.func @transform_0(%arg0: i32) -> (i32, i32) {
    %c0_i32 = arith.constant 0 : i32
    %c0_i32_0 = arith.constant 0 : i32
    %c0_i32_1 = arith.constant 0 : i32
    return %c0_i32, %c0_i32_0 : i32, i32
  }
  func.func @transform_1(%arg0: i32) -> (i32, i32) {
    %c0_i32 = arith.constant 0 : i32
    %c0_i32_0 = arith.constant 0 : i32
    return %arg0, %c0_i32 : i32, i32
  }
  func.func @transform_2(%arg0: i32) -> (i32, i32) {
    %c0_i32 = arith.constant 0 : i32
    %c0_i32_0 = arith.constant 0 : i32
    %c0_i32_1 = arith.constant 0 : i32
    return %c0_i32, %c0_i32_0 : i32, i32
  }
  func.func @transform_3(%arg0: i32) -> (i32, i32) {
    %c0_i32 = arith.constant 0 : i32
    %c0_i32_0 = arith.constant 0 : i32
    %c0_i32_1 = arith.constant 0 : i32
    return %c0_i32, %c0_i32_0 : i32, i32
  }
  func.func @transform_4(%arg0: i32) -> (i32, i32) {
    %c0_i32 = arith.constant 0 : i32
    %c0_i32_0 = arith.constant 0 : i32
    %c0_i32_1 = arith.constant 0 : i32
    return %c0_i32, %c0_i32_0 : i32, i32
  }
  func.func @transform_5(%arg0: i32) -> (i32, i32) {
    %c0_i32 = arith.constant 0 : i32
    %c0_i32_0 = arith.constant 0 : i32
    %c0_i32_1 = arith.constant 0 : i32
    return %c0_i32, %c0_i32_0 : i32, i32
  }
  func.func @transform_6(%arg0: i32) -> (i32, i32) {
    %c0_i32 = arith.constant 0 : i32
    %c0_i32_0 = arith.constant 0 : i32
    %c0_i32_1 = arith.constant 0 : i32
    return %c0_i32, %c0_i32_0 : i32, i32
  }
  func.func @transform_7(%arg0: i32) -> (i32, i32) {
    %c0_i32 = arith.constant 0 : i32
    %c0_i32_0 = arith.constant 0 : i32
    %c0_i32_1 = arith.constant 0 : i32
    return %c0_i32, %c0_i32_0 : i32, i32
  }
  func.func @transform_8(%arg0: i32) -> (i32, i32) {
    %c0_i32 = arith.constant 0 : i32
    %c0_i32_0 = arith.constant 0 : i32
    return %arg0, %c0_i32 : i32, i32
  }
}

</mosaic_0001>

<llo_original>
// kernel: conv_block.1
$region0: #{conv_block.1}
  #allocation0 [shape = 'u32[]', space=smem, size = 0x4, offset = 0x4, fixed_abs, tag = 'smem constant byte address 0x4 - core index']
  #allocation1 [shape = 'u32[144,128]{1,0:T(1,128)}', space=vmem, size = 0x12000, scoped, tag = 'internal scratch']
  #allocation2 [shape = 'bf16[288,36]{1,0:T(16,128)(2,1)}', space=vmem, size = 0x12000, scoped, tag = 'scratch operand']
  #allocation3 [shape = 'bf16[336,8]{1,0:T(16,128)(2,1)}', space=vmem, size = 0x15000, scoped, tag = 'scratch operand']
  #allocation4 [shape = 'bf16[288,72]{1,0:T(16,128)(2,1)}', space=vmem, size = 0x12000, scoped, tag = 'scratch operand']
  %s0 = inlined_call_operand.vmem [shape: f32[288,1], index: 0, kind: input, shape index: {}]
  %s1 = inlined_call_operand.vmem [shape: bf16[672,4], index: 1, kind: input, shape index: {}]
  %s2 = inlined_call_operand.vmem [shape: bf16[36,8], index: 2, kind: input, shape index: {}]
  %s3 = inlined_call_operand.vmem [shape: f32[1,8], index: 3, kind: input, shape index: {}]
  %s4 = inlined_call_operand.vmem [shape: f32[1,8], index: 4, kind: input, shape index: {}]
  %s5 = inlined_call_operand.vmem [shape: bf16[72,8], index: 5, kind: input, shape index: {}]
  %s6 = inlined_call_operand.vmem [shape: f32[1,8], index: 6, kind: input, shape index: {}]
  %s7 = inlined_call_operand.vmem [shape: f32[1,8], index: 7, kind: input, shape index: {}]
  %s8 = inlined_call_operand.vmem [shape: f32[576,8], index: 8, kind: output, shape index: {}]
  %s9 = sld [smem:[#allocation0]]
  $region65: #{conv_block.1} parent=0
    _
  %s11 = ssub.s32 1, %s9
  %s12 = scalar_select 0, %s11, %s9
  loop: start=0, step=1, limit=4
  $region2: #{conv_block.1} parent=0 // loop_pre_header
    _
  $region3: #{conv_block.1} parent=0 // loop_header
    %s14 = sphi 0, %s18
    %p15 = scmp.ge.s32.totalorder %s14, 4
    %s22 = sphi 0, %s22
    %s24 = sphi 0, %s22
    %s25 = sphi 0, %s24
    %s39 = sphi 0, %s25
    %s45 = sphi 0, %s47
    %s48 = sphi 0, %s45
    %s49 = sphi 0, %s48
    %s65 = sphi 0, %s49
    %s69 = sphi 0, %s69
    %s71 = sphi 0, %s69
    %s72 = sphi 0, %s71
    %s86 = sphi 0, %s72
    %s90 = sphi 0, %s90
    %s92 = sphi 0, %s90
    %s93 = sphi 0, %s92
    %s107 = sphi 0, %s93
    %s111 = sphi 0, %s111
    %s113 = sphi 0, %s111
    %s114 = sphi 0, %s113
    %s128 = sphi 0, %s114
    %s132 = sphi 0, %s132
    %s134 = sphi 0, %s132
    %s135 = sphi 0, %s134
    %s149 = sphi 0, %s135
    %s153 = sphi 0, %s153
    %s155 = sphi 0, %s153
    %s156 = sphi 0, %s155
    %s170 = sphi 0, %s156
    %s174 = sphi 0, %s174
    %s176 = sphi 0, %s174
    %s177 = sphi 0, %s176
    %s191 = sphi 0, %s177
    %s197 = sphi 0, %s199
    %s200 = sphi 0, %s197
    %s201 = sphi 0, %s200
    %s217 = sphi 0, %s201
  $region4: #{conv_block.1} parent=0 // loop_header_branch
    %17 = sbr.rel (%p15) target = $region8
  $region5: #{conv_block.1} parent=0 // loop_body
    %s19 = ssub.s32 %s14, 1
    %s20 = ssub.s32 %s14, 2
    %s21 = sadd.s32 %s14, 1
    %s23 = sadd.s32 %s22, 1
    %p26 = scmp.eq.s32.totalorder %s14, 1
    %p27 = scmp.ne.s32.totalorder %s22, %s24
    %p28 = scmp.eq.s32.totalorder %s14, 0
    %p29 = por %p27, %p28
    %p30 = scmp.ne.s32.totalorder %s22, %s24
    %p31 = scmp.eq.s32.totalorder %s19, 1
    %p32 = por %p30, %p31
    %p33 = scmp.ne.s32.totalorder %s24, %s25
    %p34 = scmp.eq.s32.totalorder %s19, 0
    %p35 = por %p33, %p34
    %p36 = scmp.ne.s32.totalorder %s24, %s25
    %p37 = scmp.eq.s32.totalorder %s20, 1
    %p38 = por %p36, %p37
    %p40 = scmp.ne.s32.totalorder %s25, %s39
    %p41 = scmp.eq.s32.totalorder %s20, 0
    %p42 = por %p40, %p41
    %s43 = ssub.s32 %s14, %s21
    %p44 = scmp.eq.s32.totalorder %s43, 0
    %s46 = sadd.s32 %s45, 1
    %s47 = scalar_select %p44, %s45, %s46
    %p50 = pneg %p44
    %p51 = scmp.eq.s32.totalorder %s14, 1
    %p52 = por %p50, %p51
    %p53 = scmp.ne.s32.totalorder %s45, %s48
    %p54 = scmp.eq.s32.totalorder %s14, 0
    %p55 = por %p53, %p54
    %p56 = scmp.ne.s32.totalorder %s45, %s48
    %p57 = scmp.eq.s32.totalorder %s19, 1
    %p58 = por %p56, %p57
    %p59 = scmp.ne.s32.totalorder %s48, %s49
    %p60 = scmp.eq.s32.totalorder %s19, 0
    %p61 = por %p59, %p60
    %p62 = scmp.ne.s32.totalorder %s48, %s49
    %p63 = scmp.eq.s32.totalorder %s20, 1
    %p64 = por %p62, %p63
    %p66 = scmp.ne.s32.totalorder %s49, %s65
    %p67 = scmp.eq.s32.totalorder %s20, 0
    %p68 = por %p66, %p67
    %s70 = sadd.s32 %s69, 1
    %p73 = scmp.eq.s32.totalorder %s14, 1
    %p74 = scmp.ne.s32.totalorder %s69, %s71
    %p75 = scmp.eq.s32.totalorder %s14, 0
    %p76 = por %p74, %p75
    %p77 = scmp.ne.s32.totalorder %s69, %s71
    %p78 = scmp.eq.s32.totalorder %s19, 1
    %p79 = por %p77, %p78
    %p80 = scmp.ne.s32.totalorder %s71, %s72
    %p81 = scmp.eq.s32.totalorder %s19, 0
    %p82 = por %p80, %p81
    %p83 = scmp.ne.s32.totalorder %s71, %s72
    %p84 = scmp.eq.s32.totalorder %s20, 1
    %p85 = por %p83, %p84
    %p87 = scmp.ne.s32.totalorder %s72, %s86
    %p88 = scmp.eq.s32.totalorder %s20, 0
    %p89 = por %p87, %p88
    %s91 = sadd.s32 %s90, 1
    %p94 = scmp.eq.s32.totalorder %s14, 1
    %p95 = scmp.ne.s32.totalorder %s90, %s92
    %p96 = scmp.eq.s32.totalorder %s14, 0
    %p97 = por %p95, %p96
    %p98 = scmp.ne.s32.totalorder %s90, %s92
    %p99 = scmp.eq.s32.totalorder %s19, 1
    %p100 = por %p98, %p99
    %p101 = scmp.ne.s32.totalorder %s92, %s93
    %p102 = scmp.eq.s32.totalorder %s19, 0
    %p103 = por %p101, %p102
    %p104 = scmp.ne.s32.totalorder %s92, %s93
    %p105 = scmp.eq.s32.totalorder %s20, 1
    %p106 = por %p104, %p105
    %p108 = scmp.ne.s32.totalorder %s93, %s107
    %p109 = scmp.eq.s32.totalorder %s20, 0
    %p110 = por %p108, %p109
    %s112 = sadd.s32 %s111, 1
    %p115 = scmp.eq.s32.totalorder %s14, 1
    %p116 = scmp.ne.s32.totalorder %s111, %s113
    %p117 = scmp.eq.s32.totalorder %s14, 0
    %p118 = por %p116, %p117
    %p119 = scmp.ne.s32.totalorder %s111, %s113
    %p120 = scmp.eq.s32.totalorder %s19, 1
    %p121 = por %p119, %p120
    %p122 = scmp.ne.s32.totalorder %s113, %s114
    %p123 = scmp.eq.s32.totalorder %s19, 0
    %p124 = por %p122, %p123
    %p125 = scmp.ne.s32.totalorder %s113, %s114
    %p126 = scmp.eq.s32.totalorder %s20, 1
    %p127 = por %p125, %p126
    %p129 = scmp.ne.s32.totalorder %s114, %s128
    %p130 = scmp.eq.s32.totalorder %s20, 0
    %p131 = por %p129, %p130
    %s133 = sadd.s32 %s132, 1
    %p136 = scmp.eq.s32.totalorder %s14, 1
    %p137 = scmp.ne.s32.totalorder %s132, %s134
    %p138 = scmp.eq.s32.totalorder %s14, 0
    %p139 = por %p137, %p138
    %p140 = scmp.ne.s32.totalorder %s132, %s134
    %p141 = scmp.eq.s32.totalorder %s19, 1
    %p142 = por %p140, %p141
    %p143 = scmp.ne.s32.totalorder %s134, %s135
    %p144 = scmp.eq.s32.totalorder %s19, 0
    %p145 = por %p143, %p144
    %p146 = scmp.ne.s32.totalorder %s134, %s135
    %p147 = scmp.eq.s32.totalorder %s20, 1
    %p148 = por %p146, %p147
    %p150 = scmp.ne.s32.totalorder %s135, %s149
    %p151 = scmp.eq.s32.totalorder %s20, 0
    %p152 = por %p150, %p151
    %s154 = sadd.s32 %s153, 1
    %p157 = scmp.eq.s32.totalorder %s14, 1
    %p158 = scmp.ne.s32.totalorder %s153, %s155
    %p159 = scmp.eq.s32.totalorder %s14, 0
    %p160 = por %p158, %p159
    %p161 = scmp.ne.s32.totalorder %s153, %s155
    %p162 = scmp.eq.s32.totalorder %s19, 1
    %p163 = por %p161, %p162
    %p164 = scmp.ne.s32.totalorder %s155, %s156
    %p165 = scmp.eq.s32.totalorder %s19, 0
    %p166 = por %p164, %p165
    %p167 = scmp.ne.s32.totalorder %s155, %s156
    %p168 = scmp.eq.s32.totalorder %s20, 1
    %p169 = por %p167, %p168
    %p171 = scmp.ne.s32.totalorder %s156, %s170
    %p172 = scmp.eq.s32.totalorder %s20, 0
    %p173 = por %p171, %p172
    %s175 = sadd.s32 %s174, 1
    %p178 = scmp.eq.s32.totalorder %s14, 1
    %p179 = scmp.ne.s32.totalorder %s174, %s176
    %p180 = scmp.eq.s32.totalorder %s14, 0
    %p181 = por %p179, %p180
    %p182 = scmp.ne.s32.totalorder %s174, %s176
    %p183 = scmp.eq.s32.totalorder %s19, 1
    %p184 = por %p182, %p183
    %p185 = scmp.ne.s32.totalorder %s176, %s177
    %p186 = scmp.eq.s32.totalorder %s19, 0
    %p187 = por %p185, %p186
    %p188 = scmp.ne.s32.totalorder %s176, %s177
    %p189 = scmp.eq.s32.totalorder %s20, 1
    %p190 = por %p188, %p189
    %p192 = scmp.ne.s32.totalorder %s177, %s191
    %p193 = scmp.eq.s32.totalorder %s20, 0
    %p194 = por %p192, %p193
    %s195 = ssub.s32 %s14, %s21
    %p196 = scmp.eq.s32.totalorder %s195, 0
    %s198 = sadd.s32 %s197, 1
    %s199 = scalar_select %p196, %s197, %s198
    %p202 = pneg %p196
    %p203 = scmp.eq.s32.totalorder %s14, 1
    %p204 = por %p202, %p203
    %p205 = scmp.ne.s32.totalorder %s197, %s200
    %p206 = scmp.eq.s32.totalorder %s14, 0
    %p207 = por %p205, %p206
    %p208 = scmp.ne.s32.totalorder %s197, %s200
    %p209 = scmp.eq.s32.totalorder %s19, 1
    %p210 = por %p208, %p209
    %p211 = scmp.ne.s32.totalorder %s200, %s201
    %p212 = scmp.eq.s32.totalorder %s19, 0
    %p213 = por %p211, %p212
    %p214 = scmp.ne.s32.totalorder %s200, %s201
    %p215 = scmp.eq.s32.totalorder %s20, 1
    %p216 = por %p214, %p215
    %p218 = scmp.ne.s32.totalorder %s201, %s217
    %p219 = scmp.eq.s32.totalorder %s20, 0
    %p220 = por %p218, %p219
    %p221 = scmp.le.s32.totalorder 1, %s14
    %p222 = scmp.lt.s32.totalorder %s14, 3
    %p223 = pnand %p221, %p222
    %p224 = pneg %p223
    // Predicated region
    $region9: #{conv_block.1} parent=5 // pred_check
      _
    $region10: #{conv_block.1} parent=5 // pred_check_branch
      %226 = sbr.rel (%p223) target = $region12
    $region11: #{conv_block.1} parent=5 // pred_region
      %s227 = ssub.s32 %s14, 1
      // Predicated region
      $region13: #{conv_block.1} parent=11 // pred_check
        %p228 = pneg %p35
      $region14: #{conv_block.1} parent=11 // pred_check_branch
        %230 = sbr.rel (%p228) target = $region16
      $region15: #{conv_block.1} parent=11 // pred_region
        _
      $region16: #{conv_block.1} parent=11 // pred_fallthru
        _
      // Predicated region
      $region17: #{conv_block.1} parent=11 // pred_check
        %p231 = pneg %p82
      $region18: #{conv_block.1} parent=11 // pred_check_branch
        %233 = sbr.rel (%p231) target = $region20
      $region19: #{conv_block.1} parent=11 // pred_region
        _
      $region20: #{conv_block.1} parent=11 // pred_fallthru
        _
      // Predicated region
      $region21: #{conv_block.1} parent=11 // pred_check
        %p234 = pneg %p103
      $region22: #{conv_block.1} parent=11 // pred_check_branch
        %236 = sbr.rel (%p234) target = $region24
      $region23: #{conv_block.1} parent=11 // pred_region
        _
      $region24: #{conv_block.1} parent=11 // pred_fallthru
        _
      // Predicated region
      $region25: #{conv_block.1} parent=11 // pred_check
        %p237 = pneg %p124
      $region26: #{conv_block.1} parent=11 // pred_check_branch
        %239 = sbr.rel (%p237) target = $region28
      $region27: #{conv_block.1} parent=11 // pred_region
        _
      $region28: #{conv_block.1} parent=11 // pred_fallthru
        _
      // Predicated region
      $region29: #{conv_block.1} parent=11 // pred_check
        %p240 = pneg %p145
      $region30: #{conv_block.1} parent=11 // pred_check_branch
        %242 = sbr.rel (%p240) target = $region32
      $region31: #{conv_block.1} parent=11 // pred_region
        _
      $region32: #{conv_block.1} parent=11 // pred_fallthru
        _
      // Predicated region
      $region33: #{conv_block.1} parent=11 // pred_check
        %p243 = pneg %p166
      $region34: #{conv_block.1} parent=11 // pred_check_branch
        %245 = sbr.rel (%p243) target = $region36
      $region35: #{conv_block.1} parent=11 // pred_region
        _
      $region36: #{conv_block.1} parent=11 // pred_fallthru
        _
      // Predicated region
      $region37: #{conv_block.1} parent=11 // pred_check
        %p246 = pneg %p187
      $region38: #{conv_block.1} parent=11 // pred_check_branch
        %248 = sbr.rel (%p246) target = $region40
      $region39: #{conv_block.1} parent=11 // pred_region
        _
      $region40: #{conv_block.1} parent=11 // pred_fallthru
        _
    $region12: #{conv_block.1} parent=5 // pred_fallthru
      _
    %p249 = scmp.lt.s32.totalorder %s14, 2
    // Predicated region
    $region41: #{conv_block.1} parent=5 // pred_check
      %p250 = pneg %p249
    $region42: #{conv_block.1} parent=5 // pred_check_branch
      %252 = sbr.rel (%p250) target = $region44
    $region43: #{conv_block.1} parent=5 // pred_region
      // Predicated region
      $region45: #{conv_block.1} parent=43 // pred_check
        %p253 = pneg %p55
      $region46: #{conv_block.1} parent=43 // pred_check_branch
        %255 = sbr.rel (%p253) target = $region48
      $region47: #{conv_block.1} parent=43 // pred_region
        %s256 = smul.u32 42, %s14
        %p257 = scmp.lt.s32.totalorder %s256, 83
        %s258 = scalar_select %p257, %s256, 83
        %s259 = smul.addr %s258, 4
        %s260 = scalar_lea.vmem %s1, %s259
        %s261 = smul.u32 42, %s14
      $region48: #{conv_block.1} parent=43 // pred_fallthru
        _
    $region44: #{conv_block.1} parent=5 // pred_fallthru
      _
    %p262 = scmp.le.s32.totalorder 1, %s14
    %p263 = scmp.lt.s32.totalorder %s14, 3
    %p264 = pnand %p262, %p263
    %p265 = pneg %p264
    // Predicated region
    $region49: #{conv_block.1} parent=5 // pred_check
      _
    $region50: #{conv_block.1} parent=5 // pred_check_branch
      %267 = sbr.rel (%p264) target = $region52
    $region51: #{conv_block.1} parent=5 // pred_region
      %s268 = ssub.s32 %s14, 1
      %p269 = pneg %p35
      %p270 = pneg %p32
      %s271 = smul.u32 42, %s19
      %p272 = scmp.lt.s32.totalorder %s271, 83
      %s273 = scalar_select %p272, %s271, 83
      %s274 = smul.addr %s273, 4
      %s275 = scalar_lea.vmem %s1, %s274
      %p276 = pneg %p61
      %p277 = pneg %p58
      %p278 = pneg %p82
      %p279 = pneg %p79
      %p280 = pneg %p103
      %p281 = pneg %p100
      %p282 = pneg %p124
      %p283 = pneg %p121
      %p284 = pneg %p145
      %p285 = pneg %p142
      %p286 = pneg %p166
      %p287 = pneg %p163
      %p288 = pneg %p187
      %p289 = pneg %p184
      %p290 = pneg %p213
      %p291 = pneg %p210
      %s292 = smul.u32 36, %s19
      %p293 = scmp.lt.s32.totalorder %s292, 71
      %s294 = scalar_select %p293, %s292, 71
      %s295 = smul.addr %s294, 8
      %s296 = scalar_lea.vmem %s8, %s295
      %s297 = smul.u32 42, %s19
      %p298 = scmp.lt.s32.totalorder %s297, 83
      %s299 = scalar_select %p298, %s297, 83
      %s300 = smul.addr %s299, 4
      %s301 = scalar_lea.vmem %s1, %s300
      %s302 = smul.u32 42, %s19
      %s303 = smul.u32 36, %s19
      %p304 = scmp.lt.s32.totalorder %s303, 71
      %s305 = scalar_select %p304, %s303, 71
      %s306 = smul.addr %s305, 8
      %s307 = scalar_lea.vmem %s8, %s306
      %s308 = smul.u32 36, %s19
      %v310 = vld [vmem:[%s301] sm:$0xf]
      %v311 = vld [vmem:[%s301 + $0x4] sm:$0xf]
      %v312 = vld [vmem:[%s301 + $0x8] sm:$0xf]
      %v313 = vld [vmem:[%s301 + $0xc] sm:$0xf]
      %v314 = vld [vmem:[%s301 + $0x10] sm:$0xf]
      %v315 = vld [vmem:[%s301 + $0x14] sm:$0xf]
      %v316 = vld [vmem:[%s301 + $0x18] sm:$0xf]
      %v317 = vld [vmem:[%s301 + $0x1c] sm:$0xf]
      %v318 = vld [vmem:[%s301 + $0x20] sm:$0xf]
      %v319 = vld [vmem:[%s301 + $0x24] sm:$0xf]
      %v320 = vld [vmem:[%s301 + $0x28] sm:$0xf]
      %v321 = vld [vmem:[%s301 + $0x2c] sm:$0xf]
      %v322 = vld [vmem:[%s301 + $0x30] sm:$0xf]
      %v323 = vld [vmem:[%s301 + $0x34] sm:$0xf]
      %v324 = vld [vmem:[%s301 + $0x38] sm:$0xf]
      %v325 = vld [vmem:[%s301 + $0x3c] sm:$0xf]
      %v326 = vld [vmem:[%s301 + $0x40] sm:$0xf]
      %v327 = vld [vmem:[%s301 + $0x44] sm:$0xf]
      %v328 = vld [vmem:[%s301 + $0x48] sm:$0xf]
      %v329 = vld [vmem:[%s301 + $0x4c] sm:$0xf]
      %v330 = vld [vmem:[%s301 + $0x50] sm:$0xf]
      %v331 = vld [vmem:[%s301 + $0x54] sm:$0xf]
      %v332 = vld [vmem:[%s301 + $0x58] sm:$0xf]
      %v333 = vld [vmem:[%s301 + $0x5c] sm:$0xf]
      %v334 = vld [vmem:[%s301 + $0x60] sm:$0xf]
      %v335 = vld [vmem:[%s301 + $0x64] sm:$0xf]
      %v336 = vld [vmem:[%s301 + $0x68] sm:$0xf]
      %v337 = vld [vmem:[%s301 + $0x6c] sm:$0xf]
      %v338 = vld [vmem:[%s301 + $0x70] sm:$0xf]
      %v339 = vld [vmem:[%s301 + $0x74] sm:$0xf]
      %v340 = vld [vmem:[%s301 + $0x78] sm:$0xf]
      %v341 = vld [vmem:[%s301 + $0x7c] sm:$0xf]
      %v342 = vld [vmem:[%s301 + $0x80] sm:$0xf]
      %v343 = vld [vmem:[%s301 + $0x84] sm:$0xf]
      %v344 = vld [vmem:[%s301 + $0x88] sm:$0xf]
      %v345 = vld [vmem:[%s301 + $0x8c] sm:$0xf]
      %v382 = vunpack.c.l.b16 %v310
      %v383 = vunpack.c.l.b16 %v311
      %v384 = vunpack.c.l.b16 %v312
      %v385 = vunpack.c.l.b16 %v313
      %v386 = vunpack.c.l.b16 %v314
      %v387 = vunpack.c.l.b16 %v315
      %v388 = vunpack.c.l.b16 %v316
      %v389 = vunpack.c.l.b16 %v317
      %v390 = vunpack.c.l.b16 %v318
      %v391 = vunpack.c.l.b16 %v319
      %v392 = vunpack.c.l.b16 %v320
      %v393 = vunpack.c.l.b16 %v321
      %v394 = vunpack.c.l.b16 %v322
      %v395 = vunpack.c.l.b16 %v323
      %v396 = vunpack.c.l.b16 %v324
      %v397 = vunpack.c.l.b16 %v325
      %v398 = vunpack.c.l.b16 %v326
      %v399 = vunpack.c.l.b16 %v327
      %v400 = vunpack.c.l.b16 %v328
      %v401 = vunpack.c.l.b16 %v329
      %v402 = vunpack.c.l.b16 %v330
      %v403 = vunpack.c.l.b16 %v331
      %v404 = vunpack.c.l.b16 %v332
      %v405 = vunpack.c.l.b16 %v333
      %v406 = vunpack.c.l.b16 %v334
      %v407 = vunpack.c.l.b16 %v335
      %v408 = vunpack.c.l.b16 %v336
      %v409 = vunpack.c.l.b16 %v337
      %v410 = vunpack.c.l.b16 %v338
      %v411 = vunpack.c.l.b16 %v339
      %v412 = vunpack.c.l.b16 %v340
      %v413 = vunpack.c.l.b16 %v341
      %v414 = vunpack.c.l.b16 %v342
      %v415 = vunpack.c.l.b16 %v343
      %v416 = vunpack.c.l.b16 %v344
      %v417 = vunpack.c.l.b16 %v345
      %v418 = vpack.c.b16 %v383, %v382
      %v419 = vpack.c.b16 %v385, %v384
      %v420 = vpack.c.b16 %v387, %v386
      %v421 = vpack.c.b16 %v389, %v388
      %v422 = vpack.c.b16 %v391, %v390
      %v423 = vpack.c.b16 %v393, %v392
      %v424 = vpack.c.b16 %v395, %v394
      %v425 = vpack.c.b16 %v397, %v396
      %v426 = vpack.c.b16 %v399, %v398
      %v427 = vpack.c.b16 %v401, %v400
      %v428 = vpack.c.b16 %v403, %v402
      %v429 = vpack.c.b16 %v405, %v404
      %v430 = vpack.c.b16 %v407, %v406
      %v431 = vpack.c.b16 %v409, %v408
      %v432 = vpack.c.b16 %v411, %v410
      %v433 = vpack.c.b16 %v413, %v412
      %v434 = vpack.c.b16 %v415, %v414
      %v435 = vpack.c.b16 %v417, %v416
      %vm454 = vcmask 31744
      %455 = vst.msk [vmem:[#allocation2] sm:$0xff] %vm454, %v418
      %456 = vst.msk [vmem:[#allocation2 + $0x8] sm:$0xff] %vm454, %v419
      %457 = vst.msk [vmem:[#allocation2 + $0x10] sm:$0xff] %vm454, %v420
      %458 = vst.msk [vmem:[#allocation2 + $0x18] sm:$0xff] %vm454, %v421
      %459 = vst.msk [vmem:[#allocation2 + $0x20] sm:$0xff] %vm454, %v422
      %460 = vst.msk [vmem:[#allocation2 + $0x28] sm:$0xff] %vm454, %v423
      %461 = vst.msk [vmem:[#allocation2 + $0x30] sm:$0xff] %vm454, %v424
      %462 = vst.msk [vmem:[#allocation2 + $0x38] sm:$0xff] %vm454, %v425
      %463 = vst.msk [vmem:[#allocation2 + $0x40] sm:$0xff] %vm454, %v426
      %464 = vst.msk [vmem:[#allocation2 + $0x48] sm:$0xff] %vm454, %v427
      %465 = vst.msk [vmem:[#allocation2 + $0x50] sm:$0xff] %vm454, %v428
      %466 = vst.msk [vmem:[#allocation2 + $0x58] sm:$0xff] %vm454, %v429
      %467 = vst.msk [vmem:[#allocation2 + $0x60] sm:$0xff] %vm454, %v430
      %468 = vst.msk [vmem:[#allocation2 + $0x68] sm:$0xff] %vm454, %v431
      %469 = vst.msk [vmem:[#allocation2 + $0x70] sm:$0xff] %vm454, %v432
      %470 = vst.msk [vmem:[#allocation2 + $0x78] sm:$0xff] %vm454, %v433
      %471 = vst.msk [vmem:[#allocation2 + $0x80] sm:$0xff] %vm454, %v434
      %472 = vst.msk [vmem:[#allocation2 + $0x88] sm:$0xff] %vm454, %v435
      %v473 = vld [vmem:[%s301] sm:$0xf]
      %v474 = vld [vmem:[%s301 + $0x4] sm:$0xf]
      %v475 = vld [vmem:[%s301 + $0x8] sm:$0xf]
      %v476 = vld [vmem:[%s301 + $0xc] sm:$0xf]
      %v477 = vld [vmem:[%s301 + $0x10] sm:$0xf]
      %v478 = vld [vmem:[%s301 + $0x14] sm:$0xf]
      %v479 = vld [vmem:[%s301 + $0x18] sm:$0xf]
      %v480 = vld [vmem:[%s301 + $0x1c] sm:$0xf]
      %v481 = vld [vmem:[%s301 + $0x20] sm:$0xf]
      %v482 = vld [vmem:[%s301 + $0x24] sm:$0xf]
      %v483 = vld [vmem:[%s301 + $0x28] sm:$0xf]
      %v484 = vld [vmem:[%s301 + $0x2c] sm:$0xf]
      %v485 = vld [vmem:[%s301 + $0x30] sm:$0xf]
      %v486 = vld [vmem:[%s301 + $0x34] sm:$0xf]
      %v487 = vld [vmem:[%s301 + $0x38] sm:$0xf]
      %v488 = vld [vmem:[%s301 + $0x3c] sm:$0xf]
      %v489 = vld [vmem:[%s301 + $0x40] sm:$0xf]
      %v490 = vld [vmem:[%s301 + $0x44] sm:$0xf]
      %v491 = vld [vmem:[%s301 + $0x48] sm:$0xf]
      %v492 = vld [vmem:[%s301 + $0x4c] sm:$0xf]
      %v493 = vld [vmem:[%s301 + $0x50] sm:$0xf]
      %v494 = vld [vmem:[%s301 + $0x54] sm:$0xf]
      %v495 = vld [vmem:[%s301 + $0x58] sm:$0xf]
      %v496 = vld [vmem:[%s301 + $0x5c] sm:$0xf]
      %v497 = vld [vmem:[%s301 + $0x60] sm:$0xf]
      %v498 = vld [vmem:[%s301 + $0x64] sm:$0xf]
      %v499 = vld [vmem:[%s301 + $0x68] sm:$0xf]
      %v500 = vld [vmem:[%s301 + $0x6c] sm:$0xf]
      %v501 = vld [vmem:[%s301 + $0x70] sm:$0xf]
      %v502 = vld [vmem:[%s301 + $0x74] sm:$0xf]
      %v503 = vld [vmem:[%s301 + $0x78] sm:$0xf]
      %v504 = vld [vmem:[%s301 + $0x7c] sm:$0xf]
      %v505 = vld [vmem:[%s301 + $0x80] sm:$0xf]
      %v506 = vld [vmem:[%s301 + $0x84] sm:$0xf]
      %v507 = vld [vmem:[%s301 + $0x88] sm:$0xf]
      %v508 = vld [vmem:[%s301 + $0x8c] sm:$0xf]
      %v509 = vld [vmem:[%s301 + $0x90] sm:$0x1]
      %v547 = vunpack.c.l.b16 %v473
      %v548 = vunpack.c.l.b16 %v474
      %v549 = vunpack.c.l.b16 %v475
      %v550 = vunpack.c.l.b16 %v476
      %v551 = vunpack.c.l.b16 %v477
      %v552 = vunpack.c.l.b16 %v478
      %v553 = vunpack.c.l.b16 %v479
      %v554 = vunpack.c.l.b16 %v480
      %v555 = vunpack.c.l.b16 %v481
      %v556 = vunpack.c.l.b16 %v482
      %v557 = vunpack.c.l.b16 %v483
      %v558 = vunpack.c.l.b16 %v484
      %v559 = vunpack.c.l.b16 %v485
      %v560 = vunpack.c.l.b16 %v486
      %v561 = vunpack.c.l.b16 %v487
      %v562 = vunpack.c.l.b16 %v488
      %v563 = vunpack.c.l.b16 %v489
      %v564 = vunpack.c.l.b16 %v490
      %v565 = vunpack.c.l.b16 %v491
      %v566 = vunpack.c.l.b16 %v492
      %v567 = vunpack.c.l.b16 %v493
      %v568 = vunpack.c.l.b16 %v494
      %v569 = vunpack.c.l.b16 %v495
      %v570 = vunpack.c.l.b16 %v496
      %v571 = vunpack.c.l.b16 %v497
      %v572 = vunpack.c.l.b16 %v498
      %v573 = vunpack.c.l.b16 %v499
      %v574 = vunpack.c.l.b16 %v500
      %v575 = vunpack.c.l.b16 %v501
      %v576 = vunpack.c.l.b16 %v502
      %v577 = vunpack.c.l.b16 %v503
      %v578 = vunpack.c.l.b16 %v504
      %v579 = vunpack.c.l.b16 %v505
      %v580 = vunpack.c.l.b16 %v506
      %v581 = vunpack.c.l.b16 %v507
      %v582 = vunpack.c.l.b16 %v508
      %v583 = vunpack.c.l.b16 %v509
      %v584 = vpack.c.b16 %v548, %v547
      %v585 = vpack.c.b16 %v550, %v549
      %v586 = vpack.c.b16 %v552, %v551
      %v587 = vpack.c.b16 %v554, %v553
      %v588 = vpack.c.b16 %v556, %v555
      %v589 = vpack.c.b16 %v558, %v557
      %v590 = vpack.c.b16 %v560, %v559
      %v591 = vpack.c.b16 %v562, %v561
      %v592 = vpack.c.b16 %v564, %v563
      %v593 = vpack.c.b16 %v566, %v565
      %v594 = vpack.c.b16 %v568, %v567
      %v595 = vpack.c.b16 %v570, %v569
      %v596 = vpack.c.b16 %v572, %v571
      %v597 = vpack.c.b16 %v574, %v573
      %v598 = vpack.c.b16 %v576, %v575
      %v599 = vpack.c.b16 %v578, %v577
      %v600 = vpack.c.b16 %v580, %v579
      %v601 = vpack.c.b16 %v582, %v581
      %v602 = vpack.c.b16 %v583, %v583
      %vm603 = vsmask.f32 7424
      %v605 = vshrl.u32 %v584, 16
      %v607 = vshll.u32 %v584, 16
      %v609 = vrot.slane %v607, 1
      %v610 = vor.u32 %v605, %v609
      %v612 = vshll.u32 %v585, 16
      %v614 = vrot.slane %v612, 1
      %v615 = vsel %vm603, %v610, %v614
      %v616 = vshrl.u32 %v585, 16
      %v618 = vor.u32 %v616, %v614
      %v620 = vshll.u32 %v586, 16
      %v622 = vrot.slane %v620, 1
      %v623 = vsel %vm603, %v618, %v622
      %v624 = vshrl.u32 %v586, 16
      %v626 = vor.u32 %v624, %v622
      %v628 = vshll.u32 %v587, 16
      %v630 = vrot.slane %v628, 1
      %v631 = vsel %vm603, %v626, %v630
      %v632 = vshrl.u32 %v587, 16
      %v634 = vor.u32 %v632, %v630
      %v636 = vshll.u32 %v588, 16
      %v638 = vrot.slane %v636, 1
      %v639 = vsel %vm603, %v634, %v638
      %v640 = vshrl.u32 %v588, 16
      %v642 = vor.u32 %v640, %v638
      %v644 = vshll.u32 %v589, 16
      %v646 = vrot.slane %v644, 1
      %v647 = vsel %vm603, %v642, %v646
      %v648 = vshrl.u32 %v589, 16
      %v650 = vor.u32 %v648, %v646
      %v652 = vshll.u32 %v590, 16
      %v654 = vrot.slane %v652, 1
      %v655 = vsel %vm603, %v650, %v654
      %v656 = vshrl.u32 %v590, 16
      %v658 = vor.u32 %v656, %v654
      %v660 = vshll.u32 %v591, 16
      %v662 = vrot.slane %v660, 1
      %v663 = vsel %vm603, %v658, %v662
      %v664 = vshrl.u32 %v591, 16
      %v666 = vor.u32 %v664, %v662
      %v668 = vshll.u32 %v592, 16
      %v670 = vrot.slane %v668, 1
      %v671 = vsel %vm603, %v666, %v670
      %v672 = vshrl.u32 %v592, 16
      %v674 = vor.u32 %v672, %v670
      %v676 = vshll.u32 %v593, 16
      %v678 = vrot.slane %v676, 1
      %v679 = vsel %vm603, %v674, %v678
      %v680 = vshrl.u32 %v593, 16
      %v682 = vor.u32 %v680, %v678
      %v684 = vshll.u32 %v594, 16
      %v686 = vrot.slane %v684, 1
      %v687 = vsel %vm603, %v682, %v686
      %v688 = vshrl.u32 %v594, 16
      %v690 = vor.u32 %v688, %v686
      %v692 = vshll.u32 %v595, 16
      %v694 = vrot.slane %v692, 1
      %v695 = vsel %vm603, %v690, %v694
      %v696 = vshrl.u32 %v595, 16
      %v698 = vor.u32 %v696, %v694
      %v700 = vshll.u32 %v596, 16
      %v702 = vrot.slane %v700, 1
      %v703 = vsel %vm603, %v698, %v702
      %v704 = vshrl.u32 %v596, 16
      %v706 = vor.u32 %v704, %v702
      %v708 = vshll.u32 %v597, 16
      %v710 = vrot.slane %v708, 1
      %v711 = vsel %vm603, %v706, %v710
      %v712 = vshrl.u32 %v597, 16
      %v714 = vor.u32 %v712, %v710
      %v716 = vshll.u32 %v598, 16
      %v718 = vrot.slane %v716, 1
      %v719 = vsel %vm603, %v714, %v718
      %v720 = vshrl.u32 %v598, 16
      %v722 = vor.u32 %v720, %v718
      %v724 = vshll.u32 %v599, 16
      %v726 = vrot.slane %v724, 1
      %v727 = vsel %vm603, %v722, %v726
      %v728 = vshrl.u32 %v599, 16
      %v730 = vor.u32 %v728, %v726
      %v732 = vshll.u32 %v600, 16
      %v734 = vrot.slane %v732, 1
      %v735 = vsel %vm603, %v730, %v734
      %v736 = vshrl.u32 %v600, 16
      %v738 = vor.u32 %v736, %v734
      %v740 = vshll.u32 %v601, 16
      %v742 = vrot.slane %v740, 1
      %v743 = vsel %vm603, %v738, %v742
      %v744 = vshrl.u32 %v601, 16
      %v746 = vor.u32 %v744, %v742
      %v748 = vshll.u32 %v602, 16
      %v750 = vrot.slane %v748, 1
      %v751 = vsel %vm603, %v746, %v750
      %752 = vrot.lane.b32.xlu0 %v615, 4
      %v753 = vpop.permute.xlu0 %752
      %754 = vrot.lane.b32.xlu0 %v623, 4
      %v755 = vpop.permute.xlu0 %754
      %756 = vrot.lane.b32.xlu0 %v631, 4
      %v757 = vpop.permute.xlu0 %756
      %758 = vrot.lane.b32.xlu0 %v639, 4
      %v759 = vpop.permute.xlu0 %758
      %760 = vrot.lane.b32.xlu0 %v647, 4
      %v761 = vpop.permute.xlu0 %760
      %762 = vrot.lane.b32.xlu0 %v655, 4
      %v763 = vpop.permute.xlu0 %762
      %764 = vrot.lane.b32.xlu0 %v663, 4
      %v765 = vpop.permute.xlu0 %764
      %766 = vrot.lane.b32.xlu0 %v671, 4
      %v767 = vpop.permute.xlu0 %766
      %768 = vrot.lane.b32.xlu0 %v679, 4
      %v769 = vpop.permute.xlu0 %768
      %770 = vrot.lane.b32.xlu0 %v687, 4
      %v771 = vpop.permute.xlu0 %770
      %772 = vrot.lane.b32.xlu0 %v695, 4
      %v773 = vpop.permute.xlu0 %772
      %774 = vrot.lane.b32.xlu0 %v703, 4
      %v775 = vpop.permute.xlu0 %774
      %776 = vrot.lane.b32.xlu0 %v711, 4
      %v777 = vpop.permute.xlu0 %776
      %778 = vrot.lane.b32.xlu0 %v719, 4
      %v779 = vpop.permute.xlu0 %778
      %780 = vrot.lane.b32.xlu0 %v727, 4
      %v781 = vpop.permute.xlu0 %780
      %782 = vrot.lane.b32.xlu0 %v735, 4
      %v783 = vpop.permute.xlu0 %782
      %784 = vrot.lane.b32.xlu0 %v743, 4
      %v785 = vpop.permute.xlu0 %784
      %786 = vrot.lane.b32.xlu0 %v751, 4
      %v787 = vpop.permute.xlu0 %786
      %vm806 = vcmask 64544
      %807 = vst.msk [vmem:[#allocation2] sm:$0xff] %vm806, %v753
      %808 = vst.msk [vmem:[#allocation2 + $0x8] sm:$0xff] %vm806, %v755
      %809 = vst.msk [vmem:[#allocation2 + $0x10] sm:$0xff] %vm806, %v757
      %810 = vst.msk [vmem:[#allocation2 + $0x18] sm:$0xff] %vm806, %v759
      %811 = vst.msk [vmem:[#allocation2 + $0x20] sm:$0xff] %vm806, %v761
      %812 = vst.msk [vmem:[#allocation2 + $0x28] sm:$0xff] %vm806, %v763
      %813 = vst.msk [vmem:[#allocation2 + $0x30] sm:$0xff] %vm806, %v765
      %814 = vst.msk [vmem:[#allocation2 + $0x38] sm:$0xff] %vm806, %v767
      %815 = vst.msk [vmem:[#allocation2 + $0x40] sm:$0xff] %vm806, %v769
      %816 = vst.msk [vmem:[#allocation2 + $0x48] sm:$0xff] %vm806, %v771
      %817 = vst.msk [vmem:[#allocation2 + $0x50] sm:$0xff] %vm806, %v773
      %818 = vst.msk [vmem:[#allocation2 + $0x58] sm:$0xff] %vm806, %v775
      %819 = vst.msk [vmem:[#allocation2 + $0x60] sm:$0xff] %vm806, %v777
      %820 = vst.msk [vmem:[#allocation2 + $0x68] sm:$0xff] %vm806, %v779
      %821 = vst.msk [vmem:[#allocation2 + $0x70] sm:$0xff] %vm806, %v781
      %822 = vst.msk [vmem:[#allocation2 + $0x78] sm:$0xff] %vm806, %v783
      %823 = vst.msk [vmem:[#allocation2 + $0x80] sm:$0xff] %vm806, %v785
      %824 = vst.msk [vmem:[#allocation2 + $0x88] sm:$0xff] %vm806, %v787
      %v825 = vld [vmem:[%s301] sm:$0xe]
      %v826 = vld [vmem:[%s301 + $0x4] sm:$0xf]
      %v827 = vld [vmem:[%s301 + $0x8] sm:$0xf]
      %v828 = vld [vmem:[%s301 + $0xc] sm:$0xf]
      %v829 = vld [vmem:[%s301 + $0x10] sm:$0xf]
      %v830 = vld [vmem:[%s301 + $0x14] sm:$0xf]
      %v831 = vld [vmem:[%s301 + $0x18] sm:$0xf]
      %v832 = vld [vmem:[%s301 + $0x1c] sm:$0xf]
      %v833 = vld [vmem:[%s301 + $0x20] sm:$0xf]
      %v834 = vld [vmem:[%s301 + $0x24] sm:$0xf]
      %v835 = vld [vmem:[%s301 + $0x28] sm:$0xf]
      %v836 = vld [vmem:[%s301 + $0x2c] sm:$0xf]
      %v837 = vld [vmem:[%s301 + $0x30] sm:$0xf]
      %v838 = vld [vmem:[%s301 + $0x34] sm:$0xf]
      %v839 = vld [vmem:[%s301 + $0x38] sm:$0xf]
      %v840 = vld [vmem:[%s301 + $0x3c] sm:$0xf]
      %v841 = vld [vmem:[%s301 + $0x40] sm:$0xf]
      %v842 = vld [vmem:[%s301 + $0x44] sm:$0xf]
      %v843 = vld [vmem:[%s301 + $0x48] sm:$0xf]
      %v844 = vld [vmem:[%s301 + $0x4c] sm:$0xf]
      %v845 = vld [vmem:[%s301 + $0x50] sm:$0xf]
      %v846 = vld [vmem:[%s301 + $0x54] sm:$0xf]
      %v847 = vld [vmem:[%s301 + $0x58] sm:$0xf]
      %v848 = vld [vmem:[%s301 + $0x5c] sm:$0xf]
      %v849 = vld [vmem:[%s301 + $0x60] sm:$0xf]
      %v850 = vld [vmem:[%s301 + $0x64] sm:$0xf]
      %v851 = vld [vmem:[%s301 + $0x68] sm:$0xf]
      %v852 = vld [vmem:[%s301 + $0x6c] sm:$0xf]
      %v853 = vld [vmem:[%s301 + $0x70] sm:$0xf]
      %v854 = vld [vmem:[%s301 + $0x74] sm:$0xf]
      %v855 = vld [vmem:[%s301 + $0x78] sm:$0xf]
      %v856 = vld [vmem:[%s301 + $0x7c] sm:$0xf]
      %v857 = vld [vmem:[%s301 + $0x80] sm:$0xf]
      %v858 = vld [vmem:[%s301 + $0x84] sm:$0xf]
      %v859 = vld [vmem:[%s301 + $0x88] sm:$0xf]
      %v860 = vld [vmem:[%s301 + $0x8c] sm:$0xf]
      %v861 = vld [vmem:[%s301 + $0x90] sm:$0x1]
      %v899 = vunpack.c.l.b16 %v825
      %v900 = vunpack.c.l.b16 %v826
      %v901 = vunpack.c.l.b16 %v827
      %v902 = vunpack.c.l.b16 %v828
      %v903 = vunpack.c.l.b16 %v829
      %v904 = vunpack.c.l.b16 %v830
      %v905 = vunpack.c.l.b16 %v831
      %v906 = vunpack.c.l.b16 %v832
      %v907 = vunpack.c.l.b16 %v833
      %v908 = vunpack.c.l.b16 %v834
      %v909 = vunpack.c.l.b16 %v835
      %v910 = vunpack.c.l.b16 %v836
      %v911 = vunpack.c.l.b16 %v837
      %v912 = vunpack.c.l.b16 %v838
      %v913 = vunpack.c.l.b16 %v839
      %v914 = vunpack.c.l.b16 %v840
      %v915 = vunpack.c.l.b16 %v841
      %v916 = vunpack.c.l.b16 %v842
      %v917 = vunpack.c.l.b16 %v843
      %v918 = vunpack.c.l.b16 %v844
      %v919 = vunpack.c.l.b16 %v845
      %v920 = vunpack.c.l.b16 %v846
      %v921 = vunpack.c.l.b16 %v847
      %v922 = vunpack.c.l.b16 %v848
      %v923 = vunpack.c.l.b16 %v849
      %v924 = vunpack.c.l.b16 %v850
      %v925 = vunpack.c.l.b16 %v851
      %v926 = vunpack.c.l.b16 %v852
      %v927 = vunpack.c.l.b16 %v853
      %v928 = vunpack.c.l.b16 %v854
      %v929 = vunpack.c.l.b16 %v855
      %v930 = vunpack.c.l.b16 %v856
      %v931 = vunpack.c.l.b16 %v857
      %v932 = vunpack.c.l.b16 %v858
      %v933 = vunpack.c.l.b16 %v859
      %v934 = vunpack.c.l.b16 %v860
      %v935 = vunpack.c.l.b16 %v861
      %v936 = vpack.c.b16 %v900, %v899
      %v937 = vpack.c.b16 %v902, %v901
      %v938 = vpack.c.b16 %v904, %v903
      %v939 = vpack.c.b16 %v906, %v905
      %v940 = vpack.c.b16 %v908, %v907
      %v941 = vpack.c.b16 %v910, %v909
      %v942 = vpack.c.b16 %v912, %v911
      %v943 = vpack.c.b16 %v914, %v913
      %v944 = vpack.c.b16 %v916, %v915
      %v945 = vpack.c.b16 %v918, %v917
      %v946 = vpack.c.b16 %v920, %v919
      %v947 = vpack.c.b16 %v922, %v921
      %v948 = vpack.c.b16 %v924, %v923
      %v949 = vpack.c.b16 %v926, %v925
      %v950 = vpack.c.b16 %v928, %v927
      %v951 = vpack.c.b16 %v930, %v929
      %v952 = vpack.c.b16 %v932, %v931
      %v953 = vpack.c.b16 %v934, %v933
      %v954 = vpack.c.b16 %v935, %v935
      %vm955 = vcmask 1046528
      %v956 = vrot.slane %v936, 1
      %v957 = vrot.slane %v937, 1
      %v958 = vsel %vm955, %v956, %v957
      %v959 = vrot.slane %v938, 1
      %v960 = vsel %vm955, %v957, %v959
      %v961 = vrot.slane %v939, 1
      %v962 = vsel %vm955, %v959, %v961
      %v963 = vrot.slane %v940, 1
      %v964 = vsel %vm955, %v961, %v963
      %v965 = vrot.slane %v941, 1
      %v966 = vsel %vm955, %v963, %v965
      %v967 = vrot.slane %v942, 1
      %v968 = vsel %vm955, %v965, %v967
      %v969 = vrot.slane %v943, 1
      %v970 = vsel %vm955, %v967, %v969
      %v971 = vrot.slane %v944, 1
      %v972 = vsel %vm955, %v969, %v971
      %v973 = vrot.slane %v945, 1
      %v974 = vsel %vm955, %v971, %v973
      %v975 = vrot.slane %v946, 1
      %v976 = vsel %vm955, %v973, %v975
      %v977 = vrot.slane %v947, 1
      %v978 = vsel %vm955, %v975, %v977
      %v979 = vrot.slane %v948, 1
      %v980 = vsel %vm955, %v977, %v979
      %v981 = vrot.slane %v949, 1
      %v982 = vsel %vm955, %v979, %v981
      %v983 = vrot.slane %v950, 1
      %v984 = vsel %vm955, %v981, %v983
      %v985 = vrot.slane %v951, 1
      %v986 = vsel %vm955, %v983, %v985
      %v987 = vrot.slane %v952, 1
      %v988 = vsel %vm955, %v985, %v987
      %v989 = vrot.slane %v953, 1
      %v990 = vsel %vm955, %v987, %v989
      %v991 = vrot.slane %v954, 1
      %v992 = vsel %vm955, %v989, %v991
      %993 = vrot.lane.b32.xlu0 %v958, 8
      %v994 = vpop.permute.xlu0 %993
      %995 = vrot.lane.b32.xlu0 %v960, 8
      %v996 = vpop.permute.xlu0 %995
      %997 = vrot.lane.b32.xlu0 %v962, 8
      %v998 = vpop.permute.xlu0 %997
      %999 = vrot.lane.b32.xlu0 %v964, 8
      %v1000 = vpop.permute.xlu0 %999
      %1001 = vrot.lane.b32.xlu0 %v966, 8
      %v1002 = vpop.permute.xlu0 %1001
      %1003 = vrot.lane.b32.xlu0 %v968, 8
      %v1004 = vpop.permute.xlu0 %1003
      %1005 = vrot.lane.b32.xlu0 %v970, 8
      %v1006 = vpop.permute.xlu0 %1005
      %1007 = vrot.lane.b32.xlu0 %v972, 8
      %v1008 = vpop.permute.xlu0 %1007
      %1009 = vrot.lane.b32.xlu0 %v974, 8
      %v1010 = vpop.permute.xlu0 %1009
      %1011 = vrot.lane.b32.xlu0 %v976, 8
      %v1012 = vpop.permute.xlu0 %1011
      %1013 = vrot.lane.b32.xlu0 %v978, 8
      %v1014 = vpop.permute.xlu0 %1013
      %1015 = vrot.lane.b32.xlu0 %v980, 8
      %v1016 = vpop.permute.xlu0 %1015
      %1017 = vrot.lane.b32.xlu0 %v982, 8
      %v1018 = vpop.permute.xlu0 %1017
      %1019 = vrot.lane.b32.xlu0 %v984, 8
      %v1020 = vpop.permute.xlu0 %1019
      %1021 = vrot.lane.b32.xlu0 %v986, 8
      %v1022 = vpop.permute.xlu0 %1021
      %1023 = vrot.lane.b32.xlu0 %v988, 8
      %v1024 = vpop.permute.xlu0 %1023
      %1025 = vrot.lane.b32.xlu0 %v990, 8
      %v1026 = vpop.permute.xlu0 %1025
      %1027 = vrot.lane.b32.xlu0 %v992, 8
      %v1028 = vpop.permute.xlu0 %1027
      %vm1047 = vcmask 97344
      %1048 = vst.msk [vmem:[#allocation2] sm:$0xff] %vm1047, %v994
      %1049 = vst.msk [vmem:[#allocation2 + $0x8] sm:$0xff] %vm1047, %v996
      %1050 = vst.msk [vmem:[#allocation2 + $0x10] sm:$0xff] %vm1047, %v998
      %1051 = vst.msk [vmem:[#allocation2 + $0x18] sm:$0xff] %vm1047, %v1000
      %1052 = vst.msk [vmem:[#allocation2 + $0x20] sm:$0xff] %vm1047, %v1002
      %1053 = vst.msk [vmem:[#allocation2 + $0x28] sm:$0xff] %vm1047, %v1004
      %1054 = vst.msk [vmem:[#allocation2 + $0x30] sm:$0xff] %vm1047, %v1006
      %1055 = vst.msk [vmem:[#allocation2 + $0x38] sm:$0xff] %vm1047, %v1008
      %1056 = vst.msk [vmem:[#allocation2 + $0x40] sm:$0xff] %vm1047, %v1010
      %1057 = vst.msk [vmem:[#allocation2 + $0x48] sm:$0xff] %vm1047, %v1012
      %1058 = vst.msk [vmem:[#allocation2 + $0x50] sm:$0xff] %vm1047, %v1014
      %1059 = vst.msk [vmem:[#allocation2 + $0x58] sm:$0xff] %vm1047, %v1016
      %1060 = vst.msk [vmem:[#allocation2 + $0x60] sm:$0xff] %vm1047, %v1018
      %1061 = vst.msk [vmem:[#allocation2 + $0x68] sm:$0xff] %vm1047, %v1020
      %1062 = vst.msk [vmem:[#allocation2 + $0x70] sm:$0xff] %vm1047, %v1022
      %1063 = vst.msk [vmem:[#allocation2 + $0x78] sm:$0xff] %vm1047, %v1024
      %1064 = vst.msk [vmem:[#allocation2 + $0x80] sm:$0xff] %vm1047, %v1026
      %1065 = vst.msk [vmem:[#allocation2 + $0x88] sm:$0xff] %vm1047, %v1028
      %v1066 = vld [vmem:[%s301 + $0x8] sm:$0xe]
      %v1067 = vld [vmem:[%s301 + $0xc] sm:$0xf]
      %v1068 = vld [vmem:[%s301 + $0x10] sm:$0xf]
      %v1069 = vld [vmem:[%s301 + $0x14] sm:$0xf]
      %v1070 = vld [vmem:[%s301 + $0x18] sm:$0xf]
      %v1071 = vld [vmem:[%s301 + $0x1c] sm:$0xf]
      %v1072 = vld [vmem:[%s301 + $0x20] sm:$0xf]
      %v1073 = vld [vmem:[%s301 + $0x24] sm:$0xf]
      %v1074 = vld [vmem:[%s301 + $0x28] sm:$0xf]
      %v1075 = vld [vmem:[%s301 + $0x2c] sm:$0xf]
      %v1076 = vld [vmem:[%s301 + $0x30] sm:$0xf]
      %v1077 = vld [vmem:[%s301 + $0x34] sm:$0xf]
      %v1078 = vld [vmem:[%s301 + $0x38] sm:$0xf]
      %v1079 = vld [vmem:[%s301 + $0x3c] sm:$0xf]
      %v1080 = vld [vmem:[%s301 + $0x40] sm:$0xf]
      %v1081 = vld [vmem:[%s301 + $0x44] sm:$0xf]
      %v1082 = vld [vmem:[%s301 + $0x48] sm:$0xf]
      %v1083 = vld [vmem:[%s301 + $0x4c] sm:$0xf]
      %v1084 = vld [vmem:[%s301 + $0x50] sm:$0xf]
      %v1085 = vld [vmem:[%s301 + $0x54] sm:$0xf]
      %v1086 = vld [vmem:[%s301 + $0x58] sm:$0xf]
      %v1087 = vld [vmem:[%s301 + $0x5c] sm:$0xf]
      %v1088 = vld [vmem:[%s301 + $0x60] sm:$0xf]
      %v1089 = vld [vmem:[%s301 + $0x64] sm:$0xf]
      %v1090 = vld [vmem:[%s301 + $0x68] sm:$0xf]
      %v1091 = vld [vmem:[%s301 + $0x6c] sm:$0xf]
      %v1092 = vld [vmem:[%s301 + $0x70] sm:$0xf]
      %v1093 = vld [vmem:[%s301 + $0x74] sm:$0xf]
      %v1094 = vld [vmem:[%s301 + $0x78] sm:$0xf]
      %v1095 = vld [vmem:[%s301 + $0x7c] sm:$0xf]
      %v1096 = vld [vmem:[%s301 + $0x80] sm:$0xf]
      %v1097 = vld [vmem:[%s301 + $0x84] sm:$0xf]
      %v1098 = vld [vmem:[%s301 + $0x88] sm:$0xf]
      %v1099 = vld [vmem:[%s301 + $0x8c] sm:$0xf]
      %v1100 = vld [vmem:[%s301 + $0x90] sm:$0xf]
      %v1101 = vld [vmem:[%s301 + $0x94] sm:$0xf]
      %v1102 = vld [vmem:[%s301 + $0x98] sm:$0x1]
      %v1140 = vunpack.c.l.b16 %v1066
      %v1141 = vunpack.c.l.b16 %v1067
      %v1142 = vunpack.c.l.b16 %v1068
      %v1143 = vunpack.c.l.b16 %v1069
      %v1144 = vunpack.c.l.b16 %v1070
      %v1145 = vunpack.c.l.b16 %v1071
      %v1146 = vunpack.c.l.b16 %v1072
      %v1147 = vunpack.c.l.b16 %v1073
      %v1148 = vunpack.c.l.b16 %v1074
      %v1149 = vunpack.c.l.b16 %v1075
      %v1150 = vunpack.c.l.b16 %v1076
      %v1151 = vunpack.c.l.b16 %v1077
      %v1152 = vunpack.c.l.b16 %v1078
      %v1153 = vunpack.c.l.b16 %v1079
      %v1154 = vunpack.c.l.b16 %v1080
      %v1155 = vunpack.c.l.b16 %v1081
      %v1156 = vunpack.c.l.b16 %v1082
      %v1157 = vunpack.c.l.b16 %v1083
      %v1158 = vunpack.c.l.b16 %v1084
      %v1159 = vunpack.c.l.b16 %v1085
      %v1160 = vunpack.c.l.b16 %v1086
      %v1161 = vunpack.c.l.b16 %v1087
      %v1162 = vunpack.c.l.b16 %v1088
      %v1163 = vunpack.c.l.b16 %v1089
      %v1164 = vunpack.c.l.b16 %v1090
      %v1165 = vunpack.c.l.b16 %v1091
      %v1166 = vunpack.c.l.b16 %v1092
      %v1167 = vunpack.c.l.b16 %v1093
      %v1168 = vunpack.c.l.b16 %v1094
      %v1169 = vunpack.c.l.b16 %v1095
      %v1170 = vunpack.c.l.b16 %v1096
      %v1171 = vunpack.c.l.b16 %v1097
      %v1172 = vunpack.c.l.b16 %v1098
      %v1173 = vunpack.c.l.b16 %v1099
      %v1174 = vunpack.c.l.b16 %v1100
      %v1175 = vunpack.c.l.b16 %v1101
      %v1176 = vunpack.c.l.b16 %v1102
      %v1177 = vpack.c.b16 %v1141, %v1140
      %v1178 = vpack.c.b16 %v1143, %v1142
      %v1179 = vpack.c.b16 %v1145, %v1144
      %v1180 = vpack.c.b16 %v1147, %v1146
      %v1181 = vpack.c.b16 %v1149, %v1148
      %v1182 = vpack.c.b16 %v1151, %v1150
      %v1183 = vpack.c.b16 %v1153, %v1152
      %v1184 = vpack.c.b16 %v1155, %v1154
      %v1185 = vpack.c.b16 %v1157, %v1156
      %v1186 = vpack.c.b16 %v1159, %v1158
      %v1187 = vpack.c.b16 %v1161, %v1160
      %v1188 = vpack.c.b16 %v1163, %v1162
      %v1189 = vpack.c.b16 %v1165, %v1164
      %v1190 = vpack.c.b16 %v1167, %v1166
      %v1191 = vpack.c.b16 %v1169, %v1168
      %v1192 = vpack.c.b16 %v1171, %v1170
      %v1193 = vpack.c.b16 %v1173, %v1172
      %v1194 = vpack.c.b16 %v1175, %v1174
      %v1195 = vpack.c.b16 %v1176, %v1176
      %v1196 = vrot.slane %v1177, 1
      %v1197 = vrot.slane %v1178, 1
      %v1198 = vsel %vm955, %v1196, %v1197
      %v1199 = vrot.slane %v1179, 1
      %v1200 = vsel %vm955, %v1197, %v1199
      %v1201 = vrot.slane %v1180, 1
      %v1202 = vsel %vm955, %v1199, %v1201
      %v1203 = vrot.slane %v1181, 1
      %v1204 = vsel %vm955, %v1201, %v1203
      %v1205 = vrot.slane %v1182, 1
      %v1206 = vsel %vm955, %v1203, %v1205
      %v1207 = vrot.slane %v1183, 1
      %v1208 = vsel %vm955, %v1205, %v1207
      %v1209 = vrot.slane %v1184, 1
      %v1210 = vsel %vm955, %v1207, %v1209
      %v1211 = vrot.slane %v1185, 1
      %v1212 = vsel %vm955, %v1209, %v1211
      %v1213 = vrot.slane %v1186, 1
      %v1214 = vsel %vm955, %v1211, %v1213
      %v1215 = vrot.slane %v1187, 1
      %v1216 = vsel %vm955, %v1213, %v1215
      %v1217 = vrot.slane %v1188, 1
      %v1218 = vsel %vm955, %v1215, %v1217
      %v1219 = vrot.slane %v1189, 1
      %v1220 = vsel %vm955, %v1217, %v1219
      %v1221 = vrot.slane %v1190, 1
      %v1222 = vsel %vm955, %v1219, %v1221
      %v1223 = vrot.slane %v1191, 1
      %v1224 = vsel %vm955, %v1221, %v1223
      %v1225 = vrot.slane %v1192, 1
      %v1226 = vsel %vm955, %v1223, %v1225
      %v1227 = vrot.slane %v1193, 1
      %v1228 = vsel %vm955, %v1225, %v1227
      %v1229 = vrot.slane %v1194, 1
      %v1230 = vsel %vm955, %v1227, %v1229
      %v1231 = vrot.slane %v1195, 1
      %v1232 = vsel %vm955, %v1229, %v1231
      %1233 = vrot.lane.b32.xlu0 %v1198, 12
      %v1234 = vpop.permute.xlu0 %1233
      %1235 = vrot.lane.b32.xlu0 %v1200, 12
      %v1236 = vpop.permute.xlu0 %1235
      %1237 = vrot.lane.b32.xlu0 %v1202, 12
      %v1238 = vpop.permute.xlu0 %1237
      %1239 = vrot.lane.b32.xlu0 %v1204, 12
      %v1240 = vpop.permute.xlu0 %1239
      %1241 = vrot.lane.b32.xlu0 %v1206, 12
      %v1242 = vpop.permute.xlu0 %1241
      %1243 = vrot.lane.b32.xlu0 %v1208, 12
      %v1244 = vpop.permute.xlu0 %1243
      %1245 = vrot.lane.b32.xlu0 %v1210, 12
      %v1246 = vpop.permute.xlu0 %1245
      %1247 = vrot.lane.b32.xlu0 %v1212, 12
      %v1248 = vpop.permute.xlu0 %1247
      %1249 = vrot.lane.b32.xlu0 %v1214, 12
      %v1250 = vpop.permute.xlu0 %1249
      %1251 = vrot.lane.b32.xlu0 %v1216, 12
      %v1252 = vpop.permute.xlu0 %1251
      %1253 = vrot.lane.b32.xlu0 %v1218, 12
      %v1254 = vpop.permute.xlu0 %1253
      %1255 = vrot.lane.b32.xlu0 %v1220, 12
      %v1256 = vpop.permute.xlu0 %1255
      %1257 = vrot.lane.b32.xlu0 %v1222, 12
      %v1258 = vpop.permute.xlu0 %1257
      %1259 = vrot.lane.b32.xlu0 %v1224, 12
      %v1260 = vpop.permute.xlu0 %1259
      %1261 = vrot.lane.b32.xlu0 %v1226, 12
      %v1262 = vpop.permute.xlu0 %1261
      %1263 = vrot.lane.b32.xlu0 %v1228, 12
      %v1264 = vpop.permute.xlu0 %1263
      %1265 = vrot.lane.b32.xlu0 %v1230, 12
      %v1266 = vpop.permute.xlu0 %1265
      %1267 = vrot.lane.b32.xlu0 %v1232, 12
      %v1268 = vpop.permute.xlu0 %1267
      %vm1287 = vcmask 130144
      %1288 = vst.msk [vmem:[#allocation2] sm:$0xff] %vm1287, %v1234
      %1289 = vst.msk [vmem:[#allocation2 + $0x8] sm:$0xff] %vm1287, %v1236
      %1290 = vst.msk [vmem:[#allocation2 + $0x10] sm:$0xff] %vm1287, %v1238
      %1291 = vst.msk [vmem:[#allocation2 + $0x18] sm:$0xff] %vm1287, %v1240
      %1292 = vst.msk [vmem:[#allocation2 + $0x20] sm:$0xff] %vm1287, %v1242
      %1293 = vst.msk [vmem:[#allocation2 + $0x28] sm:$0xff] %vm1287, %v1244
      %1294 = vst.msk [vmem:[#allocation2 + $0x30] sm:$0xff] %vm1287, %v1246
      %1295 = vst.msk [vmem:[#allocation2 + $0x38] sm:$0xff] %vm1287, %v1248
      %1296 = vst.msk [vmem:[#allocation2 + $0x40] sm:$0xff] %vm1287, %v1250
      %1297 = vst.msk [vmem:[#allocation2 + $0x48] sm:$0xff] %vm1287, %v1252
      %1298 = vst.msk [vmem:[#allocation2 + $0x50] sm:$0xff] %vm1287, %v1254
      %1299 = vst.msk [vmem:[#allocation2 + $0x58] sm:$0xff] %vm1287, %v1256
      %1300 = vst.msk [vmem:[#allocation2 + $0x60] sm:$0xff] %vm1287, %v1258
      %1301 = vst.msk [vmem:[#allocation2 + $0x68] sm:$0xff] %vm1287, %v1260
      %1302 = vst.msk [vmem:[#allocation2 + $0x70] sm:$0xff] %vm1287, %v1262
      %1303 = vst.msk [vmem:[#allocation2 + $0x78] sm:$0xff] %vm1287, %v1264
      %1304 = vst.msk [vmem:[#allocation2 + $0x80] sm:$0xff] %vm1287, %v1266
      %1305 = vst.msk [vmem:[#allocation2 + $0x88] sm:$0xff] %vm1287, %v1268
      %v1306 = vld [vmem:[%s301 + $0x8] sm:$0xe]
      %v1307 = vld [vmem:[%s301 + $0xc] sm:$0xf]
      %v1308 = vld [vmem:[%s301 + $0x10] sm:$0xf]
      %v1309 = vld [vmem:[%s301 + $0x14] sm:$0xf]
      %v1310 = vld [vmem:[%s301 + $0x18] sm:$0xf]
      %v1311 = vld [vmem:[%s301 + $0x1c] sm:$0xf]
      %v1312 = vld [vmem:[%s301 + $0x20] sm:$0xf]
      %v1313 = vld [vmem:[%s301 + $0x24] sm:$0xf]
      %v1314 = vld [vmem:[%s301 + $0x28] sm:$0xf]
      %v1315 = vld [vmem:[%s301 + $0x2c] sm:$0xf]
      %v1316 = vld [vmem:[%s301 + $0x30] sm:$0xf]
      %v1317 = vld [vmem:[%s301 + $0x34] sm:$0xf]
      %v1318 = vld [vmem:[%s301 + $0x38] sm:$0xf]
      %v1319 = vld [vmem:[%s301 + $0x3c] sm:$0xf]
      %v1320 = vld [vmem:[%s301 + $0x40] sm:$0xf]
      %v1321 = vld [vmem:[%s301 + $0x44] sm:$0xf]
      %v1322 = vld [vmem:[%s301 + $0x48] sm:$0xf]
      %v1323 = vld [vmem:[%s301 + $0x4c] sm:$0xf]
      %v1324 = vld [vmem:[%s301 + $0x50] sm:$0xf]
      %v1325 = vld [vmem:[%s301 + $0x54] sm:$0xf]
      %v1326 = vld [vmem:[%s301 + $0x58] sm:$0xf]
      %v1327 = vld [vmem:[%s301 + $0x5c] sm:$0xf]
      %v1328 = vld [vmem:[%s301 + $0x60] sm:$0xf]
      %v1329 = vld [vmem:[%s301 + $0x64] sm:$0xf]
      %v1330 = vld [vmem:[%s301 + $0x68] sm:$0xf]
      %v1331 = vld [vmem:[%s301 + $0x6c] sm:$0xf]
      %v1332 = vld [vmem:[%s301 + $0x70] sm:$0xf]
      %v1333 = vld [vmem:[%s301 + $0x74] sm:$0xf]
      %v1334 = vld [vmem:[%s301 + $0x78] sm:$0xf]
      %v1335 = vld [vmem:[%s301 + $0x7c] sm:$0xf]
      %v1336 = vld [vmem:[%s301 + $0x80] sm:$0xf]
      %v1337 = vld [vmem:[%s301 + $0x84] sm:$0xf]
      %v1338 = vld [vmem:[%s301 + $0x88] sm:$0xf]
      %v1339 = vld [vmem:[%s301 + $0x8c] sm:$0xf]
      %v1340 = vld [vmem:[%s301 + $0x90] sm:$0xf]
      %v1341 = vld [vmem:[%s301 + $0x94] sm:$0xf]
      %v1342 = vld [vmem:[%s301 + $0x98] sm:$0x3]
      %v1380 = vunpack.c.l.b16 %v1306
      %v1381 = vunpack.c.l.b16 %v1307
      %v1382 = vunpack.c.l.b16 %v1308
      %v1383 = vunpack.c.l.b16 %v1309
      %v1384 = vunpack.c.l.b16 %v1310
      %v1385 = vunpack.c.l.b16 %v1311
      %v1386 = vunpack.c.l.b16 %v1312
      %v1387 = vunpack.c.l.b16 %v1313
      %v1388 = vunpack.c.l.b16 %v1314
      %v1389 = vunpack.c.l.b16 %v1315
      %v1390 = vunpack.c.l.b16 %v1316
      %v1391 = vunpack.c.l.b16 %v1317
      %v1392 = vunpack.c.l.b16 %v1318
      %v1393 = vunpack.c.l.b16 %v1319
      %v1394 = vunpack.c.l.b16 %v1320
      %v1395 = vunpack.c.l.b16 %v1321
      %v1396 = vunpack.c.l.b16 %v1322
      %v1397 = vunpack.c.l.b16 %v1323
      %v1398 = vunpack.c.l.b16 %v1324
      %v1399 = vunpack.c.l.b16 %v1325
      %v1400 = vunpack.c.l.b16 %v1326
      %v1401 = vunpack.c.l.b16 %v1327
      %v1402 = vunpack.c.l.b16 %v1328
      %v1403 = vunpack.c.l.b16 %v1329
      %v1404 = vunpack.c.l.b16 %v1330
      %v1405 = vunpack.c.l.b16 %v1331
      %v1406 = vunpack.c.l.b16 %v1332
      %v1407 = vunpack.c.l.b16 %v1333
      %v1408 = vunpack.c.l.b16 %v1334
      %v1409 = vunpack.c.l.b16 %v1335
      %v1410 = vunpack.c.l.b16 %v1336
      %v1411 = vunpack.c.l.b16 %v1337
      %v1412 = vunpack.c.l.b16 %v1338
      %v1413 = vunpack.c.l.b16 %v1339
      %v1414 = vunpack.c.l.b16 %v1340
      %v1415 = vunpack.c.l.b16 %v1341
      %v1416 = vunpack.c.l.b16 %v1342
      %v1417 = vpack.c.b16 %v1381, %v1380
      %v1418 = vpack.c.b16 %v1383, %v1382
      %v1419 = vpack.c.b16 %v1385, %v1384
      %v1420 = vpack.c.b16 %v1387, %v1386
      %v1421 = vpack.c.b16 %v1389, %v1388
      %v1422 = vpack.c.b16 %v1391, %v1390
      %v1423 = vpack.c.b16 %v1393, %v1392
      %v1424 = vpack.c.b16 %v1395, %v1394
      %v1425 = vpack.c.b16 %v1397, %v1396
      %v1426 = vpack.c.b16 %v1399, %v1398
      %v1427 = vpack.c.b16 %v1401, %v1400
      %v1428 = vpack.c.b16 %v1403, %v1402
      %v1429 = vpack.c.b16 %v1405, %v1404
      %v1430 = vpack.c.b16 %v1407, %v1406
      %v1431 = vpack.c.b16 %v1409, %v1408
      %v1432 = vpack.c.b16 %v1411, %v1410
      %v1433 = vpack.c.b16 %v1413, %v1412
      %v1434 = vpack.c.b16 %v1415, %v1414
      %v1435 = vpack.c.b16 %v1416, %v1416
      %vm1436 = vsmask.f32 6400
      %v1438 = vshrl.u32 %v1417, 16
      %v1440 = vrot.slane %v1438, 1
      %v1441 = vshll.u32 %v1417, 16
      %v1443 = vrot.slane %v1441, 2
      %v1444 = vor.u32 %v1440, %v1443
      %v1446 = vshrl.u32 %v1418, 16
      %v1448 = vrot.slane %v1446, 1
      %v1449 = vshll.u32 %v1418, 16
      %v1451 = vrot.slane %v1449, 2
      %v1452 = vor.u32 %v1448, %v1451
      %v1453 = vsel %vm1436, %v1444, %v1452
      %v1455 = vshrl.u32 %v1419, 16
      %v1457 = vrot.slane %v1455, 1
      %v1458 = vshll.u32 %v1419, 16
      %v1460 = vrot.slane %v1458, 2
      %v1461 = vor.u32 %v1457, %v1460
      %v1462 = vsel %vm1436, %v1452, %v1461
      %v1464 = vshrl.u32 %v1420, 16
      %v1466 = vrot.slane %v1464, 1
      %v1467 = vshll.u32 %v1420, 16
      %v1469 = vrot.slane %v1467, 2
      %v1470 = vor.u32 %v1466, %v1469
      %v1471 = vsel %vm1436, %v1461, %v1470
      %v1473 = vshrl.u32 %v1421, 16
      %v1475 = vrot.slane %v1473, 1
      %v1476 = vshll.u32 %v1421, 16
      %v1478 = vrot.slane %v1476, 2
      %v1479 = vor.u32 %v1475, %v1478
      %v1480 = vsel %vm1436, %v1470, %v1479
      %v1482 = vshrl.u32 %v1422, 16
      %v1484 = vrot.slane %v1482, 1
      %v1485 = vshll.u32 %v1422, 16
      %v1487 = vrot.slane %v1485, 2
      %v1488 = vor.u32 %v1484, %v1487
      %v1489 = vsel %vm1436, %v1479, %v1488
      %v1491 = vshrl.u32 %v1423, 16
      %v1493 = vrot.slane %v1491, 1
      %v1494 = vshll.u32 %v1423, 16
      %v1496 = vrot.slane %v1494, 2
      %v1497 = vor.u32 %v1493, %v1496
      %v1498 = vsel %vm1436, %v1488, %v1497
      %v1500 = vshrl.u32 %v1424, 16
      %v1502 = vrot.slane %v1500, 1
      %v1503 = vshll.u32 %v1424, 16
      %v1505 = vrot.slane %v1503, 2
      %v1506 = vor.u32 %v1502, %v1505
      %v1507 = vsel %vm1436, %v1497, %v1506
      %v1509 = vshrl.u32 %v1425, 16
      %v1511 = vrot.slane %v1509, 1
      %v1512 = vshll.u32 %v1425, 16
      %v1514 = vrot.slane %v1512, 2
      %v1515 = vor.u32 %v1511, %v1514
      %v1516 = vsel %vm1436, %v1506, %v1515
      %v1518 = vshrl.u32 %v1426, 16
      %v1520 = vrot.slane %v1518, 1
      %v1521 = vshll.u32 %v1426, 16
      %v1523 = vrot.slane %v1521, 2
      %v1524 = vor.u32 %v1520, %v1523
      %v1525 = vsel %vm1436, %v1515, %v1524
      %v1527 = vshrl.u32 %v1427, 16
      %v1529 = vrot.slane %v1527, 1
      %v1530 = vshll.u32 %v1427, 16
      %v1532 = vrot.slane %v1530, 2
      %v1533 = vor.u32 %v1529, %v1532
      %v1534 = vsel %vm1436, %v1524, %v1533
      %v1536 = vshrl.u32 %v1428, 16
      %v1538 = vrot.slane %v1536, 1
      %v1539 = vshll.u32 %v1428, 16
      %v1541 = vrot.slane %v1539, 2
      %v1542 = vor.u32 %v1538, %v1541
      %v1543 = vsel %vm1436, %v1533, %v1542
      %v1545 = vshrl.u32 %v1429, 16
      %v1547 = vrot.slane %v1545, 1
      %v1548 = vshll.u32 %v1429, 16
      %v1550 = vrot.slane %v1548, 2
      %v1551 = vor.u32 %v1547, %v1550
      %v1552 = vsel %vm1436, %v1542, %v1551
      %v1554 = vshrl.u32 %v1430, 16
      %v1556 = vrot.slane %v1554, 1
      %v1557 = vshll.u32 %v1430, 16
      %v1559 = vrot.slane %v1557, 2
      %v1560 = vor.u32 %v1556, %v1559
      %v1561 = vsel %vm1436, %v1551, %v1560
      %v1563 = vshrl.u32 %v1431, 16
      %v1565 = vrot.slane %v1563, 1
      %v1566 = vshll.u32 %v1431, 16
      %v1568 = vrot.slane %v1566, 2
      %v1569 = vor.u32 %v1565, %v1568
      %v1570 = vsel %vm1436, %v1560, %v1569
      %v1572 = vshrl.u32 %v1432, 16
      %v1574 = vrot.slane %v1572, 1
      %v1575 = vshll.u32 %v1432, 16
      %v1577 = vrot.slane %v1575, 2
      %v1578 = vor.u32 %v1574, %v1577
      %v1579 = vsel %vm1436, %v1569, %v1578
      %v1581 = vshrl.u32 %v1433, 16
      %v1583 = vrot.slane %v1581, 1
      %v1584 = vshll.u32 %v1433, 16
      %v1586 = vrot.slane %v1584, 2
      %v1587 = vor.u32 %v1583, %v1586
      %v1588 = vsel %vm1436, %v1578, %v1587
      %v1590 = vshrl.u32 %v1434, 16
      %v1592 = vrot.slane %v1590, 1
      %v1593 = vshll.u32 %v1434, 16
      %v1595 = vrot.slane %v1593, 2
      %v1596 = vor.u32 %v1592, %v1595
      %v1597 = vsel %vm1436, %v1587, %v1596
      %v1599 = vshrl.u32 %v1435, 16
      %v1601 = vrot.slane %v1599, 1
      %v1602 = vshll.u32 %v1435, 16
      %v1604 = vrot.slane %v1602, 2
      %v1605 = vor.u32 %v1601, %v1604
      %v1606 = vsel %vm1436, %v1596, %v1605
      %1607 = vrot.lane.b32.xlu0 %v1453, 16
      %v1608 = vpop.permute.xlu0 %1607
      %1609 = vrot.lane.b32.xlu0 %v1462, 16
      %v1610 = vpop.permute.xlu0 %1609
      %1611 = vrot.lane.b32.xlu0 %v1471, 16
      %v1612 = vpop.permute.xlu0 %1611
      %1613 = vrot.lane.b32.xlu0 %v1480, 16
      %v1614 = vpop.permute.xlu0 %1613
      %1615 = vrot.lane.b32.xlu0 %v1489, 16
      %v1616 = vpop.permute.xlu0 %1615
      %1617 = vrot.lane.b32.xlu0 %v1498, 16
      %v1618 = vpop.permute.xlu0 %1617
      %1619 = vrot.lane.b32.xlu0 %v1507, 16
      %v1620 = vpop.permute.xlu0 %1619
      %1621 = vrot.lane.b32.xlu0 %v1516, 16
      %v1622 = vpop.permute.xlu0 %1621
      %1623 = vrot.lane.b32.xlu0 %v1525, 16
      %v1624 = vpop.permute.xlu0 %1623
      %1625 = vrot.lane.b32.xlu0 %v1534, 16
      %v1626 = vpop.permute.xlu0 %1625
      %1627 = vrot.lane.b32.xlu0 %v1543, 16
      %v1628 = vpop.permute.xlu0 %1627
      %1629 = vrot.lane.b32.xlu0 %v1552, 16
      %v1630 = vpop.permute.xlu0 %1629
      %1631 = vrot.lane.b32.xlu0 %v1561, 16
      %v1632 = vpop.permute.xlu0 %1631
      %1633 = vrot.lane.b32.xlu0 %v1570, 16
      %v1634 = vpop.permute.xlu0 %1633
      %1635 = vrot.lane.b32.xlu0 %v1579, 16
      %v1636 = vpop.permute.xlu0 %1635
      %1637 = vrot.lane.b32.xlu0 %v1588, 16
      %v1638 = vpop.permute.xlu0 %1637
      %1639 = vrot.lane.b32.xlu0 %v1597, 16
      %v1640 = vpop.permute.xlu0 %1639
      %1641 = vrot.lane.b32.xlu0 %v1606, 16
      %v1642 = vpop.permute.xlu0 %1641
      %vm1661 = vcmask 162944
      %1662 = vst.msk [vmem:[#allocation2] sm:$0xff] %vm1661, %v1608
      %1663 = vst.msk [vmem:[#allocation2 + $0x8] sm:$0xff] %vm1661, %v1610
      %1664 = vst.msk [vmem:[#allocation2 + $0x10] sm:$0xff] %vm1661, %v1612
      %1665 = vst.msk [vmem:[#allocation2 + $0x18] sm:$0xff] %vm1661, %v1614
      %1666 = vst.msk [vmem:[#allocation2 + $0x20] sm:$0xff] %vm1661, %v1616
      %1667 = vst.msk [vmem:[#allocation2 + $0x28] sm:$0xff] %vm1661, %v1618
      %1668 = vst.msk [vmem:[#allocation2 + $0x30] sm:$0xff] %vm1661, %v1620
      %1669 = vst.msk [vmem:[#allocation2 + $0x38] sm:$0xff] %vm1661, %v1622
      %1670 = vst.msk [vmem:[#allocation2 + $0x40] sm:$0xff] %vm1661, %v1624
      %1671 = vst.msk [vmem:[#allocation2 + $0x48] sm:$0xff] %vm1661, %v1626
      %1672 = vst.msk [vmem:[#allocation2 + $0x50] sm:$0xff] %vm1661, %v1628
      %1673 = vst.msk [vmem:[#allocation2 + $0x58] sm:$0xff] %vm1661, %v1630
      %1674 = vst.msk [vmem:[#allocation2 + $0x60] sm:$0xff] %vm1661, %v1632
      %1675 = vst.msk [vmem:[#allocation2 + $0x68] sm:$0xff] %vm1661, %v1634
      %1676 = vst.msk [vmem:[#allocation2 + $0x70] sm:$0xff] %vm1661, %v1636
      %1677 = vst.msk [vmem:[#allocation2 + $0x78] sm:$0xff] %vm1661, %v1638
      %1678 = vst.msk [vmem:[#allocation2 + $0x80] sm:$0xff] %vm1661, %v1640
      %1679 = vst.msk [vmem:[#allocation2 + $0x88] sm:$0xff] %vm1661, %v1642
      %v1680 = vld [vmem:[%s301 + $0x8] sm:$0xc]
      %v1681 = vld [vmem:[%s301 + $0xc] sm:$0xf]
      %v1682 = vld [vmem:[%s301 + $0x10] sm:$0xf]
      %v1683 = vld [vmem:[%s301 + $0x14] sm:$0xf]
      %v1684 = vld [vmem:[%s301 + $0x18] sm:$0xf]
      %v1685 = vld [vmem:[%s301 + $0x1c] sm:$0xf]
      %v1686 = vld [vmem:[%s301 + $0x20] sm:$0xf]
      %v1687 = vld [vmem:[%s301 + $0x24] sm:$0xf]
      %v1688 = vld [vmem:[%s301 + $0x28] sm:$0xf]
      %v1689 = vld [vmem:[%s301 + $0x2c] sm:$0xf]
      %v1690 = vld [vmem:[%s301 + $0x30] sm:$0xf]
      %v1691 = vld [vmem:[%s301 + $0x34] sm:$0xf]
      %v1692 = vld [vmem:[%s301 + $0x38] sm:$0xf]
      %v1693 = vld [vmem:[%s301 + $0x3c] sm:$0xf]
      %v1694 = vld [vmem:[%s301 + $0x40] sm:$0xf]
      %v1695 = vld [vmem:[%s301 + $0x44] sm:$0xf]
      %v1696 = vld [vmem:[%s301 + $0x48] sm:$0xf]
      %v1697 = vld [vmem:[%s301 + $0x4c] sm:$0xf]
      %v1698 = vld [vmem:[%s301 + $0x50] sm:$0xf]
      %v1699 = vld [vmem:[%s301 + $0x54] sm:$0xf]
      %v1700 = vld [vmem:[%s301 + $0x58] sm:$0xf]
      %v1701 = vld [vmem:[%s301 + $0x5c] sm:$0xf]
      %v1702 = vld [vmem:[%s301 + $0x60] sm:$0xf]
      %v1703 = vld [vmem:[%s301 + $0x64] sm:$0xf]
      %v1704 = vld [vmem:[%s301 + $0x68] sm:$0xf]
      %v1705 = vld [vmem:[%s301 + $0x6c] sm:$0xf]
      %v1706 = vld [vmem:[%s301 + $0x70] sm:$0xf]
      %v1707 = vld [vmem:[%s301 + $0x74] sm:$0xf]
      %v1708 = vld [vmem:[%s301 + $0x78] sm:$0xf]
      %v1709 = vld [vmem:[%s301 + $0x7c] sm:$0xf]
      %v1710 = vld [vmem:[%s301 + $0x80] sm:$0xf]
      %v1711 = vld [vmem:[%s301 + $0x84] sm:$0xf]
      %v1712 = vld [vmem:[%s301 + $0x88] sm:$0xf]
      %v1713 = vld [vmem:[%s301 + $0x8c] sm:$0xf]
      %v1714 = vld [vmem:[%s301 + $0x90] sm:$0xf]
      %v1715 = vld [vmem:[%s301 + $0x94] sm:$0xf]
      %v1716 = vld [vmem:[%s301 + $0x98] sm:$0x3]
      %v1754 = vunpack.c.l.b16 %v1680
      %v1755 = vunpack.c.l.b16 %v1681
      %v1756 = vunpack.c.l.b16 %v1682
      %v1757 = vunpack.c.l.b16 %v1683
      %v1758 = vunpack.c.l.b16 %v1684
      %v1759 = vunpack.c.l.b16 %v1685
      %v1760 = vunpack.c.l.b16 %v1686
      %v1761 = vunpack.c.l.b16 %v1687
      %v1762 = vunpack.c.l.b16 %v1688
      %v1763 = vunpack.c.l.b16 %v1689
      %v1764 = vunpack.c.l.b16 %v1690
      %v1765 = vunpack.c.l.b16 %v1691
      %v1766 = vunpack.c.l.b16 %v1692
      %v1767 = vunpack.c.l.b16 %v1693
      %v1768 = vunpack.c.l.b16 %v1694
      %v1769 = vunpack.c.l.b16 %v1695
      %v1770 = vunpack.c.l.b16 %v1696
      %v1771 = vunpack.c.l.b16 %v1697
      %v1772 = vunpack.c.l.b16 %v1698
      %v1773 = vunpack.c.l.b16 %v1699
      %v1774 = vunpack.c.l.b16 %v1700
      %v1775 = vunpack.c.l.b16 %v1701
      %v1776 = vunpack.c.l.b16 %v1702
      %v1777 = vunpack.c.l.b16 %v1703
      %v1778 = vunpack.c.l.b16 %v1704
      %v1779 = vunpack.c.l.b16 %v1705
      %v1780 = vunpack.c.l.b16 %v1706
      %v1781 = vunpack.c.l.b16 %v1707
      %v1782 = vunpack.c.l.b16 %v1708
      %v1783 = vunpack.c.l.b16 %v1709
      %v1784 = vunpack.c.l.b16 %v1710
      %v1785 = vunpack.c.l.b16 %v1711
      %v1786 = vunpack.c.l.b16 %v1712
      %v1787 = vunpack.c.l.b16 %v1713
      %v1788 = vunpack.c.l.b16 %v1714
      %v1789 = vunpack.c.l.b16 %v1715
      %v1790 = vunpack.c.l.b16 %v1716
      %v1791 = vpack.c.b16 %v1755, %v1754
      %v1792 = vpack.c.b16 %v1757, %v1756
      %v1793 = vpack.c.b16 %v1759, %v1758
      %v1794 = vpack.c.b16 %v1761, %v1760
      %v1795 = vpack.c.b16 %v1763, %v1762
      %v1796 = vpack.c.b16 %v1765, %v1764
      %v1797 = vpack.c.b16 %v1767, %v1766
      %v1798 = vpack.c.b16 %v1769, %v1768
      %v1799 = vpack.c.b16 %v1771, %v1770
      %v1800 = vpack.c.b16 %v1773, %v1772
      %v1801 = vpack.c.b16 %v1775, %v1774
      %v1802 = vpack.c.b16 %v1777, %v1776
      %v1803 = vpack.c.b16 %v1779, %v1778
      %v1804 = vpack.c.b16 %v1781, %v1780
      %v1805 = vpack.c.b16 %v1783, %v1782
      %v1806 = vpack.c.b16 %v1785, %v1784
      %v1807 = vpack.c.b16 %v1787, %v1786
      %v1808 = vpack.c.b16 %v1789, %v1788
      %v1809 = vpack.c.b16 %v1790, %v1790
      %vm1810 = vcmask 1045504
      %v1811 = vrot.slane %v1791, 2
      %v1812 = vrot.slane %v1792, 2
      %v1813 = vsel %vm1810, %v1811, %v1812
      %v1814 = vrot.slane %v1793, 2
      %v1815 = vsel %vm1810, %v1812, %v1814
      %v1816 = vrot.slane %v1794, 2
      %v1817 = vsel %vm1810, %v1814, %v1816
      %v1818 = vrot.slane %v1795, 2
      %v1819 = vsel %vm1810, %v1816, %v1818
      %v1820 = vrot.slane %v1796, 2
      %v1821 = vsel %vm1810, %v1818, %v1820
      %v1822 = vrot.slane %v1797, 2
      %v1823 = vsel %vm1810, %v1820, %v1822
      %v1824 = vrot.slane %v1798, 2
      %v1825 = vsel %vm1810, %v1822, %v1824
      %v1826 = vrot.slane %v1799, 2
      %v1827 = vsel %vm1810, %v1824, %v1826
      %v1828 = vrot.slane %v1800, 2
      %v1829 = vsel %vm1810, %v1826, %v1828
      %v1830 = vrot.slane %v1801, 2
      %v1831 = vsel %vm1810, %v1828, %v1830
      %v1832 = vrot.slane %v1802, 2
      %v1833 = vsel %vm1810, %v1830, %v1832
      %v1834 = vrot.slane %v1803, 2
      %v1835 = vsel %vm1810, %v1832, %v1834
      %v1836 = vrot.slane %v1804, 2
      %v1837 = vsel %vm1810, %v1834, %v1836
      %v1838 = vrot.slane %v1805, 2
      %v1839 = vsel %vm1810, %v1836, %v1838
      %v1840 = vrot.slane %v1806, 2
      %v1841 = vsel %vm1810, %v1838, %v1840
      %v1842 = vrot.slane %v1807, 2
      %v1843 = vsel %vm1810, %v1840, %v1842
      %v1844 = vrot.slane %v1808, 2
      %v1845 = vsel %vm1810, %v1842, %v1844
      %v1846 = vrot.slane %v1809, 2
      %v1847 = vsel %vm1810, %v1844, %v1846
      %1848 = vrot.lane.b32.xlu0 %v1813, 20
      %v1849 = vpop.permute.xlu0 %1848
      %1850 = vrot.lane.b32.xlu0 %v1815, 20
      %v1851 = vpop.permute.xlu0 %1850
      %1852 = vrot.lane.b32.xlu0 %v1817, 20
      %v1853 = vpop.permute.xlu0 %1852
      %1854 = vrot.lane.b32.xlu0 %v1819, 20
      %v1855 = vpop.permute.xlu0 %1854
      %1856 = vrot.lane.b32.xlu0 %v1821, 20
      %v1857 = vpop.permute.xlu0 %1856
      %1858 = vrot.lane.b32.xlu0 %v1823, 20
      %v1859 = vpop.permute.xlu0 %1858
      %1860 = vrot.lane.b32.xlu0 %v1825, 20
      %v1861 = vpop.permute.xlu0 %1860
      %1862 = vrot.lane.b32.xlu0 %v1827, 20
      %v1863 = vpop.permute.xlu0 %1862
      %1864 = vrot.lane.b32.xlu0 %v1829, 20
      %v1865 = vpop.permute.xlu0 %1864
      %1866 = vrot.lane.b32.xlu0 %v1831, 20
      %v1867 = vpop.permute.xlu0 %1866
      %1868 = vrot.lane.b32.xlu0 %v1833, 20
      %v1869 = vpop.permute.xlu0 %1868
      %1870 = vrot.lane.b32.xlu0 %v1835, 20
      %v1871 = vpop.permute.xlu0 %1870
      %1872 = vrot.lane.b32.xlu0 %v1837, 20
      %v1873 = vpop.permute.xlu0 %1872
      %1874 = vrot.lane.b32.xlu0 %v1839, 20
      %v1875 = vpop.permute.xlu0 %1874
      %1876 = vrot.lane.b32.xlu0 %v1841, 20
      %v1877 = vpop.permute.xlu0 %1876
      %1878 = vrot.lane.b32.xlu0 %v1843, 20
      %v1879 = vpop.permute.xlu0 %1878
      %1880 = vrot.lane.b32.xlu0 %v1845, 20
      %v1881 = vpop.permute.xlu0 %1880
      %1882 = vrot.lane.b32.xlu0 %v1847, 20
      %v1883 = vpop.permute.xlu0 %1882
      %vm1902 = vcmask 195744
      %1903 = vst.msk [vmem:[#allocation2] sm:$0xff] %vm1902, %v1849
      %1904 = vst.msk [vmem:[#allocation2 + $0x8] sm:$0xff] %vm1902, %v1851
      %1905 = vst.msk [vmem:[#allocation2 + $0x10] sm:$0xff] %vm1902, %v1853
      %1906 = vst.msk [vmem:[#allocation2 + $0x18] sm:$0xff] %vm1902, %v1855
      %1907 = vst.msk [vmem:[#allocation2 + $0x20] sm:$0xff] %vm1902, %v1857
      %1908 = vst.msk [vmem:[#allocation2 + $0x28] sm:$0xff] %vm1902, %v1859
      %1909 = vst.msk [vmem:[#allocation2 + $0x30] sm:$0xff] %vm1902, %v1861
      %1910 = vst.msk [vmem:[#allocation2 + $0x38] sm:$0xff] %vm1902, %v1863
      %1911 = vst.msk [vmem:[#allocation2 + $0x40] sm:$0xff] %vm1902, %v1865
      %1912 = vst.msk [vmem:[#allocation2 + $0x48] sm:$0xff] %vm1902, %v1867
      %1913 = vst.msk [vmem:[#allocation2 + $0x50] sm:$0xff] %vm1902, %v1869
      %1914 = vst.msk [vmem:[#allocation2 + $0x58] sm:$0xff] %vm1902, %v1871
      %1915 = vst.msk [vmem:[#allocation2 + $0x60] sm:$0xff] %vm1902, %v1873
      %1916 = vst.msk [vmem:[#allocation2 + $0x68] sm:$0xff] %vm1902, %v1875
      %1917 = vst.msk [vmem:[#allocation2 + $0x70] sm:$0xff] %vm1902, %v1877
      %1918 = vst.msk [vmem:[#allocation2 + $0x78] sm:$0xff] %vm1902, %v1879
      %1919 = vst.msk [vmem:[#allocation2 + $0x80] sm:$0xff] %vm1902, %v1881
      %1920 = vst.msk [vmem:[#allocation2 + $0x88] sm:$0xff] %vm1902, %v1883
      %v1921 = vld [vmem:[%s301 + $0x10] sm:$0xc]
      %v1922 = vld [vmem:[%s301 + $0x14] sm:$0xf]
      %v1923 = vld [vmem:[%s301 + $0x18] sm:$0xf]
      %v1924 = vld [vmem:[%s301 + $0x1c] sm:$0xf]
      %v1925 = vld [vmem:[%s301 + $0x20] sm:$0xf]
      %v1926 = vld [vmem:[%s301 + $0x24] sm:$0xf]
      %v1927 = vld [vmem:[%s301 + $0x28] sm:$0xf]
      %v1928 = vld [vmem:[%s301 + $0x2c] sm:$0xf]
      %v1929 = vld [vmem:[%s301 + $0x30] sm:$0xf]
      %v1930 = vld [vmem:[%s301 + $0x34] sm:$0xf]
      %v1931 = vld [vmem:[%s301 + $0x38] sm:$0xf]
      %v1932 = vld [vmem:[%s301 + $0x3c] sm:$0xf]
      %v1933 = vld [vmem:[%s301 + $0x40] sm:$0xf]
      %v1934 = vld [vmem:[%s301 + $0x44] sm:$0xf]
      %v1935 = vld [vmem:[%s301 + $0x48] sm:$0xf]
      %v1936 = vld [vmem:[%s301 + $0x4c] sm:$0xf]
      %v1937 = vld [vmem:[%s301 + $0x50] sm:$0xf]
      %v1938 = vld [vmem:[%s301 + $0x54] sm:$0xf]
      %v1939 = vld [vmem:[%s301 + $0x58] sm:$0xf]
      %v1940 = vld [vmem:[%s301 + $0x5c] sm:$0xf]
      %v1941 = vld [vmem:[%s301 + $0x60] sm:$0xf]
      %v1942 = vld [vmem:[%s301 + $0x64] sm:$0xf]
      %v1943 = vld [vmem:[%s301 + $0x68] sm:$0xf]
      %v1944 = vld [vmem:[%s301 + $0x6c] sm:$0xf]
      %v1945 = vld [vmem:[%s301 + $0x70] sm:$0xf]
      %v1946 = vld [vmem:[%s301 + $0x74] sm:$0xf]
      %v1947 = vld [vmem:[%s301 + $0x78] sm:$0xf]
      %v1948 = vld [vmem:[%s301 + $0x7c] sm:$0xf]
      %v1949 = vld [vmem:[%s301 + $0x80] sm:$0xf]
      %v1950 = vld [vmem:[%s301 + $0x84] sm:$0xf]
      %v1951 = vld [vmem:[%s301 + $0x88] sm:$0xf]
      %v1952 = vld [vmem:[%s301 + $0x8c] sm:$0xf]
      %v1953 = vld [vmem:[%s301 + $0x90] sm:$0xf]
      %v1954 = vld [vmem:[%s301 + $0x94] sm:$0xf]
      %v1955 = vld [vmem:[%s301 + $0x98] sm:$0xf]
      %v1956 = vld [vmem:[%s301 + $0x9c] sm:$0xf]
      %v1957 = vld [vmem:[%s301 + $0xa0] sm:$0x3]
      %v1995 = vunpack.c.l.b16 %v1921
      %v1996 = vunpack.c.l.b16 %v1922
      %v1997 = vunpack.c.l.b16 %v1923
      %v1998 = vunpack.c.l.b16 %v1924
      %v1999 = vunpack.c.l.b16 %v1925
      %v2000 = vunpack.c.l.b16 %v1926
      %v2001 = vunpack.c.l.b16 %v1927
      %v2002 = vunpack.c.l.b16 %v1928
      %v2003 = vunpack.c.l.b16 %v1929
      %v2004 = vunpack.c.l.b16 %v1930
      %v2005 = vunpack.c.l.b16 %v1931
      %v2006 = vunpack.c.l.b16 %v1932
      %v2007 = vunpack.c.l.b16 %v1933
      %v2008 = vunpack.c.l.b16 %v1934
      %v2009 = vunpack.c.l.b16 %v1935
      %v2010 = vunpack.c.l.b16 %v1936
      %v2011 = vunpack.c.l.b16 %v1937
      %v2012 = vunpack.c.l.b16 %v1938
      %v2013 = vunpack.c.l.b16 %v1939
      %v2014 = vunpack.c.l.b16 %v1940
      %v2015 = vunpack.c.l.b16 %v1941
      %v2016 = vunpack.c.l.b16 %v1942
      %v2017 = vunpack.c.l.b16 %v1943
      %v2018 = vunpack.c.l.b16 %v1944
      %v2019 = vunpack.c.l.b16 %v1945
      %v2020 = vunpack.c.l.b16 %v1946
      %v2021 = vunpack.c.l.b16 %v1947
      %v2022 = vunpack.c.l.b16 %v1948
      %v2023 = vunpack.c.l.b16 %v1949
      %v2024 = vunpack.c.l.b16 %v1950
      %v2025 = vunpack.c.l.b16 %v1951
      %v2026 = vunpack.c.l.b16 %v1952
      %v2027 = vunpack.c.l.b16 %v1953
      %v2028 = vunpack.c.l.b16 %v1954
      %v2029 = vunpack.c.l.b16 %v1955
      %v2030 = vunpack.c.l.b16 %v1956
      %v2031 = vunpack.c.l.b16 %v1957
      %v2032 = vpack.c.b16 %v1996, %v1995
      %v2033 = vpack.c.b16 %v1998, %v1997
      %v2034 = vpack.c.b16 %v2000, %v1999
      %v2035 = vpack.c.b16 %v2002, %v2001
      %v2036 = vpack.c.b16 %v2004, %v2003
      %v2037 = vpack.c.b16 %v2006, %v2005
      %v2038 = vpack.c.b16 %v2008, %v2007
      %v2039 = vpack.c.b16 %v2010, %v2009
      %v2040 = vpack.c.b16 %v2012, %v2011
      %v2041 = vpack.c.b16 %v2014, %v2013
      %v2042 = vpack.c.b16 %v2016, %v2015
      %v2043 = vpack.c.b16 %v2018, %v2017
      %v2044 = vpack.c.b16 %v2020, %v2019
      %v2045 = vpack.c.b16 %v2022, %v2021
      %v2046 = vpack.c.b16 %v2024, %v2023
      %v2047 = vpack.c.b16 %v2026, %v2025
      %v2048 = vpack.c.b16 %v2028, %v2027
      %v2049 = vpack.c.b16 %v2030, %v2029
      %v2050 = vpack.c.b16 %v2031, %v2031
      %v2051 = vrot.slane %v2032, 2
      %v2052 = vrot.slane %v2033, 2
      %v2053 = vsel %vm1810, %v2051, %v2052
      %v2054 = vrot.slane %v2034, 2
      %v2055 = vsel %vm1810, %v2052, %v2054
      %v2056 = vrot.slane %v2035, 2
      %v2057 = vsel %vm1810, %v2054, %v2056
      %v2058 = vrot.slane %v2036, 2
      %v2059 = vsel %vm1810, %v2056, %v2058
      %v2060 = vrot.slane %v2037, 2
      %v2061 = vsel %vm1810, %v2058, %v2060
      %v2062 = vrot.slane %v2038, 2
      %v2063 = vsel %vm1810, %v2060, %v2062
      %v2064 = vrot.slane %v2039, 2
      %v2065 = vsel %vm1810, %v2062, %v2064
      %v2066 = vrot.slane %v2040, 2
      %v2067 = vsel %vm1810, %v2064, %v2066
      %v2068 = vrot.slane %v2041, 2
      %v2069 = vsel %vm1810, %v2066, %v2068
      %v2070 = vrot.slane %v2042, 2
      %v2071 = vsel %vm1810, %v2068, %v2070
      %v2072 = vrot.slane %v2043, 2
      %v2073 = vsel %vm1810, %v2070, %v2072
      %v2074 = vrot.slane %v2044, 2
      %v2075 = vsel %vm1810, %v2072, %v2074
      %v2076 = vrot.slane %v2045, 2
      %v2077 = vsel %vm1810, %v2074, %v2076
      %v2078 = vrot.slane %v2046, 2
      %v2079 = vsel %vm1810, %v2076, %v2078
      %v2080 = vrot.slane %v2047, 2
      %v2081 = vsel %vm1810, %v2078, %v2080
      %v2082 = vrot.slane %v2048, 2
      %v2083 = vsel %vm1810, %v2080, %v2082
      %v2084 = vrot.slane %v2049, 2
      %v2085 = vsel %vm1810, %v2082, %v2084
      %v2086 = vrot.slane %v2050, 2
      %v2087 = vsel %vm1810, %v2084, %v2086
      %2088 = vrot.lane.b32.xlu0 %v2053, 24
      %v2089 = vpop.permute.xlu0 %2088
      %2090 = vrot.lane.b32.xlu0 %v2055, 24
      %v2091 = vpop.permute.xlu0 %2090
      %2092 = vrot.lane.b32.xlu0 %v2057, 24
      %v2093 = vpop.permute.xlu0 %2092
      %2094 = vrot.lane.b32.xlu0 %v2059, 24
      %v2095 = vpop.permute.xlu0 %2094
      %2096 = vrot.lane.b32.xlu0 %v2061, 24
      %v2097 = vpop.permute.xlu0 %2096
      %2098 = vrot.lane.b32.xlu0 %v2063, 24
      %v2099 = vpop.permute.xlu0 %2098
      %2100 = vrot.lane.b32.xlu0 %v2065, 24
      %v2101 = vpop.permute.xlu0 %2100
      %2102 = vrot.lane.b32.xlu0 %v2067, 24
      %v2103 = vpop.permute.xlu0 %2102
      %2104 = vrot.lane.b32.xlu0 %v2069, 24
      %v2105 = vpop.permute.xlu0 %2104
      %2106 = vrot.lane.b32.xlu0 %v2071, 24
      %v2107 = vpop.permute.xlu0 %2106
      %2108 = vrot.lane.b32.xlu0 %v2073, 24
      %v2109 = vpop.permute.xlu0 %2108
      %2110 = vrot.lane.b32.xlu0 %v2075, 24
      %v2111 = vpop.permute.xlu0 %2110
      %2112 = vrot.lane.b32.xlu0 %v2077, 24
      %v2113 = vpop.permute.xlu0 %2112
      %2114 = vrot.lane.b32.xlu0 %v2079, 24
      %v2115 = vpop.permute.xlu0 %2114
      %2116 = vrot.lane.b32.xlu0 %v2081, 24
      %v2117 = vpop.permute.xlu0 %2116
      %2118 = vrot.lane.b32.xlu0 %v2083, 24
      %v2119 = vpop.permute.xlu0 %2118
      %2120 = vrot.lane.b32.xlu0 %v2085, 24
      %v2121 = vpop.permute.xlu0 %2120
      %2122 = vrot.lane.b32.xlu0 %v2087, 24
      %v2123 = vpop.permute.xlu0 %2122
      %vm2142 = vcmask 228544
      %2143 = vst.msk [vmem:[#allocation2] sm:$0xff] %vm2142, %v2089
      %2144 = vst.msk [vmem:[#allocation2 + $0x8] sm:$0xff] %vm2142, %v2091
      %2145 = vst.msk [vmem:[#allocation2 + $0x10] sm:$0xff] %vm2142, %v2093
      %2146 = vst.msk [vmem:[#allocation2 + $0x18] sm:$0xff] %vm2142, %v2095
      %2147 = vst.msk [vmem:[#allocation2 + $0x20] sm:$0xff] %vm2142, %v2097
      %2148 = vst.msk [vmem:[#allocation2 + $0x28] sm:$0xff] %vm2142, %v2099
      %2149 = vst.msk [vmem:[#allocation2 + $0x30] sm:$0xff] %vm2142, %v2101
      %2150 = vst.msk [vmem:[#allocation2 + $0x38] sm:$0xff] %vm2142, %v2103
      %2151 = vst.msk [vmem:[#allocation2 + $0x40] sm:$0xff] %vm2142, %v2105
      %2152 = vst.msk [vmem:[#allocation2 + $0x48] sm:$0xff] %vm2142, %v2107
      %2153 = vst.msk [vmem:[#allocation2 + $0x50] sm:$0xff] %vm2142, %v2109
      %2154 = vst.msk [vmem:[#allocation2 + $0x58] sm:$0xff] %vm2142, %v2111
      %2155 = vst.msk [vmem:[#allocation2 + $0x60] sm:$0xff] %vm2142, %v2113
      %2156 = vst.msk [vmem:[#allocation2 + $0x68] sm:$0xff] %vm2142, %v2115
      %2157 = vst.msk [vmem:[#allocation2 + $0x70] sm:$0xff] %vm2142, %v2117
      %2158 = vst.msk [vmem:[#allocation2 + $0x78] sm:$0xff] %vm2142, %v2119
      %2159 = vst.msk [vmem:[#allocation2 + $0x80] sm:$0xff] %vm2142, %v2121
      %2160 = vst.msk [vmem:[#allocation2 + $0x88] sm:$0xff] %vm2142, %v2123
      %v2161 = vld [vmem:[%s301 + $0x10] sm:$0xc]
      %v2162 = vld [vmem:[%s301 + $0x14] sm:$0xf]
      %v2163 = vld [vmem:[%s301 + $0x18] sm:$0xf]
      %v2164 = vld [vmem:[%s301 + $0x1c] sm:$0xf]
      %v2165 = vld [vmem:[%s301 + $0x20] sm:$0xf]
      %v2166 = vld [vmem:[%s301 + $0x24] sm:$0xf]
      %v2167 = vld [vmem:[%s301 + $0x28] sm:$0xf]
      %v2168 = vld [vmem:[%s301 + $0x2c] sm:$0xf]
      %v2169 = vld [vmem:[%s301 + $0x30] sm:$0xf]
      %v2170 = vld [vmem:[%s301 + $0x34] sm:$0xf]
      %v2171 = vld [vmem:[%s301 + $0x38] sm:$0xf]
      %v2172 = vld [vmem:[%s301 + $0x3c] sm:$0xf]
      %v2173 = vld [vmem:[%s301 + $0x40] sm:$0xf]
      %v2174 = vld [vmem:[%s301 + $0x44] sm:$0xf]
      %v2175 = vld [vmem:[%s301 + $0x48] sm:$0xf]
      %v2176 = vld [vmem:[%s301 + $0x4c] sm:$0xf]
      %v2177 = vld [vmem:[%s301 + $0x50] sm:$0xf]
      %v2178 = vld [vmem:[%s301 + $0x54] sm:$0xf]
      %v2179 = vld [vmem:[%s301 + $0x58] sm:$0xf]
      %v2180 = vld [vmem:[%s301 + $0x5c] sm:$0xf]
      %v2181 = vld [vmem:[%s301 + $0x60] sm:$0xf]
      %v2182 = vld [vmem:[%s301 + $0x64] sm:$0xf]
      %v2183 = vld [vmem:[%s301 + $0x68] sm:$0xf]
      %v2184 = vld [vmem:[%s301 + $0x6c] sm:$0xf]
      %v2185 = vld [vmem:[%s301 + $0x70] sm:$0xf]
      %v2186 = vld [vmem:[%s301 + $0x74] sm:$0xf]
      %v2187 = vld [vmem:[%s301 + $0x78] sm:$0xf]
      %v2188 = vld [vmem:[%s301 + $0x7c] sm:$0xf]
      %v2189 = vld [vmem:[%s301 + $0x80] sm:$0xf]
      %v2190 = vld [vmem:[%s301 + $0x84] sm:$0xf]
      %v2191 = vld [vmem:[%s301 + $0x88] sm:$0xf]
      %v2192 = vld [vmem:[%s301 + $0x8c] sm:$0xf]
      %v2193 = vld [vmem:[%s301 + $0x90] sm:$0xf]
      %v2194 = vld [vmem:[%s301 + $0x94] sm:$0xf]
      %v2195 = vld [vmem:[%s301 + $0x98] sm:$0xf]
      %v2196 = vld [vmem:[%s301 + $0x9c] sm:$0xf]
      %v2197 = vld [vmem:[%s301 + $0xa0] sm:$0x7]
      %v2235 = vunpack.c.l.b16 %v2161
      %v2236 = vunpack.c.l.b16 %v2162
      %v2237 = vunpack.c.l.b16 %v2163
      %v2238 = vunpack.c.l.b16 %v2164
      %v2239 = vunpack.c.l.b16 %v2165
      %v2240 = vunpack.c.l.b16 %v2166
      %v2241 = vunpack.c.l.b16 %v2167
      %v2242 = vunpack.c.l.b16 %v2168
      %v2243 = vunpack.c.l.b16 %v2169
      %v2244 = vunpack.c.l.b16 %v2170
      %v2245 = vunpack.c.l.b16 %v2171
      %v2246 = vunpack.c.l.b16 %v2172
      %v2247 = vunpack.c.l.b16 %v2173
      %v2248 = vunpack.c.l.b16 %v2174
      %v2249 = vunpack.c.l.b16 %v2175
      %v2250 = vunpack.c.l.b16 %v2176
      %v2251 = vunpack.c.l.b16 %v2177
      %v2252 = vunpack.c.l.b16 %v2178
      %v2253 = vunpack.c.l.b16 %v2179
      %v2254 = vunpack.c.l.b16 %v2180
      %v2255 = vunpack.c.l.b16 %v2181
      %v2256 = vunpack.c.l.b16 %v2182
      %v2257 = vunpack.c.l.b16 %v2183
      %v2258 = vunpack.c.l.b16 %v2184
      %v2259 = vunpack.c.l.b16 %v2185
      %v2260 = vunpack.c.l.b16 %v2186
      %v2261 = vunpack.c.l.b16 %v2187
      %v2262 = vunpack.c.l.b16 %v2188
      %v2263 = vunpack.c.l.b16 %v2189
      %v2264 = vunpack.c.l.b16 %v2190
      %v2265 = vunpack.c.l.b16 %v2191
      %v2266 = vunpack.c.l.b16 %v2192
      %v2267 = vunpack.c.l.b16 %v2193
      %v2268 = vunpack.c.l.b16 %v2194
      %v2269 = vunpack.c.l.b16 %v2195
      %v2270 = vunpack.c.l.b16 %v2196
      %v2271 = vunpack.c.l.b16 %v2197
      %v2272 = vpack.c.b16 %v2236, %v2235
      %v2273 = vpack.c.b16 %v2238, %v2237
      %v2274 = vpack.c.b16 %v2240, %v2239
      %v2275 = vpack.c.b16 %v2242, %v2241
      %v2276 = vpack.c.b16 %v2244, %v2243
      %v2277 = vpack.c.b16 %v2246, %v2245
      %v2278 = vpack.c.b16 %v2248, %v2247
      %v2279 = vpack.c.b16 %v2250, %v2249
      %v2280 = vpack.c.b16 %v2252, %v2251
      %v2281 = vpack.c.b16 %v2254, %v2253
      %v2282 = vpack.c.b16 %v2256, %v2255
      %v2283 = vpack.c.b16 %v2258, %v2257
      %v2284 = vpack.c.b16 %v2260, %v2259
      %v2285 = vpack.c.b16 %v2262, %v2261
      %v2286 = vpack.c.b16 %v2264, %v2263
      %v2287 = vpack.c.b16 %v2266, %v2265
      %v2288 = vpack.c.b16 %v2268, %v2267
      %v2289 = vpack.c.b16 %v2270, %v2269
      %v2290 = vpack.c.b16 %v2271, %v2271
      %vm2291 = vsmask.f32 5376
      %v2293 = vshrl.u32 %v2272, 16
      %v2295 = vrot.slane %v2293, 2
      %v2296 = vshll.u32 %v2272, 16
      %v2298 = vrot.slane %v2296, 3
      %v2299 = vor.u32 %v2295, %v2298
      %v2301 = vshrl.u32 %v2273, 16
      %v2303 = vrot.slane %v2301, 2
      %v2304 = vshll.u32 %v2273, 16
      %v2306 = vrot.slane %v2304, 3
      %v2307 = vor.u32 %v2303, %v2306
      %v2308 = vsel %vm2291, %v2299, %v2307
      %v2310 = vshrl.u32 %v2274, 16
      %v2312 = vrot.slane %v2310, 2
      %v2313 = vshll.u32 %v2274, 16
      %v2315 = vrot.slane %v2313, 3
      %v2316 = vor.u32 %v2312, %v2315
      %v2317 = vsel %vm2291, %v2307, %v2316
      %v2319 = vshrl.u32 %v2275, 16
      %v2321 = vrot.slane %v2319, 2
      %v2322 = vshll.u32 %v2275, 16
      %v2324 = vrot.slane %v2322, 3
      %v2325 = vor.u32 %v2321, %v2324
      %v2326 = vsel %vm2291, %v2316, %v2325
      %v2328 = vshrl.u32 %v2276, 16
      %v2330 = vrot.slane %v2328, 2
      %v2331 = vshll.u32 %v2276, 16
      %v2333 = vrot.slane %v2331, 3
      %v2334 = vor.u32 %v2330, %v2333
      %v2335 = vsel %vm2291, %v2325, %v2334
      %v2337 = vshrl.u32 %v2277, 16
      %v2339 = vrot.slane %v2337, 2
      %v2340 = vshll.u32 %v2277, 16
      %v2342 = vrot.slane %v2340, 3
      %v2343 = vor.u32 %v2339, %v2342
      %v2344 = vsel %vm2291, %v2334, %v2343
      %v2346 = vshrl.u32 %v2278, 16
      %v2348 = vrot.slane %v2346, 2
      %v2349 = vshll.u32 %v2278, 16
      %v2351 = vrot.slane %v2349, 3
      %v2352 = vor.u32 %v2348, %v2351
      %v2353 = vsel %vm2291, %v2343, %v2352
      %v2355 = vshrl.u32 %v2279, 16
      %v2357 = vrot.slane %v2355, 2
      %v2358 = vshll.u32 %v2279, 16
      %v2360 = vrot.slane %v2358, 3
      %v2361 = vor.u32 %v2357, %v2360
      %v2362 = vsel %vm2291, %v2352, %v2361
      %v2364 = vshrl.u32 %v2280, 16
      %v2366 = vrot.slane %v2364, 2
      %v2367 = vshll.u32 %v2280, 16
      %v2369 = vrot.slane %v2367, 3
      %v2370 = vor.u32 %v2366, %v2369
      %v2371 = vsel %vm2291, %v2361, %v2370
      %v2373 = vshrl.u32 %v2281, 16
      %v2375 = vrot.slane %v2373, 2
      %v2376 = vshll.u32 %v2281, 16
      %v2378 = vrot.slane %v2376, 3
      %v2379 = vor.u32 %v2375, %v2378
      %v2380 = vsel %vm2291, %v2370, %v2379
      %v2382 = vshrl.u32 %v2282, 16
      %v2384 = vrot.slane %v2382, 2
      %v2385 = vshll.u32 %v2282, 16
      %v2387 = vrot.slane %v2385, 3
      %v2388 = vor.u32 %v2384, %v2387
      %v2389 = vsel %vm2291, %v2379, %v2388
      %v2391 = vshrl.u32 %v2283, 16
      %v2393 = vrot.slane %v2391, 2
      %v2394 = vshll.u32 %v2283, 16
      %v2396 = vrot.slane %v2394, 3
      %v2397 = vor.u32 %v2393, %v2396
      %v2398 = vsel %vm2291, %v2388, %v2397
      %v2400 = vshrl.u32 %v2284, 16
      %v2402 = vrot.slane %v2400, 2
      %v2403 = vshll.u32 %v2284, 16
      %v2405 = vrot.slane %v2403, 3
      %v2406 = vor.u32 %v2402, %v2405
      %v2407 = vsel %vm2291, %v2397, %v2406
      %v2409 = vshrl.u32 %v2285, 16
      %v2411 = vrot.slane %v2409, 2
      %v2412 = vshll.u32 %v2285, 16
      %v2414 = vrot.slane %v2412, 3
      %v2415 = vor.u32 %v2411, %v2414
      %v2416 = vsel %vm2291, %v2406, %v2415
      %v2418 = vshrl.u32 %v2286, 16
      %v2420 = vrot.slane %v2418, 2
      %v2421 = vshll.u32 %v2286, 16
      %v2423 = vrot.slane %v2421, 3
      %v2424 = vor.u32 %v2420, %v2423
      %v2425 = vsel %vm2291, %v2415, %v2424
      %v2427 = vshrl.u32 %v2287, 16
      %v2429 = vrot.slane %v2427, 2
      %v2430 = vshll.u32 %v2287, 16
      %v2432 = vrot.slane %v2430, 3
      %v2433 = vor.u32 %v2429, %v2432
      %v2434 = vsel %vm2291, %v2424, %v2433
      %v2436 = vshrl.u32 %v2288, 16
      %v2438 = vrot.slane %v2436, 2
      %v2439 = vshll.u32 %v2288, 16
      %v2441 = vrot.slane %v2439, 3
      %v2442 = vor.u32 %v2438, %v2441
      %v2443 = vsel %vm2291, %v2433, %v2442
      %v2445 = vshrl.u32 %v2289, 16
      %v2447 = vrot.slane %v2445, 2
      %v2448 = vshll.u32 %v2289, 16
      %v2450 = vrot.slane %v2448, 3
      %v2451 = vor.u32 %v2447, %v2450
      %v2452 = vsel %vm2291, %v2442, %v2451
      %v2454 = vshrl.u32 %v2290, 16
      %v2456 = vrot.slane %v2454, 2
      %v2457 = vshll.u32 %v2290, 16
      %v2459 = vrot.slane %v2457, 3
      %v2460 = vor.u32 %v2456, %v2459
      %v2461 = vsel %vm2291, %v2451, %v2460
      %2462 = vrot.lane.b32.xlu0 %v2308, 28
      %v2463 = vpop.permute.xlu0 %2462
      %2464 = vrot.lane.b32.xlu0 %v2317, 28
      %v2465 = vpop.permute.xlu0 %2464
      %2466 = vrot.lane.b32.xlu0 %v2326, 28
      %v2467 = vpop.permute.xlu0 %2466
      %2468 = vrot.lane.b32.xlu0 %v2335, 28
      %v2469 = vpop.permute.xlu0 %2468
      %2470 = vrot.lane.b32.xlu0 %v2344, 28
      %v2471 = vpop.permute.xlu0 %2470
      %2472 = vrot.lane.b32.xlu0 %v2353, 28
      %v2473 = vpop.permute.xlu0 %2472
      %2474 = vrot.lane.b32.xlu0 %v2362, 28
      %v2475 = vpop.permute.xlu0 %2474
      %2476 = vrot.lane.b32.xlu0 %v2371, 28
      %v2477 = vpop.permute.xlu0 %2476
      %2478 = vrot.lane.b32.xlu0 %v2380, 28
      %v2479 = vpop.permute.xlu0 %2478
      %2480 = vrot.lane.b32.xlu0 %v2389, 28
      %v2481 = vpop.permute.xlu0 %2480
      %2482 = vrot.lane.b32.xlu0 %v2398, 28
      %v2483 = vpop.permute.xlu0 %2482
      %2484 = vrot.lane.b32.xlu0 %v2407, 28
      %v2485 = vpop.permute.xlu0 %2484
      %2486 = vrot.lane.b32.xlu0 %v2416, 28
      %v2487 = vpop.permute.xlu0 %2486
      %2488 = vrot.lane.b32.xlu0 %v2425, 28
      %v2489 = vpop.permute.xlu0 %2488
      %2490 = vrot.lane.b32.xlu0 %v2434, 28
      %v2491 = vpop.permute.xlu0 %2490
      %2492 = vrot.lane.b32.xlu0 %v2443, 28
      %v2493 = vpop.permute.xlu0 %2492
      %2494 = vrot.lane.b32.xlu0 %v2452, 28
      %v2495 = vpop.permute.xlu0 %2494
      %2496 = vrot.lane.b32.xlu0 %v2461, 28
      %v2497 = vpop.permute.xlu0 %2496
      %vm2516 = vcmask 261344
      %2517 = vst.msk [vmem:[#allocation2] sm:$0xff] %vm2516, %v2463
      %2518 = vst.msk [vmem:[#allocation2 + $0x8] sm:$0xff] %vm2516, %v2465
      %2519 = vst.msk [vmem:[#allocation2 + $0x10] sm:$0xff] %vm2516, %v2467
      %2520 = vst.msk [vmem:[#allocation2 + $0x18] sm:$0xff] %vm2516, %v2469
      %2521 = vst.msk [vmem:[#allocation2 + $0x20] sm:$0xff] %vm2516, %v2471
      %2522 = vst.msk [vmem:[#allocation2 + $0x28] sm:$0xff] %vm2516, %v2473
      %2523 = vst.msk [vmem:[#allocation2 + $0x30] sm:$0xff] %vm2516, %v2475
      %2524 = vst.msk [vmem:[#allocation2 + $0x38] sm:$0xff] %vm2516, %v2477
      %2525 = vst.msk [vmem:[#allocation2 + $0x40] sm:$0xff] %vm2516, %v2479
      %2526 = vst.msk [vmem:[#allocation2 + $0x48] sm:$0xff] %vm2516, %v2481
      %2527 = vst.msk [vmem:[#allocation2 + $0x50] sm:$0xff] %vm2516, %v2483
      %2528 = vst.msk [vmem:[#allocation2 + $0x58] sm:$0xff] %vm2516, %v2485
      %2529 = vst.msk [vmem:[#allocation2 + $0x60] sm:$0xff] %vm2516, %v2487
      %2530 = vst.msk [vmem:[#allocation2 + $0x68] sm:$0xff] %vm2516, %v2489
      %2531 = vst.msk [vmem:[#allocation2 + $0x70] sm:$0xff] %vm2516, %v2491
      %2532 = vst.msk [vmem:[#allocation2 + $0x78] sm:$0xff] %vm2516, %v2493
      %2533 = vst.msk [vmem:[#allocation2 + $0x80] sm:$0xff] %vm2516, %v2495
      %2534 = vst.msk [vmem:[#allocation2 + $0x88] sm:$0xff] %vm2516, %v2497
      %v2535 = vld [vmem:[%s301 + $0x10] sm:$0x8]
      %v2536 = vld [vmem:[%s301 + $0x14] sm:$0xf]
      %v2537 = vld [vmem:[%s301 + $0x18] sm:$0xf]
      %v2538 = vld [vmem:[%s301 + $0x1c] sm:$0xf]
      %v2539 = vld [vmem:[%s301 + $0x20] sm:$0xf]
      %v2540 = vld [vmem:[%s301 + $0x24] sm:$0xf]
      %v2541 = vld [vmem:[%s301 + $0x28] sm:$0xf]
      %v2542 = vld [vmem:[%s301 + $0x2c] sm:$0xf]
      %v2543 = vld [vmem:[%s301 + $0x30] sm:$0xf]
      %v2544 = vld [vmem:[%s301 + $0x34] sm:$0xf]
      %v2545 = vld [vmem:[%s301 + $0x38] sm:$0xf]
      %v2546 = vld [vmem:[%s301 + $0x3c] sm:$0xf]
      %v2547 = vld [vmem:[%s301 + $0x40] sm:$0xf]
      %v2548 = vld [vmem:[%s301 + $0x44] sm:$0xf]
      %v2549 = vld [vmem:[%s301 + $0x48] sm:$0xf]
      %v2550 = vld [vmem:[%s301 + $0x4c] sm:$0xf]
      %v2551 = vld [vmem:[%s301 + $0x50] sm:$0xf]
      %v2552 = vld [vmem:[%s301 + $0x54] sm:$0xf]
      %v2553 = vld [vmem:[%s301 + $0x58] sm:$0xf]
      %v2554 = vld [vmem:[%s301 + $0x5c] sm:$0xf]
      %v2555 = vld [vmem:[%s301 + $0x60] sm:$0xf]
      %v2556 = vld [vmem:[%s301 + $0x64] sm:$0xf]
      %v2557 = vld [vmem:[%s301 + $0x68] sm:$0xf]
      %v2558 = vld [vmem:[%s301 + $0x6c] sm:$0xf]
      %v2559 = vld [vmem:[%s301 + $0x70] sm:$0xf]
      %v2560 = vld [vmem:[%s301 + $0x74] sm:$0xf]
      %v2561 = vld [vmem:[%s301 + $0x78] sm:$0xf]
      %v2562 = vld [vmem:[%s301 + $0x7c] sm:$0xf]
      %v2563 = vld [vmem:[%s301 + $0x80] sm:$0xf]
      %v2564 = vld [vmem:[%s301 + $0x84] sm:$0xf]
      %v2565 = vld [vmem:[%s301 + $0x88] sm:$0xf]
      %v2566 = vld [vmem:[%s301 + $0x8c] sm:$0xf]
      %v2567 = vld [vmem:[%s301 + $0x90] sm:$0xf]
      %v2568 = vld [vmem:[%s301 + $0x94] sm:$0xf]
      %v2569 = vld [vmem:[%s301 + $0x98] sm:$0xf]
      %v2570 = vld [vmem:[%s301 + $0x9c] sm:$0xf]
      %v2571 = vld [vmem:[%s301 + $0xa0] sm:$0x7]
      %v2609 = vunpack.c.l.b16 %v2535
      %v2610 = vunpack.c.l.b16 %v2536
      %v2611 = vunpack.c.l.b16 %v2537
      %v2612 = vunpack.c.l.b16 %v2538
      %v2613 = vunpack.c.l.b16 %v2539
      %v2614 = vunpack.c.l.b16 %v2540
      %v2615 = vunpack.c.l.b16 %v2541
      %v2616 = vunpack.c.l.b16 %v2542
      %v2617 = vunpack.c.l.b16 %v2543
      %v2618 = vunpack.c.l.b16 %v2544
      %v2619 = vunpack.c.l.b16 %v2545
      %v2620 = vunpack.c.l.b16 %v2546
      %v2621 = vunpack.c.l.b16 %v2547
      %v2622 = vunpack.c.l.b16 %v2548
      %v2623 = vunpack.c.l.b16 %v2549
      %v2624 = vunpack.c.l.b16 %v2550
      %v2625 = vunpack.c.l.b16 %v2551
      %v2626 = vunpack.c.l.b16 %v2552
      %v2627 = vunpack.c.l.b16 %v2553
      %v2628 = vunpack.c.l.b16 %v2554
      %v2629 = vunpack.c.l.b16 %v2555
      %v2630 = vunpack.c.l.b16 %v2556
      %v2631 = vunpack.c.l.b16 %v2557
      %v2632 = vunpack.c.l.b16 %v2558
      %v2633 = vunpack.c.l.b16 %v2559
      %v2634 = vunpack.c.l.b16 %v2560
      %v2635 = vunpack.c.l.b16 %v2561
      %v2636 = vunpack.c.l.b16 %v2562
      %v2637 = vunpack.c.l.b16 %v2563
      %v2638 = vunpack.c.l.b16 %v2564
      %v2639 = vunpack.c.l.b16 %v2565
      %v2640 = vunpack.c.l.b16 %v2566
      %v2641 = vunpack.c.l.b16 %v2567
      %v2642 = vunpack.c.l.b16 %v2568
      %v2643 = vunpack.c.l.b16 %v2569
      %v2644 = vunpack.c.l.b16 %v2570
      %v2645 = vunpack.c.l.b16 %v2571
      %v2646 = vpack.c.b16 %v2610, %v2609
      %v2647 = vpack.c.b16 %v2612, %v2611
      %v2648 = vpack.c.b16 %v2614, %v2613
      %v2649 = vpack.c.b16 %v2616, %v2615
      %v2650 = vpack.c.b16 %v2618, %v2617
      %v2651 = vpack.c.b16 %v2620, %v2619
      %v2652 = vpack.c.b16 %v2622, %v2621
      %v2653 = vpack.c.b16 %v2624, %v2623
      %v2654 = vpack.c.b16 %v2626, %v2625
      %v2655 = vpack.c.b16 %v2628, %v2627
      %v2656 = vpack.c.b16 %v2630, %v2629
      %v2657 = vpack.c.b16 %v2632, %v2631
      %v2658 = vpack.c.b16 %v2634, %v2633
      %v2659 = vpack.c.b16 %v2636, %v2635
      %v2660 = vpack.c.b16 %v2638, %v2637
      %v2661 = vpack.c.b16 %v2640, %v2639
      %v2662 = vpack.c.b16 %v2642, %v2641
      %v2663 = vpack.c.b16 %v2644, %v2643
      %v2664 = vpack.c.b16 %v2645, %v2645
      %vm2665 = vcmask 1044480
      %v2666 = vrot.slane %v2646, 3
      %v2667 = vrot.slane %v2647, 3
      %v2668 = vsel %vm2665, %v2666, %v2667
      %v2669 = vrot.slane %v2648, 3
      %v2670 = vsel %vm2665, %v2667, %v2669
      %v2671 = vrot.slane %v2649, 3
      %v2672 = vsel %vm2665, %v2669, %v2671
      %v2673 = vrot.slane %v2650, 3
      %v2674 = vsel %vm2665, %v2671, %v2673
      %v2675 = vrot.slane %v2651, 3
      %v2676 = vsel %vm2665, %v2673, %v2675
      %v2677 = vrot.slane %v2652, 3
      %v2678 = vsel %vm2665, %v2675, %v2677
      %v2679 = vrot.slane %v2653, 3
      %v2680 = vsel %vm2665, %v2677, %v2679
      %v2681 = vrot.slane %v2654, 3
      %v2682 = vsel %vm2665, %v2679, %v2681
      %v2683 = vrot.slane %v2655, 3
      %v2684 = vsel %vm2665, %v2681, %v2683
      %v2685 = vrot.slane %v2656, 3
      %v2686 = vsel %vm2665, %v2683, %v2685
      %v2687 = vrot.slane %v2657, 3
      %v2688 = vsel %vm2665, %v2685, %v2687
      %v2689 = vrot.slane %v2658, 3
      %v2690 = vsel %vm2665, %v2687, %v2689
      %v2691 = vrot.slane %v2659, 3
      %v2692 = vsel %vm2665, %v2689, %v2691
      %v2693 = vrot.slane %v2660, 3
      %v2694 = vsel %vm2665, %v2691, %v2693
      %v2695 = vrot.slane %v2661, 3
      %v2696 = vsel %vm2665, %v2693, %v2695
      %v2697 = vrot.slane %v2662, 3
      %v2698 = vsel %vm2665, %v2695, %v2697
      %v2699 = vrot.slane %v2663, 3
      %v2700 = vsel %vm2665, %v2697, %v2699
      %v2701 = vrot.slane %v2664, 3
      %v2702 = vsel %vm2665, %v2699, %v2701
      %2703 = vrot.lane.b32.xlu0 %v2668, 32
      %v2704 = vpop.permute.xlu0 %2703
      %2705 = vrot.lane.b32.xlu0 %v2670, 32
      %v2706 = vpop.permute.xlu0 %2705
      %2707 = vrot.lane.b32.xlu0 %v2672, 32
      %v2708 = vpop.permute.xlu0 %2707
      %2709 = vrot.lane.b32.xlu0 %v2674, 32
      %v2710 = vpop.permute.xlu0 %2709
      %2711 = vrot.lane.b32.xlu0 %v2676, 32
      %v2712 = vpop.permute.xlu0 %2711
      %2713 = vrot.lane.b32.xlu0 %v2678, 32
      %v2714 = vpop.permute.xlu0 %2713
      %2715 = vrot.lane.b32.xlu0 %v2680, 32
      %v2716 = vpop.permute.xlu0 %2715
      %2717 = vrot.lane.b32.xlu0 %v2682, 32
      %v2718 = vpop.permute.xlu0 %2717
      %2719 = vrot.lane.b32.xlu0 %v2684, 32
      %v2720 = vpop.permute.xlu0 %2719
      %2721 = vrot.lane.b32.xlu0 %v2686, 32
      %v2722 = vpop.permute.xlu0 %2721
      %2723 = vrot.lane.b32.xlu0 %v2688, 32
      %v2724 = vpop.permute.xlu0 %2723
      %2725 = vrot.lane.b32.xlu0 %v2690, 32
      %v2726 = vpop.permute.xlu0 %2725
      %2727 = vrot.lane.b32.xlu0 %v2692, 32
      %v2728 = vpop.permute.xlu0 %2727
      %2729 = vrot.lane.b32.xlu0 %v2694, 32
      %v2730 = vpop.permute.xlu0 %2729
      %2731 = vrot.lane.b32.xlu0 %v2696, 32
      %v2732 = vpop.permute.xlu0 %2731
      %2733 = vrot.lane.b32.xlu0 %v2698, 32
      %v2734 = vpop.permute.xlu0 %2733
      %2735 = vrot.lane.b32.xlu0 %v2700, 32
      %v2736 = vpop.permute.xlu0 %2735
      %2737 = vrot.lane.b32.xlu0 %v2702, 32
      %v2738 = vpop.permute.xlu0 %2737
      %vm2757 = vcmask 294144
      %2758 = vst.msk [vmem:[#allocation2] sm:$0xff] %vm2757, %v2704
      %2759 = vst.msk [vmem:[#allocation2 + $0x8] sm:$0xff] %vm2757, %v2706
      %2760 = vst.msk [vmem:[#allocation2 + $0x10] sm:$0xff] %vm2757, %v2708
      %2761 = vst.msk [vmem:[#allocation2 + $0x18] sm:$0xff] %vm2757, %v2710
      %2762 = vst.msk [vmem:[#allocation2 + $0x20] sm:$0xff] %vm2757, %v2712
      %2763 = vst.msk [vmem:[#allocation2 + $0x28] sm:$0xff] %vm2757, %v2714
      %2764 = vst.msk [vmem:[#allocation2 + $0x30] sm:$0xff] %vm2757, %v2716
      %2765 = vst.msk [vmem:[#allocation2 + $0x38] sm:$0xff] %vm2757, %v2718
      %2766 = vst.msk [vmem:[#allocation2 + $0x40] sm:$0xff] %vm2757, %v2720
      %2767 = vst.msk [vmem:[#allocation2 + $0x48] sm:$0xff] %vm2757, %v2722
      %2768 = vst.msk [vmem:[#allocation2 + $0x50] sm:$0xff] %vm2757, %v2724
      %2769 = vst.msk [vmem:[#allocation2 + $0x58] sm:$0xff] %vm2757, %v2726
      %2770 = vst.msk [vmem:[#allocation2 + $0x60] sm:$0xff] %vm2757, %v2728
      %2771 = vst.msk [vmem:[#allocation2 + $0x68] sm:$0xff] %vm2757, %v2730
      %2772 = vst.msk [vmem:[#allocation2 + $0x70] sm:$0xff] %vm2757, %v2732
      %2773 = vst.msk [vmem:[#allocation2 + $0x78] sm:$0xff] %vm2757, %v2734
      %2774 = vst.msk [vmem:[#allocation2 + $0x80] sm:$0xff] %vm2757, %v2736
      %2775 = vst.msk [vmem:[#allocation2 + $0x88] sm:$0xff] %vm2757, %v2738
      %v2776 = vld [vmem:[#allocation2] sm:$0xff]
      %v2777 = vld [vmem:[#allocation2 + $0x8] sm:$0xff]
      %v2778 = vld [vmem:[#allocation2 + $0x10] sm:$0xff]
      %v2779 = vld [vmem:[#allocation2 + $0x18] sm:$0xff]
      %v2780 = vld [vmem:[#allocation2 + $0x20] sm:$0xff]
      %v2781 = vld [vmem:[#allocation2 + $0x28] sm:$0xff]
      %v2782 = vld [vmem:[#allocation2 + $0x30] sm:$0xff]
      %v2783 = vld [vmem:[#allocation2 + $0x38] sm:$0xff]
      %v2784 = vld [vmem:[#allocation2 + $0x40] sm:$0xff]
      %v2785 = vld [vmem:[#allocation2 + $0x48] sm:$0xff]
      %v2786 = vld [vmem:[#allocation2 + $0x50] sm:$0xff]
      %v2787 = vld [vmem:[#allocation2 + $0x58] sm:$0xff]
      %v2788 = vld [vmem:[#allocation2 + $0x60] sm:$0xff]
      %v2789 = vld [vmem:[#allocation2 + $0x68] sm:$0xff]
      %v2790 = vld [vmem:[#allocation2 + $0x70] sm:$0xff]
      %v2791 = vld [vmem:[#allocation2 + $0x78] sm:$0xff]
      %v2792 = vld [vmem:[#allocation2 + $0x80] sm:$0xff]
      %v2793 = vld [vmem:[#allocation2 + $0x88] sm:$0xff]
      %v2794 = vld [vmem:[%s2] sm:$0xf]
      %v2795 = vld [vmem:[%s2 + $0x4] sm:$0xf]
      %v2796 = vld [vmem:[%s2 + $0x8] sm:$0xf]
      %v2797 = vld [vmem:[%s2 + $0xc] sm:$0xf]
      %v2798 = vld [vmem:[%s2 + $0x10] sm:$0x3]
      %v2804 = vunpack.c.l.b16 %v2794
      %v2805 = vunpack.c.l.b16 %v2795
      %v2806 = vunpack.c.l.b16 %v2796
      %v2807 = vunpack.c.l.b16 %v2797
      %v2808 = vunpack.c.l.b16 %v2798
      %v2809 = vpack.c.b16 %v2805, %v2804
      %v2810 = vpack.c.b16 %v2807, %v2806
      %v2811 = vpack.c.b16 %v2808, %v2808
      %vm2814 = vcmask 293888
      %v2816 = vsel %vm2814, %v2776, 0
      %v2819 = vsel %vm2814, %v2777, 0
      %v2822 = vsel %vm2814, %v2778, 0
      %v2825 = vsel %vm2814, %v2779, 0
      %v2828 = vsel %vm2814, %v2780, 0
      %v2831 = vsel %vm2814, %v2781, 0
      %v2834 = vsel %vm2814, %v2782, 0
      %v2837 = vsel %vm2814, %v2783, 0
      %v2840 = vsel %vm2814, %v2784, 0
      %v2843 = vsel %vm2814, %v2785, 0
      %v2846 = vsel %vm2814, %v2786, 0
      %v2849 = vsel %vm2814, %v2787, 0
      %v2852 = vsel %vm2814, %v2788, 0
      %v2855 = vsel %vm2814, %v2789, 0
      %v2858 = vsel %vm2814, %v2790, 0
      %v2861 = vsel %vm2814, %v2791, 0
      %v2864 = vsel %vm2814, %v2792, 0
      %v2867 = vsel %vm2814, %v2793, 0
      %vm2869 = vcmask 1041408
      %v2871 = vsel %vm2869, %v2811, 0
      %2873 = vmatprep.subr.bf16.mxu0 0
      %2874 = vmatpush1.bf16.msra.mxu0 %v2809
      %2875 = vmatprep.subr.bf16.mxu0 0
      %2876 = vmatpush1.bf16.msra.mxu0 %v2810
      %2877 = vmatprep.subr.bf16.mxu0 0
      %2878 = vmatpush1.bf16.msra.mxu0 %v2871
      %2879 = vmatprep.subr.bf16.mxu0 0
      %2880 = vmatpush1.bf16.msra.mxu0 0
      %2881 = vmatprep.subr.bf16.mxu0 0
      %2882 = vmatpush1.bf16.msra.mxu0 0
      %2883 = vmatprep.subr.bf16.mxu0 0
      %2884 = vmatpush1.bf16.msra.mxu0 0
      %2885 = vmatprep.subr.bf16.mxu0 0
      %2886 = vmatpush1.bf16.msra.mxu0 0
      %2887 = vmatprep.subr.bf16.mxu0 0
      %2888 = vmatpush1.bf16.msra.mxu0 0
      %2889 = vmatprep.subr.bf16.mxu0 0
      %2890 = vmatpush1.bf16.msra.mxu0 0
      %2891 = vmatprep.subr.bf16.mxu0 0
      %2892 = vmatpush1.bf16.msra.mxu0 0
      %2893 = vmatprep.subr.bf16.mxu0 0
      %2894 = vmatpush1.bf16.msra.mxu0 0
      %2895 = vmatprep.subr.bf16.mxu0 0
      %2896 = vmatpush1.bf16.msra.mxu0 0
      %2897 = vmatprep.subr.bf16.mxu0 0
      %2898 = vmatpush1.bf16.msra.mxu0 0
      %2899 = vmatprep.subr.bf16.mxu0 0
      %2900 = vmatpush1.bf16.msra.mxu0 0
      %2901 = vmatprep.subr.bf16.mxu0 0
      %2902 = vmatpush1.bf16.msra.mxu0 0
      %2903 = vmatprep.subr.bf16.mxu0 0
      %2904 = vmatpush1.bf16.msra.mxu0 0
      %2905 = vmatprep.mubr.bf16.mxu0 0
      %2906 = vmatmul.mubr.bf16.gmra.mrb[0].mxu0 %v2816
      %v2907 = vpop.f32.mrb[0].mxu0
      %v2908 = vadd.f32 0.0, %v2907
      %v2909 = vpop.f32.mrb[0].mxu0
      %v2910 = vpop.f32.mrb[0].mxu0
      %v2911 = vadd.f32 0.0, %v2910
      %v2912 = vpop.f32.mrb[0].mxu0
      %2913 = vmatprep.mubr.bf16.mxu0 0
      %2914 = vmatmul.mubr.bf16.gmra.mrb[0].mxu0 %v2819
      %v2915 = vpop.f32.mrb[0].mxu0
      %v2916 = vadd.f32 0.0, %v2915
      %v2917 = vpop.f32.mrb[0].mxu0
      %v2918 = vpop.f32.mrb[0].mxu0
      %v2919 = vadd.f32 0.0, %v2918
      %v2920 = vpop.f32.mrb[0].mxu0
      %2921 = vmatprep.mubr.bf16.mxu0 0
      %2922 = vmatmul.mubr.bf16.gmra.mrb[0].mxu0 %v2822
      %v2923 = vpop.f32.mrb[0].mxu0
      %v2924 = vadd.f32 0.0, %v2923
      %v2925 = vpop.f32.mrb[0].mxu0
      %v2926 = vpop.f32.mrb[0].mxu0
      %v2927 = vadd.f32 0.0, %v2926
      %v2928 = vpop.f32.mrb[0].mxu0
      %2929 = vmatprep.mubr.bf16.mxu0 0
      %2930 = vmatmul.mubr.bf16.gmra.mrb[0].mxu0 %v2825
      %v2931 = vpop.f32.mrb[0].mxu0
      %v2932 = vadd.f32 0.0, %v2931
      %v2933 = vpop.f32.mrb[0].mxu0
      %v2934 = vpop.f32.mrb[0].mxu0
      %v2935 = vadd.f32 0.0, %v2934
      %v2936 = vpop.f32.mrb[0].mxu0
      %2937 = vmatprep.mubr.bf16.mxu0 0
      %2938 = vmatmul.mubr.bf16.gmra.mrb[0].mxu0 %v2828
      %v2939 = vpop.f32.mrb[0].mxu0
      %v2940 = vadd.f32 0.0, %v2939
      %v2941 = vpop.f32.mrb[0].mxu0
      %v2942 = vpop.f32.mrb[0].mxu0
      %v2943 = vadd.f32 0.0, %v2942
      %v2944 = vpop.f32.mrb[0].mxu0
      %2945 = vmatprep.mubr.bf16.mxu0 0
      %2946 = vmatmul.mubr.bf16.gmra.mrb[0].mxu0 %v2831
      %v2947 = vpop.f32.mrb[0].mxu0
      %v2948 = vadd.f32 0.0, %v2947
      %v2949 = vpop.f32.mrb[0].mxu0
      %v2950 = vpop.f32.mrb[0].mxu0
      %v2951 = vadd.f32 0.0, %v2950
      %v2952 = vpop.f32.mrb[0].mxu0
      %2953 = vmatprep.mubr.bf16.mxu0 0
      %2954 = vmatmul.mubr.bf16.gmra.mrb[0].mxu0 %v2834
      %v2955 = vpop.f32.mrb[0].mxu0
      %v2956 = vadd.f32 0.0, %v2955
      %v2957 = vpop.f32.mrb[0].mxu0
      %v2958 = vpop.f32.mrb[0].mxu0
      %v2959 = vadd.f32 0.0, %v2958
      %v2960 = vpop.f32.mrb[0].mxu0
      %2961 = vmatprep.mubr.bf16.mxu0 0
      %2962 = vmatmul.mubr.bf16.gmra.mrb[0].mxu0 %v2837
      %v2963 = vpop.f32.mrb[0].mxu0
      %v2964 = vadd.f32 0.0, %v2963
      %v2965 = vpop.f32.mrb[0].mxu0
      %v2966 = vpop.f32.mrb[0].mxu0
      %v2967 = vadd.f32 0.0, %v2966
      %v2968 = vpop.f32.mrb[0].mxu0
      %2969 = vmatprep.mubr.bf16.mxu0 0
      %2970 = vmatmul.mubr.bf16.gmra.mrb[0].mxu0 %v2840
      %v2971 = vpop.f32.mrb[0].mxu0
      %v2972 = vadd.f32 0.0, %v2971
      %v2973 = vpop.f32.mrb[0].mxu0
      %v2974 = vpop.f32.mrb[0].mxu0
      %v2975 = vadd.f32 0.0, %v2974
      %v2976 = vpop.f32.mrb[0].mxu0
      %2977 = vmatprep.mubr.bf16.mxu0 0
      %2978 = vmatmul.mubr.bf16.gmra.mrb[0].mxu0 %v2843
      %v2979 = vpop.f32.mrb[0].mxu0
      %v2980 = vadd.f32 0.0, %v2979
      %v2981 = vpop.f32.mrb[0].mxu0
      %v2982 = vpop.f32.mrb[0].mxu0
      %v2983 = vadd.f32 0.0, %v2982
      %v2984 = vpop.f32.mrb[0].mxu0
      %2985 = vmatprep.mubr.bf16.mxu0 0
      %2986 = vmatmul.mubr.bf16.gmra.mrb[0].mxu0 %v2846
      %v2987 = vpop.f32.mrb[0].mxu0
      %v2988 = vadd.f32 0.0, %v2987
      %v2989 = vpop.f32.mrb[0].mxu0
      %v2990 = vpop.f32.mrb[0].mxu0
      %v2991 = vadd.f32 0.0, %v2990
      %v2992 = vpop.f32.mrb[0].mxu0
      %2993 = vmatprep.mubr.bf16.mxu0 0
      %2994 = vmatmul.mubr.bf16.gmra.mrb[0].mxu0 %v2849
      %v2995 = vpop.f32.mrb[0].mxu0
      %v2996 = vadd.f32 0.0, %v2995
      %v2997 = vpop.f32.mrb[0].mxu0
      %v2998 = vpop.f32.mrb[0].mxu0
      %v2999 = vadd.f32 0.0, %v2998
      %v3000 = vpop.f32.mrb[0].mxu0
      %3001 = vmatprep.mubr.bf16.mxu0 0
      %3002 = vmatmul.mubr.bf16.gmra.mrb[0].mxu0 %v2852
      %v3003 = vpop.f32.mrb[0].mxu0
      %v3004 = vadd.f32 0.0, %v3003
      %v3005 = vpop.f32.mrb[0].mxu0
      %v3006 = vpop.f32.mrb[0].mxu0
      %v3007 = vadd.f32 0.0, %v3006
      %v3008 = vpop.f32.mrb[0].mxu0
      %3009 = vmatprep.mubr.bf16.mxu0 0
      %3010 = vmatmul.mubr.bf16.gmra.mrb[0].mxu0 %v2855
      %v3011 = vpop.f32.mrb[0].mxu0
      %v3012 = vadd.f32 0.0, %v3011
      %v3013 = vpop.f32.mrb[0].mxu0
      %v3014 = vpop.f32.mrb[0].mxu0
      %v3015 = vadd.f32 0.0, %v3014
      %v3016 = vpop.f32.mrb[0].mxu0
      %3017 = vmatprep.mubr.bf16.mxu0 0
      %3018 = vmatmul.mubr.bf16.gmra.mrb[0].mxu0 %v2858
      %v3019 = vpop.f32.mrb[0].mxu0
      %v3020 = vadd.f32 0.0, %v3019
      %v3021 = vpop.f32.mrb[0].mxu0
      %v3022 = vpop.f32.mrb[0].mxu0
      %v3023 = vadd.f32 0.0, %v3022
      %v3024 = vpop.f32.mrb[0].mxu0
      %3025 = vmatprep.mubr.bf16.mxu0 0
      %3026 = vmatmul.mubr.bf16.gmra.mrb[0].mxu0 %v2861
      %v3027 = vpop.f32.mrb[0].mxu0
      %v3028 = vadd.f32 0.0, %v3027
      %v3029 = vpop.f32.mrb[0].mxu0
      %v3030 = vpop.f32.mrb[0].mxu0
      %v3031 = vadd.f32 0.0, %v3030
      %v3032 = vpop.f32.mrb[0].mxu0
      %3033 = vmatprep.mubr.bf16.mxu0 0
      %3034 = vmatmul.mubr.bf16.gmra.mrb[0].mxu0 %v2864
      %v3035 = vpop.f32.mrb[0].mxu0
      %v3036 = vadd.f32 0.0, %v3035
      %v3037 = vpop.f32.mrb[0].mxu0
      %v3038 = vpop.f32.mrb[0].mxu0
      %v3039 = vadd.f32 0.0, %v3038
      %v3040 = vpop.f32.mrb[0].mxu0
      %3041 = vmatprep.mubr.bf16.mxu0 0
      %3042 = vmatmul.mubr.bf16.gmra.mrb[0].mxu0 %v2867
      %v3043 = vpop.f32.mrb[0].mxu0
      %v3044 = vadd.f32 0.0, %v3043
      %v3045 = vpop.f32.mrb[0].mxu0
      %v3046 = vpop.f32.mrb[0].mxu0
      %v3047 = vadd.f32 0.0, %v3046
      %v3048 = vpop.f32.mrb[0].mxu0
      %3049 = vdwg.mxu0
      %v3050 = vld [vmem:[%s3] sm:$0x1]
      %v3052 = vlaneseq
      %v3053 = vshrl.u32 %v3052, 7
      %v3054 = vsub.s32 0, %v3053
      %v3055 = vrot.slane %v3050, %v3054
      %v3057 = vmul.f32 %v2908, %v3055
      %v3058 = vmul.f32 %v2911, %v3055
      %v3059 = vmul.f32 %v2916, %v3055
      %v3060 = vmul.f32 %v2919, %v3055
      %v3061 = vmul.f32 %v2924, %v3055
      %v3062 = vmul.f32 %v2927, %v3055
      %v3063 = vmul.f32 %v2932, %v3055
      %v3064 = vmul.f32 %v2935, %v3055
      %v3065 = vmul.f32 %v2940, %v3055
      %v3066 = vmul.f32 %v2943, %v3055
      %v3067 = vmul.f32 %v2948, %v3055
      %v3068 = vmul.f32 %v2951, %v3055
      %v3069 = vmul.f32 %v2956, %v3055
      %v3070 = vmul.f32 %v2959, %v3055
      %v3071 = vmul.f32 %v2964, %v3055
      %v3072 = vmul.f32 %v2967, %v3055
      %v3073 = vmul.f32 %v2972, %v3055
      %v3074 = vmul.f32 %v2975, %v3055
      %v3075 = vmul.f32 %v2980, %v3055
      %v3076 = vmul.f32 %v2983, %v3055
      %v3077 = vmul.f32 %v2988, %v3055
      %v3078 = vmul.f32 %v2991, %v3055
      %v3079 = vmul.f32 %v2996, %v3055
      %v3080 = vmul.f32 %v2999, %v3055
      %v3081 = vmul.f32 %v3004, %v3055
      %v3082 = vmul.f32 %v3007, %v3055
      %v3083 = vmul.f32 %v3012, %v3055
      %v3084 = vmul.f32 %v3015, %v3055
      %v3085 = vmul.f32 %v3020, %v3055
      %v3086 = vmul.f32 %v3023, %v3055
      %v3087 = vmul.f32 %v3028, %v3055
      %v3088 = vmul.f32 %v3031, %v3055
      %v3089 = vmul.f32 %v3036, %v3055
      %v3090 = vmul.f32 %v3039, %v3055
      %v3091 = vmul.f32 %v3044, %v3055
      %v3092 = vmul.f32 %v3047, %v3055
      %v3093 = vld [vmem:[%s4] sm:$0x1]
      %v3095 = vlaneseq
      %v3096 = vshrl.u32 %v3095, 7
      %v3097 = vsub.s32 0, %v3096
      %v3098 = vrot.slane %v3093, %v3097
      %v3100 = vadd.f32 %v3057, %v3098
      %v3101 = vadd.f32 %v3058, %v3098
      %v3102 = vadd.f32 %v3059, %v3098
      %v3103 = vadd.f32 %v3060, %v3098
      %v3104 = vadd.f32 %v3061, %v3098
      %v3105 = vadd.f32 %v3062, %v3098
      %v3106 = vadd.f32 %v3063, %v3098
      %v3107 = vadd.f32 %v3064, %v3098
      %v3108 = vadd.f32 %v3065, %v3098
      %v3109 = vadd.f32 %v3066, %v3098
      %v3110 = vadd.f32 %v3067, %v3098
      %v3111 = vadd.f32 %v3068, %v3098
      %v3112 = vadd.f32 %v3069, %v3098
      %v3113 = vadd.f32 %v3070, %v3098
      %v3114 = vadd.f32 %v3071, %v3098
      %v3115 = vadd.f32 %v3072, %v3098
      %v3116 = vadd.f32 %v3073, %v3098
      %v3117 = vadd.f32 %v3074, %v3098
      %v3118 = vadd.f32 %v3075, %v3098
      %v3119 = vadd.f32 %v3076, %v3098
      %v3120 = vadd.f32 %v3077, %v3098
      %v3121 = vadd.f32 %v3078, %v3098
      %v3122 = vadd.f32 %v3079, %v3098
      %v3123 = vadd.f32 %v3080, %v3098
      %v3124 = vadd.f32 %v3081, %v3098
      %v3125 = vadd.f32 %v3082, %v3098
      %v3126 = vadd.f32 %v3083, %v3098
      %v3127 = vadd.f32 %v3084, %v3098
      %v3128 = vadd.f32 %v3085, %v3098
      %v3129 = vadd.f32 %v3086, %v3098
      %v3130 = vadd.f32 %v3087, %v3098
      %v3131 = vadd.f32 %v3088, %v3098
      %v3132 = vadd.f32 %v3089, %v3098
      %v3133 = vadd.f32 %v3090, %v3098
      %v3134 = vadd.f32 %v3091, %v3098
      %v3135 = vadd.f32 %v3092, %v3098
      %v3136 = vmax.f32 %v3100, 0.0
      %v3137 = vmax.f32 %v3101, 0.0
      %v3138 = vmax.f32 %v3102, 0.0
      %v3139 = vmax.f32 %v3103, 0.0
      %v3140 = vmax.f32 %v3104, 0.0
      %v3141 = vmax.f32 %v3105, 0.0
      %v3142 = vmax.f32 %v3106, 0.0
      %v3143 = vmax.f32 %v3107, 0.0
      %v3144 = vmax.f32 %v3108, 0.0
      %v3145 = vmax.f32 %v3109, 0.0
      %v3146 = vmax.f32 %v3110, 0.0
      %v3147 = vmax.f32 %v3111, 0.0
      %v3148 = vmax.f32 %v3112, 0.0
      %v3149 = vmax.f32 %v3113, 0.0
      %v3150 = vmax.f32 %v3114, 0.0
      %v3151 = vmax.f32 %v3115, 0.0
      %v3152 = vmax.f32 %v3116, 0.0
      %v3153 = vmax.f32 %v3117, 0.0
      %v3154 = vmax.f32 %v3118, 0.0
      %v3155 = vmax.f32 %v3119, 0.0
      %v3156 = vmax.f32 %v3120, 0.0
      %v3157 = vmax.f32 %v3121, 0.0
      %v3158 = vmax.f32 %v3122, 0.0
      %v3159 = vmax.f32 %v3123, 0.0
      %v3160 = vmax.f32 %v3124, 0.0
      %v3161 = vmax.f32 %v3125, 0.0
      %v3162 = vmax.f32 %v3126, 0.0
      %v3163 = vmax.f32 %v3127, 0.0
      %v3164 = vmax.f32 %v3128, 0.0
      %v3165 = vmax.f32 %v3129, 0.0
      %v3166 = vmax.f32 %v3130, 0.0
      %v3167 = vmax.f32 %v3131, 0.0
      %v3168 = vmax.f32 %v3132, 0.0
      %v3169 = vmax.f32 %v3133, 0.0
      %v3170 = vmax.f32 %v3134, 0.0
      %v3171 = vmax.f32 %v3135, 0.0
      %v3172 = vld [vmem:[%s0] sm:$0xff]
      %v3173 = vld [vmem:[%s0 + $0x8] sm:$0xff]
      %v3174 = vld [vmem:[%s0 + $0x10] sm:$0xff]
      %v3175 = vld [vmem:[%s0 + $0x18] sm:$0xff]
      %v3176 = vld [vmem:[%s0 + $0x20] sm:$0xff]
      %v3177 = vld [vmem:[%s0 + $0x28] sm:$0xff]
      %v3178 = vld [vmem:[%s0 + $0x30] sm:$0xff]
      %v3179 = vld [vmem:[%s0 + $0x38] sm:$0xff]
      %v3180 = vld [vmem:[%s0 + $0x40] sm:$0xff]
      %v3181 = vld [vmem:[%s0 + $0x48] sm:$0xff]
      %v3182 = vld [vmem:[%s0 + $0x50] sm:$0xff]
      %v3183 = vld [vmem:[%s0 + $0x58] sm:$0xff]
      %v3184 = vld [vmem:[%s0 + $0x60] sm:$0xff]
      %v3185 = vld [vmem:[%s0 + $0x68] sm:$0xff]
      %v3186 = vld [vmem:[%s0 + $0x70] sm:$0xff]
      %v3187 = vld [vmem:[%s0 + $0x78] sm:$0xff]
      %v3188 = vld [vmem:[%s0 + $0x80] sm:$0xff]
      %v3189 = vld [vmem:[%s0 + $0x88] sm:$0xff]
      %v3190 = vld [vmem:[%s0 + $0x90] sm:$0xff]
      %v3191 = vld [vmem:[%s0 + $0x98] sm:$0xff]
      %v3192 = vld [vmem:[%s0 + $0xa0] sm:$0xff]
      %v3193 = vld [vmem:[%s0 + $0xa8] sm:$0xff]
      %v3194 = vld [vmem:[%s0 + $0xb0] sm:$0xff]
      %v3195 = vld [vmem:[%s0 + $0xb8] sm:$0xff]
      %v3196 = vld [vmem:[%s0 + $0xc0] sm:$0xff]
      %v3197 = vld [vmem:[%s0 + $0xc8] sm:$0xff]
      %v3198 = vld [vmem:[%s0 + $0xd0] sm:$0xff]
      %v3199 = vld [vmem:[%s0 + $0xd8] sm:$0xff]
      %v3200 = vld [vmem:[%s0 + $0xe0] sm:$0xff]
      %v3201 = vld [vmem:[%s0 + $0xe8] sm:$0xff]
      %v3202 = vld [vmem:[%s0 + $0xf0] sm:$0xff]
      %v3203 = vld [vmem:[%s0 + $0xf8] sm:$0xff]
      %v3204 = vld [vmem:[%s0 + $0x100] sm:$0xff]
      %v3205 = vld [vmem:[%s0 + $0x108] sm:$0xff]
      %v3206 = vld [vmem:[%s0 + $0x110] sm:$0xff]
      %v3207 = vld [vmem:[%s0 + $0x118] sm:$0xff]
      %3209 = vset.pattern.permute.xlu0 0
      %3210 = vperm.xlu0 %3209, %v3172
      %v3211 = vpop.permute.xlu0 %3210
      %3214 = vset.pattern.permute.xlu0 0
      %3215 = vperm.xlu0 %3214, %v3173
      %v3216 = vpop.permute.xlu0 %3215
      %3219 = vset.pattern.permute.xlu0 0
      %3220 = vperm.xlu0 %3219, %v3174
      %v3221 = vpop.permute.xlu0 %3220
      %3224 = vset.pattern.permute.xlu0 0
      %3225 = vperm.xlu0 %3224, %v3175
      %v3226 = vpop.permute.xlu0 %3225
      %3229 = vset.pattern.permute.xlu0 0
      %3230 = vperm.xlu0 %3229, %v3176
      %v3231 = vpop.permute.xlu0 %3230
      %3234 = vset.pattern.permute.xlu0 0
      %3235 = vperm.xlu0 %3234, %v3177
      %v3236 = vpop.permute.xlu0 %3235
      %3239 = vset.pattern.permute.xlu0 0
      %3240 = vperm.xlu0 %3239, %v3178
      %v3241 = vpop.permute.xlu0 %3240
      %3244 = vset.pattern.permute.xlu0 0
      %3245 = vperm.xlu0 %3244, %v3179
      %v3246 = vpop.permute.xlu0 %3245
      %3249 = vset.pattern.permute.xlu0 0
      %3250 = vperm.xlu0 %3249, %v3180
      %v3251 = vpop.permute.xlu0 %3250
      %3254 = vset.pattern.permute.xlu0 0
      %3255 = vperm.xlu0 %3254, %v3181
      %v3256 = vpop.permute.xlu0 %3255
      %3259 = vset.pattern.permute.xlu0 0
      %3260 = vperm.xlu0 %3259, %v3182
      %v3261 = vpop.permute.xlu0 %3260
      %3264 = vset.pattern.permute.xlu0 0
      %3265 = vperm.xlu0 %3264, %v3183
      %v3266 = vpop.permute.xlu0 %3265
      %3269 = vset.pattern.permute.xlu0 0
      %3270 = vperm.xlu0 %3269, %v3184
      %v3271 = vpop.permute.xlu0 %3270
      %3274 = vset.pattern.permute.xlu0 0
      %3275 = vperm.xlu0 %3274, %v3185
      %v3276 = vpop.permute.xlu0 %3275
      %3279 = vset.pattern.permute.xlu0 0
      %3280 = vperm.xlu0 %3279, %v3186
      %v3281 = vpop.permute.xlu0 %3280
      %3284 = vset.pattern.permute.xlu0 0
      %3285 = vperm.xlu0 %3284, %v3187
      %v3286 = vpop.permute.xlu0 %3285
      %3289 = vset.pattern.permute.xlu0 0
      %3290 = vperm.xlu0 %3289, %v3188
      %v3291 = vpop.permute.xlu0 %3290
      %3294 = vset.pattern.permute.xlu0 0
      %3295 = vperm.xlu0 %3294, %v3189
      %v3296 = vpop.permute.xlu0 %3295
      %3299 = vset.pattern.permute.xlu0 0
      %3300 = vperm.xlu0 %3299, %v3190
      %v3301 = vpop.permute.xlu0 %3300
      %3304 = vset.pattern.permute.xlu0 0
      %3305 = vperm.xlu0 %3304, %v3191
      %v3306 = vpop.permute.xlu0 %3305
      %3309 = vset.pattern.permute.xlu0 0
      %3310 = vperm.xlu0 %3309, %v3192
      %v3311 = vpop.permute.xlu0 %3310
      %3314 = vset.pattern.permute.xlu0 0
      %3315 = vperm.xlu0 %3314, %v3193
      %v3316 = vpop.permute.xlu0 %3315
      %3319 = vset.pattern.permute.xlu0 0
      %3320 = vperm.xlu0 %3319, %v3194
      %v3321 = vpop.permute.xlu0 %3320
      %3324 = vset.pattern.permute.xlu0 0
      %3325 = vperm.xlu0 %3324, %v3195
      %v3326 = vpop.permute.xlu0 %3325
      %3329 = vset.pattern.permute.xlu0 0
      %3330 = vperm.xlu0 %3329, %v3196
      %v3331 = vpop.permute.xlu0 %3330
      %3334 = vset.pattern.permute.xlu0 0
      %3335 = vperm.xlu0 %3334, %v3197
      %v3336 = vpop.permute.xlu0 %3335
      %3339 = vset.pattern.permute.xlu0 0
      %3340 = vperm.xlu0 %3339, %v3198
      %v3341 = vpop.permute.xlu0 %3340
      %3344 = vset.pattern.permute.xlu0 0
      %3345 = vperm.xlu0 %3344, %v3199
      %v3346 = vpop.permute.xlu0 %3345
      %3349 = vset.pattern.permute.xlu0 0
      %3350 = vperm.xlu0 %3349, %v3200
      %v3351 = vpop.permute.xlu0 %3350
      %3354 = vset.pattern.permute.xlu0 0
      %3355 = vperm.xlu0 %3354, %v3201
      %v3356 = vpop.permute.xlu0 %3355
      %3359 = vset.pattern.permute.xlu0 0
      %3360 = vperm.xlu0 %3359, %v3202
      %v3361 = vpop.permute.xlu0 %3360
      %3364 = vset.pattern.permute.xlu0 0
      %3365 = vperm.xlu0 %3364, %v3203
      %v3366 = vpop.permute.xlu0 %3365
      %3369 = vset.pattern.permute.xlu0 0
      %3370 = vperm.xlu0 %3369, %v3204
      %v3371 = vpop.permute.xlu0 %3370
      %3374 = vset.pattern.permute.xlu0 0
      %3375 = vperm.xlu0 %3374, %v3205
      %v3376 = vpop.permute.xlu0 %3375
      %3379 = vset.pattern.permute.xlu0 0
      %3380 = vperm.xlu0 %3379, %v3206
      %v3381 = vpop.permute.xlu0 %3380
      %3384 = vset.pattern.permute.xlu0 0
      %3385 = vperm.xlu0 %3384, %v3207
      %v3386 = vpop.permute.xlu0 %3385
      %v3388 = vmul.f32 %v3136, %v3211
      %v3389 = vmul.f32 %v3137, %v3216
      %v3390 = vmul.f32 %v3138, %v3221
      %v3391 = vmul.f32 %v3139, %v3226
      %v3392 = vmul.f32 %v3140, %v3231
      %v3393 = vmul.f32 %v3141, %v3236
      %v3394 = vmul.f32 %v3142, %v3241
      %v3395 = vmul.f32 %v3143, %v3246
      %v3396 = vmul.f32 %v3144, %v3251
      %v3397 = vmul.f32 %v3145, %v3256
      %v3398 = vmul.f32 %v3146, %v3261
      %v3399 = vmul.f32 %v3147, %v3266
      %v3400 = vmul.f32 %v3148, %v3271
      %v3401 = vmul.f32 %v3149, %v3276
      %v3402 = vmul.f32 %v3150, %v3281
      %v3403 = vmul.f32 %v3151, %v3286
      %v3404 = vmul.f32 %v3152, %v3291
      %v3405 = vmul.f32 %v3153, %v3296
      %v3406 = vmul.f32 %v3154, %v3301
      %v3407 = vmul.f32 %v3155, %v3306
      %v3408 = vmul.f32 %v3156, %v3311
      %v3409 = vmul.f32 %v3157, %v3316
      %v3410 = vmul.f32 %v3158, %v3321
      %v3411 = vmul.f32 %v3159, %v3326
      %v3412 = vmul.f32 %v3160, %v3331
      %v3413 = vmul.f32 %v3161, %v3336
      %v3414 = vmul.f32 %v3162, %v3341
      %v3415 = vmul.f32 %v3163, %v3346
      %v3416 = vmul.f32 %v3164, %v3351
      %v3417 = vmul.f32 %v3165, %v3356
      %v3418 = vmul.f32 %v3166, %v3361
      %v3419 = vmul.f32 %v3167, %v3366
      %v3420 = vmul.f32 %v3168, %v3371
      %v3421 = vmul.f32 %v3169, %v3376
      %v3422 = vmul.f32 %v3170, %v3381
      %v3423 = vmul.f32 %v3171, %v3386
      %v3424 = vpack.c.bf16 %v3389, %v3388
      %v3425 = vpack.c.bf16 %v3391, %v3390
      %v3426 = vpack.c.bf16 %v3393, %v3392
      %v3427 = vpack.c.bf16 %v3395, %v3394
      %v3428 = vpack.c.bf16 %v3397, %v3396
      %v3429 = vpack.c.bf16 %v3399, %v3398
      %v3430 = vpack.c.bf16 %v3401, %v3400
      %v3431 = vpack.c.bf16 %v3403, %v3402
      %v3432 = vpack.c.bf16 %v3405, %v3404
      %v3433 = vpack.c.bf16 %v3407, %v3406
      %v3434 = vpack.c.bf16 %v3409, %v3408
      %v3435 = vpack.c.bf16 %v3411, %v3410
      %v3436 = vpack.c.bf16 %v3413, %v3412
      %v3437 = vpack.c.bf16 %v3415, %v3414
      %v3438 = vpack.c.bf16 %v3417, %v3416
      %v3439 = vpack.c.bf16 %v3419, %v3418
      %v3440 = vpack.c.bf16 %v3421, %v3420
      %v3441 = vpack.c.bf16 %v3423, %v3422
      %vm3442 = vcmask 64512
      %3443 = vst.msk [vmem:[#allocation3] sm:$0xff] %vm3442, 0
      %3444 = vst.msk [vmem:[#allocation3 + $0x8] sm:$0xff] %vm3442, 0
      %3445 = vst.msk [vmem:[#allocation3 + $0x10] sm:$0xff] %vm3442, 0
      %3446 = vst.msk [vmem:[#allocation3 + $0x18] sm:$0xff] %vm3442, 0
      %3447 = vst.msk [vmem:[#allocation3 + $0x20] sm:$0xff] %vm3442, 0
      %3448 = vst.msk [vmem:[#allocation3 + $0x28] sm:$0xff] %vm3442, 0
      %3449 = vst.msk [vmem:[#allocation3 + $0x30] sm:$0xff] %vm3442, 0
      %3450 = vst.msk [vmem:[#allocation3 + $0x38] sm:$0xff] %vm3442, 0
      %3451 = vst.msk [vmem:[#allocation3 + $0x40] sm:$0xff] %vm3442, 0
      %3452 = vst.msk [vmem:[#allocation3 + $0x48] sm:$0xff] %vm3442, 0
      %3453 = vst.msk [vmem:[#allocation3 + $0x50] sm:$0xff] %vm3442, 0
      %3454 = vst.msk [vmem:[#allocation3 + $0x58] sm:$0xff] %vm3442, 0
      %3455 = vst.msk [vmem:[#allocation3 + $0x60] sm:$0xff] %vm3442, 0
      %3456 = vst.msk [vmem:[#allocation3 + $0x68] sm:$0xff] %vm3442, 0
      %3457 = vst.msk [vmem:[#allocation3 + $0x70] sm:$0xff] %vm3442, 0
      %3458 = vst.msk [vmem:[#allocation3 + $0x78] sm:$0xff] %vm3442, 0
      %3459 = vst.msk [vmem:[#allocation3 + $0x80] sm:$0xff] %vm3442, 0
      %3460 = vst.msk [vmem:[#allocation3 + $0x88] sm:$0xff] %vm3442, 0
      %3461 = vst.msk [vmem:[#allocation3 + $0x90] sm:$0xff] %vm3442, 0
      %3462 = vst.msk [vmem:[#allocation3 + $0x98] sm:$0xff] %vm3442, 0
      %3463 = vst.msk [vmem:[#allocation3 + $0xa0] sm:$0xff] %vm3442, 0
      %vm3464 = vsmask.f32 1280
      %v3466 = vshrl.u32 %v3424, 16
      %v3468 = vrot.slane %v3466, 6
      %v3469 = vshll.u32 %v3424, 16
      %v3471 = vrot.slane %v3469, 7
      %v3472 = vor.u32 %v3468, %v3471
      %v3474 = vshrl.u32 %v3425, 16
      %v3476 = vrot.slane %v3474, 6
      %v3477 = vshll.u32 %v3425, 16
      %v3479 = vrot.slane %v3477, 7
      %v3480 = vor.u32 %v3476, %v3479
      %v3481 = vsel %vm3464, %v3472, %v3480
      %v3483 = vshrl.u32 %v3426, 16
      %v3485 = vrot.slane %v3483, 6
      %v3486 = vshll.u32 %v3426, 16
      %v3488 = vrot.slane %v3486, 7
      %v3489 = vor.u32 %v3485, %v3488
      %v3490 = vsel %vm3464, %v3480, %v3489
      %v3492 = vshrl.u32 %v3427, 16
      %v3494 = vrot.slane %v3492, 6
      %v3495 = vshll.u32 %v3427, 16
      %v3497 = vrot.slane %v3495, 7
      %v3498 = vor.u32 %v3494, %v3497
      %v3499 = vsel %vm3464, %v3489, %v3498
      %v3501 = vshrl.u32 %v3428, 16
      %v3503 = vrot.slane %v3501, 6
      %v3504 = vshll.u32 %v3428, 16
      %v3506 = vrot.slane %v3504, 7
      %v3507 = vor.u32 %v3503, %v3506
      %v3508 = vsel %vm3464, %v3498, %v3507
      %v3510 = vshrl.u32 %v3429, 16
      %v3512 = vrot.slane %v3510, 6
      %v3513 = vshll.u32 %v3429, 16
      %v3515 = vrot.slane %v3513, 7
      %v3516 = vor.u32 %v3512, %v3515
      %v3517 = vsel %vm3464, %v3507, %v3516
      %v3519 = vshrl.u32 %v3430, 16
      %v3521 = vrot.slane %v3519, 6
      %v3522 = vshll.u32 %v3430, 16
      %v3524 = vrot.slane %v3522, 7
      %v3525 = vor.u32 %v3521, %v3524
      %v3526 = vsel %vm3464, %v3516, %v3525
      %v3528 = vshrl.u32 %v3431, 16
      %v3530 = vrot.slane %v3528, 6
      %v3531 = vshll.u32 %v3431, 16
      %v3533 = vrot.slane %v3531, 7
      %v3534 = vor.u32 %v3530, %v3533
      %v3535 = vsel %vm3464, %v3525, %v3534
      %v3537 = vshrl.u32 %v3432, 16
      %v3539 = vrot.slane %v3537, 6
      %v3540 = vshll.u32 %v3432, 16
      %v3542 = vrot.slane %v3540, 7
      %v3543 = vor.u32 %v3539, %v3542
      %v3544 = vsel %vm3464, %v3534, %v3543
      %v3546 = vshrl.u32 %v3433, 16
      %v3548 = vrot.slane %v3546, 6
      %v3549 = vshll.u32 %v3433, 16
      %v3551 = vrot.slane %v3549, 7
      %v3552 = vor.u32 %v3548, %v3551
      %v3553 = vsel %vm3464, %v3543, %v3552
      %v3555 = vshrl.u32 %v3434, 16
      %v3557 = vrot.slane %v3555, 6
      %v3558 = vshll.u32 %v3434, 16
      %v3560 = vrot.slane %v3558, 7
      %v3561 = vor.u32 %v3557, %v3560
      %v3562 = vsel %vm3464, %v3552, %v3561
      %v3564 = vshrl.u32 %v3435, 16
      %v3566 = vrot.slane %v3564, 6
      %v3567 = vshll.u32 %v3435, 16
      %v3569 = vrot.slane %v3567, 7
      %v3570 = vor.u32 %v3566, %v3569
      %v3571 = vsel %vm3464, %v3561, %v3570
      %v3573 = vshrl.u32 %v3436, 16
      %v3575 = vrot.slane %v3573, 6
      %v3576 = vshll.u32 %v3436, 16
      %v3578 = vrot.slane %v3576, 7
      %v3579 = vor.u32 %v3575, %v3578
      %v3580 = vsel %vm3464, %v3570, %v3579
      %v3582 = vshrl.u32 %v3437, 16
      %v3584 = vrot.slane %v3582, 6
      %v3585 = vshll.u32 %v3437, 16
      %v3587 = vrot.slane %v3585, 7
      %v3588 = vor.u32 %v3584, %v3587
      %v3589 = vsel %vm3464, %v3579, %v3588
      %v3591 = vshrl.u32 %v3438, 16
      %v3593 = vrot.slane %v3591, 6
      %v3594 = vshll.u32 %v3438, 16
      %v3596 = vrot.slane %v3594, 7
      %v3597 = vor.u32 %v3593, %v3596
      %v3598 = vsel %vm3464, %v3588, %v3597
      %v3600 = vshrl.u32 %v3439, 16
      %v3602 = vrot.slane %v3600, 6
      %v3603 = vshll.u32 %v3439, 16
      %v3605 = vrot.slane %v3603, 7
      %v3606 = vor.u32 %v3602, %v3605
      %v3607 = vsel %vm3464, %v3597, %v3606
      %v3609 = vshrl.u32 %v3440, 16
      %v3611 = vrot.slane %v3609, 6
      %v3612 = vshll.u32 %v3440, 16
      %v3614 = vrot.slane %v3612, 7
      %v3615 = vor.u32 %v3611, %v3614
      %v3616 = vsel %vm3464, %v3606, %v3615
      %v3618 = vshrl.u32 %v3441, 16
      %v3620 = vrot.slane %v3618, 6
      %v3621 = vshll.u32 %v3441, 16
      %v3623 = vrot.slane %v3621, 7
      %v3624 = vor.u32 %v3620, %v3623
      %v3625 = vsel %vm3464, %v3615, %v3624
      %vm3645 = vcmask 64513
      %vm3646 = vsmask.f32 7942
      %vm3647 = vmand %vm3645, %vm3646
      %v3648 = vld [vmem:[#allocation3 + $0x8] sm:$0xfe]
      %v3649 = vsel %vm3647, %v3472, %v3648
      %3650 = vst [vmem:[#allocation3 + $0x8] sm:$0xfe] %v3649
      %3651 = vst.msk [vmem:[#allocation3 + $0x10] sm:$0xff] %vm3442, %v3481
      %3652 = vst.msk [vmem:[#allocation3 + $0x18] sm:$0xff] %vm3442, %v3490
      %3653 = vst.msk [vmem:[#allocation3 + $0x20] sm:$0xff] %vm3442, %v3499
      %3654 = vst.msk [vmem:[#allocation3 + $0x28] sm:$0xff] %vm3442, %v3508
      %3655 = vst.msk [vmem:[#allocation3 + $0x30] sm:$0xff] %vm3442, %v3517
      %3656 = vst.msk [vmem:[#allocation3 + $0x38] sm:$0xff] %vm3442, %v3526
      %3657 = vst.msk [vmem:[#allocation3 + $0x40] sm:$0xff] %vm3442, %v3535
      %3658 = vst.msk [vmem:[#allocation3 + $0x48] sm:$0xff] %vm3442, %v3544
      %3659 = vst.msk [vmem:[#allocation3 + $0x50] sm:$0xff] %vm3442, %v3553
      %3660 = vst.msk [vmem:[#allocation3 + $0x58] sm:$0xff] %vm3442, %v3562
      %3661 = vst.msk [vmem:[#allocation3 + $0x60] sm:$0xff] %vm3442, %v3571
      %3662 = vst.msk [vmem:[#allocation3 + $0x68] sm:$0xff] %vm3442, %v3580
      %3663 = vst.msk [vmem:[#allocation3 + $0x70] sm:$0xff] %vm3442, %v3589
      %3664 = vst.msk [vmem:[#allocation3 + $0x78] sm:$0xff] %vm3442, %v3598
      %3665 = vst.msk [vmem:[#allocation3 + $0x80] sm:$0xff] %vm3442, %v3607
      %3666 = vst.msk [vmem:[#allocation3 + $0x88] sm:$0xff] %vm3442, %v3616
      %3667 = vst.msk [vmem:[#allocation3 + $0x90] sm:$0xff] %vm3442, %v3625
      %vm3668 = vcmask 58368
      %vm3669 = vmand %vm3668, %vm3464
      %v3670 = vld [vmem:[#allocation3 + $0x98] sm:$0x3]
      %v3671 = vsel %vm3669, %v3624, %v3670
      %3672 = vst [vmem:[#allocation3 + $0x98] sm:$0x3] %v3671
      %v3673 = vld [vmem:[#allocation3] sm:$0xff]
      %v3674 = vld [vmem:[#allocation3 + $0x8] sm:$0xff]
      %v3675 = vld [vmem:[#allocation3 + $0x10] sm:$0xff]
      %v3676 = vld [vmem:[#allocation3 + $0x18] sm:$0xff]
      %v3677 = vld [vmem:[#allocation3 + $0x20] sm:$0xff]
      %v3678 = vld [vmem:[#allocation3 + $0x28] sm:$0xff]
      %v3679 = vld [vmem:[#allocation3 + $0x30] sm:$0xff]
      %v3680 = vld [vmem:[#allocation3 + $0x38] sm:$0xff]
      %v3681 = vld [vmem:[#allocation3 + $0x40] sm:$0xff]
      %v3682 = vld [vmem:[#allocation3 + $0x48] sm:$0xff]
      %v3683 = vld [vmem:[#allocation3 + $0x50] sm:$0xff]
      %v3684 = vld [vmem:[#allocation3 + $0x58] sm:$0xff]
      %v3685 = vld [vmem:[#allocation3 + $0x60] sm:$0xff]
      %v3686 = vld [vmem:[#allocation3 + $0x68] sm:$0xff]
      %v3687 = vld [vmem:[#allocation3 + $0x70] sm:$0xff]
      %v3688 = vld [vmem:[#allocation3 + $0x78] sm:$0xff]
      %v3689 = vld [vmem:[#allocation3 + $0x80] sm:$0xff]
      %v3690 = vld [vmem:[#allocation3 + $0x88] sm:$0xff]
      %3691 = vst.msk [vmem:[#allocation4] sm:$0xff] %vm3442, %v3673
      %3692 = vst.msk [vmem:[#allocation4 + $0x8] sm:$0xff] %vm3442, %v3674
      %3693 = vst.msk [vmem:[#allocation4 + $0x10] sm:$0xff] %vm3442, %v3675
      %3694 = vst.msk [vmem:[#allocation4 + $0x18] sm:$0xff] %vm3442, %v3676
      %3695 = vst.msk [vmem:[#allocation4 + $0x20] sm:$0xff] %vm3442, %v3677
      %3696 = vst.msk [vmem:[#allocation4 + $0x28] sm:$0xff] %vm3442, %v3678
      %3697 = vst.msk [vmem:[#allocation4 + $0x30] sm:$0xff] %vm3442, %v3679
      %3698 = vst.msk [vmem:[#allocation4 + $0x38] sm:$0xff] %vm3442, %v3680
      %3699 = vst.msk [vmem:[#allocation4 + $0x40] sm:$0xff] %vm3442, %v3681
      %3700 = vst.msk [vmem:[#allocation4 + $0x48] sm:$0xff] %vm3442, %v3682
      %3701 = vst.msk [vmem:[#allocation4 + $0x50] sm:$0xff] %vm3442, %v3683
      %3702 = vst.msk [vmem:[#allocation4 + $0x58] sm:$0xff] %vm3442, %v3684
      %3703 = vst.msk [vmem:[#allocation4 + $0x60] sm:$0xff] %vm3442, %v3685
      %3704 = vst.msk [vmem:[#allocation4 + $0x68] sm:$0xff] %vm3442, %v3686
      %3705 = vst.msk [vmem:[#allocation4 + $0x70] sm:$0xff] %vm3442, %v3687
      %3706 = vst.msk [vmem:[#allocation4 + $0x78] sm:$0xff] %vm3442, %v3688
      %3707 = vst.msk [vmem:[#allocation4 + $0x80] sm:$0xff] %vm3442, %v3689
      %3708 = vst.msk [vmem:[#allocation4 + $0x88] sm:$0xff] %vm3442, %v3690
      %v3709 = vld [vmem:[#allocation3] sm:$0xff]
      %v3710 = vld [vmem:[#allocation3 + $0x8] sm:$0xff]
      %v3711 = vld [vmem:[#allocation3 + $0x10] sm:$0xff]
      %v3712 = vld [vmem:[#allocation3 + $0x18] sm:$0xff]
      %v3713 = vld [vmem:[#allocation3 + $0x20] sm:$0xff]
      %v3714 = vld [vmem:[#allocation3 + $0x28] sm:$0xff]
      %v3715 = vld [vmem:[#allocation3 + $0x30] sm:$0xff]
      %v3716 = vld [vmem:[#allocation3 + $0x38] sm:$0xff]
      %v3717 = vld [vmem:[#allocation3 + $0x40] sm:$0xff]
      %v3718 = vld [vmem:[#allocation3 + $0x48] sm:$0xff]
      %v3719 = vld [vmem:[#allocation3 + $0x50] sm:$0xff]
      %v3720 = vld [vmem:[#allocation3 + $0x58] sm:$0xff]
      %v3721 = vld [vmem:[#allocation3 + $0x60] sm:$0xff]
      %v3722 = vld [vmem:[#allocation3 + $0x68] sm:$0xff]
      %v3723 = vld [vmem:[#allocation3 + $0x70] sm:$0xff]
      %v3724 = vld [vmem:[#allocation3 + $0x78] sm:$0xff]
      %v3725 = vld [vmem:[#allocation3 + $0x80] sm:$0xff]
      %v3726 = vld [vmem:[#allocation3 + $0x88] sm:$0xff]
      %v3727 = vld [vmem:[#allocation3 + $0x90] sm:$0x1]
      %v3729 = vshrl.u32 %v3709, 16
      %v3731 = vshll.u32 %v3709, 16
      %v3733 = vrot.slane %v3731, 1
      %v3734 = vor.u32 %v3729, %v3733
      %v3736 = vshll.u32 %v3710, 16
      %v3738 = vrot.slane %v3736, 1
      %v3739 = vsel %vm603, %v3734, %v3738
      %v3740 = vshrl.u32 %v3710, 16
      %v3742 = vor.u32 %v3740, %v3738
      %v3744 = vshll.u32 %v3711, 16
      %v3746 = vrot.slane %v3744, 1
      %v3747 = vsel %vm603, %v3742, %v3746
      %v3748 = vshrl.u32 %v3711, 16
      %v3750 = vor.u32 %v3748, %v3746
      %v3752 = vshll.u32 %v3712, 16
      %v3754 = vrot.slane %v3752, 1
      %v3755 = vsel %vm603, %v3750, %v3754
      %v3756 = vshrl.u32 %v3712, 16
      %v3758 = vor.u32 %v3756, %v3754
      %v3760 = vshll.u32 %v3713, 16
      %v3762 = vrot.slane %v3760, 1
      %v3763 = vsel %vm603, %v3758, %v3762
      %v3764 = vshrl.u32 %v3713, 16
      %v3766 = vor.u32 %v3764, %v3762
      %v3768 = vshll.u32 %v3714, 16
      %v3770 = vrot.slane %v3768, 1
      %v3771 = vsel %vm603, %v3766, %v3770
      %v3772 = vshrl.u32 %v3714, 16
      %v3774 = vor.u32 %v3772, %v3770
      %v3776 = vshll.u32 %v3715, 16
      %v3778 = vrot.slane %v3776, 1
      %v3779 = vsel %vm603, %v3774, %v3778
      %v3780 = vshrl.u32 %v3715, 16
      %v3782 = vor.u32 %v3780, %v3778
      %v3784 = vshll.u32 %v3716, 16
      %v3786 = vrot.slane %v3784, 1
      %v3787 = vsel %vm603, %v3782, %v3786
      %v3788 = vshrl.u32 %v3716, 16
      %v3790 = vor.u32 %v3788, %v3786
      %v3792 = vshll.u32 %v3717, 16
      %v3794 = vrot.slane %v3792, 1
      %v3795 = vsel %vm603, %v3790, %v3794
      %v3796 = vshrl.u32 %v3717, 16
      %v3798 = vor.u32 %v3796, %v3794
      %v3800 = vshll.u32 %v3718, 16
      %v3802 = vrot.slane %v3800, 1
      %v3803 = vsel %vm603, %v3798, %v3802
      %v3804 = vshrl.u32 %v3718, 16
      %v3806 = vor.u32 %v3804, %v3802
      %v3808 = vshll.u32 %v3719, 16
      %v3810 = vrot.slane %v3808, 1
      %v3811 = vsel %vm603, %v3806, %v3810
      %v3812 = vshrl.u32 %v3719, 16
      %v3814 = vor.u32 %v3812, %v3810
      %v3816 = vshll.u32 %v3720, 16
      %v3818 = vrot.slane %v3816, 1
      %v3819 = vsel %vm603, %v3814, %v3818
      %v3820 = vshrl.u32 %v3720, 16
      %v3822 = vor.u32 %v3820, %v3818
      %v3824 = vshll.u32 %v3721, 16
      %v3826 = vrot.slane %v3824, 1
      %v3827 = vsel %vm603, %v3822, %v3826
      %v3828 = vshrl.u32 %v3721, 16
      %v3830 = vor.u32 %v3828, %v3826
      %v3832 = vshll.u32 %v3722, 16
      %v3834 = vrot.slane %v3832, 1
      %v3835 = vsel %vm603, %v3830, %v3834
      %v3836 = vshrl.u32 %v3722, 16
      %v3838 = vor.u32 %v3836, %v3834
      %v3840 = vshll.u32 %v3723, 16
      %v3842 = vrot.slane %v3840, 1
      %v3843 = vsel %vm603, %v3838, %v3842
      %v3844 = vshrl.u32 %v3723, 16
      %v3846 = vor.u32 %v3844, %v3842
      %v3848 = vshll.u32 %v3724, 16
      %v3850 = vrot.slane %v3848, 1
      %v3851 = vsel %vm603, %v3846, %v3850
      %v3852 = vshrl.u32 %v3724, 16
      %v3854 = vor.u32 %v3852, %v3850
      %v3856 = vshll.u32 %v3725, 16
      %v3858 = vrot.slane %v3856, 1
      %v3859 = vsel %vm603, %v3854, %v3858
      %v3860 = vshrl.u32 %v3725, 16
      %v3862 = vor.u32 %v3860, %v3858
      %v3864 = vshll.u32 %v3726, 16
      %v3866 = vrot.slane %v3864, 1
      %v3867 = vsel %vm603, %v3862, %v3866
      %v3868 = vshrl.u32 %v3726, 16
      %v3870 = vor.u32 %v3868, %v3866
      %v3872 = vshll.u32 %v3727, 16
      %v3874 = vrot.slane %v3872, 1
      %v3875 = vsel %vm603, %v3870, %v3874
      %3876 = vrot.lane.b32.xlu0 %v3739, 8
      %v3877 = vpop.permute.xlu0 %3876
      %3878 = vrot.lane.b32.xlu0 %v3747, 8
      %v3879 = vpop.permute.xlu0 %3878
      %3880 = vrot.lane.b32.xlu0 %v3755, 8
      %v3881 = vpop.permute.xlu0 %3880
      %3882 = vrot.lane.b32.xlu0 %v3763, 8
      %v3883 = vpop.permute.xlu0 %3882
      %3884 = vrot.lane.b32.xlu0 %v3771, 8
      %v3885 = vpop.permute.xlu0 %3884
      %3886 = vrot.lane.b32.xlu0 %v3779, 8
      %v3887 = vpop.permute.xlu0 %3886
      %3888 = vrot.lane.b32.xlu0 %v3787, 8
      %v3889 = vpop.permute.xlu0 %3888
      %3890 = vrot.lane.b32.xlu0 %v3795, 8
      %v3891 = vpop.permute.xlu0 %3890
      %3892 = vrot.lane.b32.xlu0 %v3803, 8
      %v3893 = vpop.permute.xlu0 %3892
      %3894 = vrot.lane.b32.xlu0 %v3811, 8
      %v3895 = vpop.permute.xlu0 %3894
      %3896 = vrot.lane.b32.xlu0 %v3819, 8
      %v3897 = vpop.permute.xlu0 %3896
      %3898 = vrot.lane.b32.xlu0 %v3827, 8
      %v3899 = vpop.permute.xlu0 %3898
      %3900 = vrot.lane.b32.xlu0 %v3835, 8
      %v3901 = vpop.permute.xlu0 %3900
      %3902 = vrot.lane.b32.xlu0 %v3843, 8
      %v3903 = vpop.permute.xlu0 %3902
      %3904 = vrot.lane.b32.xlu0 %v3851, 8
      %v3905 = vpop.permute.xlu0 %3904
      %3906 = vrot.lane.b32.xlu0 %v3859, 8
      %v3907 = vpop.permute.xlu0 %3906
      %3908 = vrot.lane.b32.xlu0 %v3867, 8
      %v3909 = vpop.permute.xlu0 %3908
      %3910 = vrot.lane.b32.xlu0 %v3875, 8
      %v3911 = vpop.permute.xlu0 %3910
      %vm3930 = vcmask 130112
      %3931 = vst.msk [vmem:[#allocation4] sm:$0xff] %vm3930, %v3877
      %3932 = vst.msk [vmem:[#allocation4 + $0x8] sm:$0xff] %vm3930, %v3879
      %3933 = vst.msk [vmem:[#allocation4 + $0x10] sm:$0xff] %vm3930, %v3881
      %3934 = vst.msk [vmem:[#allocation4 + $0x18] sm:$0xff] %vm3930, %v3883
      %3935 = vst.msk [vmem:[#allocation4 + $0x20] sm:$0xff] %vm3930, %v3885
      %3936 = vst.msk [vmem:[#allocation4 + $0x28] sm:$0xff] %vm3930, %v3887
      %3937 = vst.msk [vmem:[#allocation4 + $0x30] sm:$0xff] %vm3930, %v3889
      %3938 = vst.msk [vmem:[#allocation4 + $0x38] sm:$0xff] %vm3930, %v3891
      %3939 = vst.msk [vmem:[#allocation4 + $0x40] sm:$0xff] %vm3930, %v3893
      %3940 = vst.msk [vmem:[#allocation4 + $0x48] sm:$0xff] %vm3930, %v3895
      %3941 = vst.msk [vmem:[#allocation4 + $0x50] sm:$0xff] %vm3930, %v3897
      %3942 = vst.msk [vmem:[#allocation4 + $0x58] sm:$0xff] %vm3930, %v3899
      %3943 = vst.msk [vmem:[#allocation4 + $0x60] sm:$0xff] %vm3930, %v3901
      %3944 = vst.msk [vmem:[#allocation4 + $0x68] sm:$0xff] %vm3930, %v3903
      %3945 = vst.msk [vmem:[#allocation4 + $0x70] sm:$0xff] %vm3930, %v3905
      %3946 = vst.msk [vmem:[#allocation4 + $0x78] sm:$0xff] %vm3930, %v3907
      %3947 = vst.msk [vmem:[#allocation4 + $0x80] sm:$0xff] %vm3930, %v3909
      %3948 = vst.msk [vmem:[#allocation4 + $0x88] sm:$0xff] %vm3930, %v3911
      %v3949 = vld [vmem:[#allocation3] sm:$0xfe]
      %v3950 = vld [vmem:[#allocation3 + $0x8] sm:$0xff]
      %v3951 = vld [vmem:[#allocation3 + $0x10] sm:$0xff]
      %v3952 = vld [vmem:[#allocation3 + $0x18] sm:$0xff]
      %v3953 = vld [vmem:[#allocation3 + $0x20] sm:$0xff]
      %v3954 = vld [vmem:[#allocation3 + $0x28] sm:$0xff]
      %v3955 = vld [vmem:[#allocation3 + $0x30] sm:$0xff]
      %v3956 = vld [vmem:[#allocation3 + $0x38] sm:$0xff]
      %v3957 = vld [vmem:[#allocation3 + $0x40] sm:$0xff]
      %v3958 = vld [vmem:[#allocation3 + $0x48] sm:$0xff]
      %v3959 = vld [vmem:[#allocation3 + $0x50] sm:$0xff]
      %v3960 = vld [vmem:[#allocation3 + $0x58] sm:$0xff]
      %v3961 = vld [vmem:[#allocation3 + $0x60] sm:$0xff]
      %v3962 = vld [vmem:[#allocation3 + $0x68] sm:$0xff]
      %v3963 = vld [vmem:[#allocation3 + $0x70] sm:$0xff]
      %v3964 = vld [vmem:[#allocation3 + $0x78] sm:$0xff]
      %v3965 = vld [vmem:[#allocation3 + $0x80] sm:$0xff]
      %v3966 = vld [vmem:[#allocation3 + $0x88] sm:$0xff]
      %v3967 = vld [vmem:[#allocation3 + $0x90] sm:$0x1]
      %v3987 = vrot.slane %v3949, 1
      %v3988 = vrot.slane %v3950, 1
      %v3989 = vsel %vm955, %v3987, %v3988
      %v3990 = vrot.slane %v3951, 1
      %v3991 = vsel %vm955, %v3988, %v3990
      %v3992 = vrot.slane %v3952, 1
      %v3993 = vsel %vm955, %v3990, %v3992
      %v3994 = vrot.slane %v3953, 1
      %v3995 = vsel %vm955, %v3992, %v3994
      %v3996 = vrot.slane %v3954, 1
      %v3997 = vsel %vm955, %v3994, %v3996
      %v3998 = vrot.slane %v3955, 1
      %v3999 = vsel %vm955, %v3996, %v3998
      %v4000 = vrot.slane %v3956, 1
      %v4001 = vsel %vm955, %v3998, %v4000
      %v4002 = vrot.slane %v3957, 1
      %v4003 = vsel %vm955, %v4000, %v4002
      %v4004 = vrot.slane %v3958, 1
      %v4005 = vsel %vm955, %v4002, %v4004
      %v4006 = vrot.slane %v3959, 1
      %v4007 = vsel %vm955, %v4004, %v4006
      %v4008 = vrot.slane %v3960, 1
      %v4009 = vsel %vm955, %v4006, %v4008
      %v4010 = vrot.slane %v3961, 1
      %v4011 = vsel %vm955, %v4008, %v4010
      %v4012 = vrot.slane %v3962, 1
      %v4013 = vsel %vm955, %v4010, %v4012
      %v4014 = vrot.slane %v3963, 1
      %v4015 = vsel %vm955, %v4012, %v4014
      %v4016 = vrot.slane %v3964, 1
      %v4017 = vsel %vm955, %v4014, %v4016
      %v4018 = vrot.slane %v3965, 1
      %v4019 = vsel %vm955, %v4016, %v4018
      %v4020 = vrot.slane %v3966, 1
      %v4021 = vsel %vm955, %v4018, %v4020
      %v4022 = vrot.slane %v3967, 1
      %v4023 = vsel %vm955, %v4020, %v4022
      %4024 = vrot.lane.b32.xlu0 %v3989, 16
      %v4025 = vpop.permute.xlu0 %4024
      %4026 = vrot.lane.b32.xlu0 %v3991, 16
      %v4027 = vpop.permute.xlu0 %4026
      %4028 = vrot.lane.b32.xlu0 %v3993, 16
      %v4029 = vpop.permute.xlu0 %4028
      %4030 = vrot.lane.b32.xlu0 %v3995, 16
      %v4031 = vpop.permute.xlu0 %4030
      %4032 = vrot.lane.b32.xlu0 %v3997, 16
      %v4033 = vpop.permute.xlu0 %4032
      %4034 = vrot.lane.b32.xlu0 %v3999, 16
      %v4035 = vpop.permute.xlu0 %4034
      %4036 = vrot.lane.b32.xlu0 %v4001, 16
      %v4037 = vpop.permute.xlu0 %4036
      %4038 = vrot.lane.b32.xlu0 %v4003, 16
      %v4039 = vpop.permute.xlu0 %4038
      %4040 = vrot.lane.b32.xlu0 %v4005, 16
      %v4041 = vpop.permute.xlu0 %4040
      %4042 = vrot.lane.b32.xlu0 %v4007, 16
      %v4043 = vpop.permute.xlu0 %4042
      %4044 = vrot.lane.b32.xlu0 %v4009, 16
      %v4045 = vpop.permute.xlu0 %4044
      %4046 = vrot.lane.b32.xlu0 %v4011, 16
      %v4047 = vpop.permute.xlu0 %4046
      %4048 = vrot.lane.b32.xlu0 %v4013, 16
      %v4049 = vpop.permute.xlu0 %4048
      %4050 = vrot.lane.b32.xlu0 %v4015, 16
      %v4051 = vpop.permute.xlu0 %4050
      %4052 = vrot.lane.b32.xlu0 %v4017, 16
      %v4053 = vpop.permute.xlu0 %4052
      %4054 = vrot.lane.b32.xlu0 %v4019, 16
      %v4055 = vpop.permute.xlu0 %4054
      %4056 = vrot.lane.b32.xlu0 %v4021, 16
      %v4057 = vpop.permute.xlu0 %4056
      %4058 = vrot.lane.b32.xlu0 %v4023, 16
      %v4059 = vpop.permute.xlu0 %4058
      %vm4078 = vcmask 195712
      %4079 = vst.msk [vmem:[#allocation4] sm:$0xff] %vm4078, %v4025
      %4080 = vst.msk [vmem:[#allocation4 + $0x8] sm:$0xff] %vm4078, %v4027
      %4081 = vst.msk [vmem:[#allocation4 + $0x10] sm:$0xff] %vm4078, %v4029
      %4082 = vst.msk [vmem:[#allocation4 + $0x18] sm:$0xff] %vm4078, %v4031
      %4083 = vst.msk [vmem:[#allocation4 + $0x20] sm:$0xff] %vm4078, %v4033
      %4084 = vst.msk [vmem:[#allocation4 + $0x28] sm:$0xff] %vm4078, %v4035
      %4085 = vst.msk [vmem:[#allocation4 + $0x30] sm:$0xff] %vm4078, %v4037
      %4086 = vst.msk [vmem:[#allocation4 + $0x38] sm:$0xff] %vm4078, %v4039
      %4087 = vst.msk [vmem:[#allocation4 + $0x40] sm:$0xff] %vm4078, %v4041
      %4088 = vst.msk [vmem:[#allocation4 + $0x48] sm:$0xff] %vm4078, %v4043
      %4089 = vst.msk [vmem:[#allocation4 + $0x50] sm:$0xff] %vm4078, %v4045
      %4090 = vst.msk [vmem:[#allocation4 + $0x58] sm:$0xff] %vm4078, %v4047
      %4091 = vst.msk [vmem:[#allocation4 + $0x60] sm:$0xff] %vm4078, %v4049
      %4092 = vst.msk [vmem:[#allocation4 + $0x68] sm:$0xff] %vm4078, %v4051
      %4093 = vst.msk [vmem:[#allocation4 + $0x70] sm:$0xff] %vm4078, %v4053
      %4094 = vst.msk [vmem:[#allocation4 + $0x78] sm:$0xff] %vm4078, %v4055
      %4095 = vst.msk [vmem:[#allocation4 + $0x80] sm:$0xff] %vm4078, %v4057
      %4096 = vst.msk [vmem:[#allocation4 + $0x88] sm:$0xff] %vm4078, %v4059
      %v4097 = vld [vmem:[#allocation3 + $0x8] sm:$0xfe]
      %v4098 = vld [vmem:[#allocation3 + $0x10] sm:$0xff]
      %v4099 = vld [vmem:[#allocation3 + $0x18] sm:$0xff]
      %v4100 = vld [vmem:[#allocation3 + $0x20] sm:$0xff]
      %v4101 = vld [vmem:[#allocation3 + $0x28] sm:$0xff]
      %v4102 = vld [vmem:[#allocation3 + $0x30] sm:$0xff]
      %v4103 = vld [vmem:[#allocation3 + $0x38] sm:$0xff]
      %v4104 = vld [vmem:[#allocation3 + $0x40] sm:$0xff]
      %v4105 = vld [vmem:[#allocation3 + $0x48] sm:$0xff]
      %v4106 = vld [vmem:[#allocation3 + $0x50] sm:$0xff]
      %v4107 = vld [vmem:[#allocation3 + $0x58] sm:$0xff]
      %v4108 = vld [vmem:[#allocation3 + $0x60] sm:$0xff]
      %v4109 = vld [vmem:[#allocation3 + $0x68] sm:$0xff]
      %v4110 = vld [vmem:[#allocation3 + $0x70] sm:$0xff]
      %v4111 = vld [vmem:[#allocation3 + $0x78] sm:$0xff]
      %v4112 = vld [vmem:[#allocation3 + $0x80] sm:$0xff]
      %v4113 = vld [vmem:[#allocation3 + $0x88] sm:$0xff]
      %v4114 = vld [vmem:[#allocation3 + $0x90] sm:$0xff]
      %v4115 = vld [vmem:[#allocation3 + $0x98] sm:$0x1]
      %v4135 = vrot.slane %v4097, 1
      %v4136 = vrot.slane %v4098, 1
      %v4137 = vsel %vm955, %v4135, %v4136
      %v4138 = vrot.slane %v4099, 1
      %v4139 = vsel %vm955, %v4136, %v4138
      %v4140 = vrot.slane %v4100, 1
      %v4141 = vsel %vm955, %v4138, %v4140
      %v4142 = vrot.slane %v4101, 1
      %v4143 = vsel %vm955, %v4140, %v4142
      %v4144 = vrot.slane %v4102, 1
      %v4145 = vsel %vm955, %v4142, %v4144
      %v4146 = vrot.slane %v4103, 1
      %v4147 = vsel %vm955, %v4144, %v4146
      %v4148 = vrot.slane %v4104, 1
      %v4149 = vsel %vm955, %v4146, %v4148
      %v4150 = vrot.slane %v4105, 1
      %v4151 = vsel %vm955, %v4148, %v4150
      %v4152 = vrot.slane %v4106, 1
      %v4153 = vsel %vm955, %v4150, %v4152
      %v4154 = vrot.slane %v4107, 1
      %v4155 = vsel %vm955, %v4152, %v4154
      %v4156 = vrot.slane %v4108, 1
      %v4157 = vsel %vm955, %v4154, %v4156
      %v4158 = vrot.slane %v4109, 1
      %v4159 = vsel %vm955, %v4156, %v4158
      %v4160 = vrot.slane %v4110, 1
      %v4161 = vsel %vm955, %v4158, %v4160
      %v4162 = vrot.slane %v4111, 1
      %v4163 = vsel %vm955, %v4160, %v4162
      %v4164 = vrot.slane %v4112, 1
      %v4165 = vsel %vm955, %v4162, %v4164
      %v4166 = vrot.slane %v4113, 1
      %v4167 = vsel %vm955, %v4164, %v4166
      %v4168 = vrot.slane %v4114, 1
      %v4169 = vsel %vm955, %v4166, %v4168
      %v4170 = vrot.slane %v4115, 1
      %v4171 = vsel %vm955, %v4168, %v4170
      %4172 = vrot.lane.b32.xlu0 %v4137, 24
      %v4173 = vpop.permute.xlu0 %4172
      %4174 = vrot.lane.b32.xlu0 %v4139, 24
      %v4175 = vpop.permute.xlu0 %4174
      %4176 = vrot.lane.b32.xlu0 %v4141, 24
      %v4177 = vpop.permute.xlu0 %4176
      %4178 = vrot.lane.b32.xlu0 %v4143, 24
      %v4179 = vpop.permute.xlu0 %4178
      %4180 = vrot.lane.b32.xlu0 %v4145, 24
      %v4181 = vpop.permute.xlu0 %4180
      %4182 = vrot.lane.b32.xlu0 %v4147, 24
      %v4183 = vpop.permute.xlu0 %4182
      %4184 = vrot.lane.b32.xlu0 %v4149, 24
      %v4185 = vpop.permute.xlu0 %4184
      %4186 = vrot.lane.b32.xlu0 %v4151, 24
      %v4187 = vpop.permute.xlu0 %4186
      %4188 = vrot.lane.b32.xlu0 %v4153, 24
      %v4189 = vpop.permute.xlu0 %4188
      %4190 = vrot.lane.b32.xlu0 %v4155, 24
      %v4191 = vpop.permute.xlu0 %4190
      %4192 = vrot.lane.b32.xlu0 %v4157, 24
      %v4193 = vpop.permute.xlu0 %4192
      %4194 = vrot.lane.b32.xlu0 %v4159, 24
      %v4195 = vpop.permute.xlu0 %4194
      %4196 = vrot.lane.b32.xlu0 %v4161, 24
      %v4197 = vpop.permute.xlu0 %4196
      %4198 = vrot.lane.b32.xlu0 %v4163, 24
      %v4199 = vpop.permute.xlu0 %4198
      %4200 = vrot.lane.b32.xlu0 %v4165, 24
      %v4201 = vpop.permute.xlu0 %4200
      %4202 = vrot.lane.b32.xlu0 %v4167, 24
      %v4203 = vpop.permute.xlu0 %4202
      %4204 = vrot.lane.b32.xlu0 %v4169, 24
      %v4205 = vpop.permute.xlu0 %4204
      %4206 = vrot.lane.b32.xlu0 %v4171, 24
      %v4207 = vpop.permute.xlu0 %4206
      %vm4226 = vcmask 261312
      %4227 = vst.msk [vmem:[#allocation4] sm:$0xff] %vm4226, %v4173
      %4228 = vst.msk [vmem:[#allocation4 + $0x8] sm:$0xff] %vm4226, %v4175
      %4229 = vst.msk [vmem:[#allocation4 + $0x10] sm:$0xff] %vm4226, %v4177
      %4230 = vst.msk [vmem:[#allocation4 + $0x18] sm:$0xff] %vm4226, %v4179
      %4231 = vst.msk [vmem:[#allocation4 + $0x20] sm:$0xff] %vm4226, %v4181
      %4232 = vst.msk [vmem:[#allocation4 + $0x28] sm:$0xff] %vm4226, %v4183
      %4233 = vst.msk [vmem:[#allocation4 + $0x30] sm:$0xff] %vm4226, %v4185
      %4234 = vst.msk [vmem:[#allocation4 + $0x38] sm:$0xff] %vm4226, %v4187
      %4235 = vst.msk [vmem:[#allocation4 + $0x40] sm:$0xff] %vm4226, %v4189
      %4236 = vst.msk [vmem:[#allocation4 + $0x48] sm:$0xff] %vm4226, %v4191
      %4237 = vst.msk [vmem:[#allocation4 + $0x50] sm:$0xff] %vm4226, %v4193
      %4238 = vst.msk [vmem:[#allocation4 + $0x58] sm:$0xff] %vm4226, %v4195
      %4239 = vst.msk [vmem:[#allocation4 + $0x60] sm:$0xff] %vm4226, %v4197
      %4240 = vst.msk [vmem:[#allocation4 + $0x68] sm:$0xff] %vm4226, %v4199
      %4241 = vst.msk [vmem:[#allocation4 + $0x70] sm:$0xff] %vm4226, %v4201
      %4242 = vst.msk [vmem:[#allocation4 + $0x78] sm:$0xff] %vm4226, %v4203
      %4243 = vst.msk [vmem:[#allocation4 + $0x80] sm:$0xff] %vm4226, %v4205
      %4244 = vst.msk [vmem:[#allocation4 + $0x88] sm:$0xff] %vm4226, %v4207
      %v4245 = vld [vmem:[#allocation3 + $0x8] sm:$0xfe]
      %v4246 = vld [vmem:[#allocation3 + $0x10] sm:$0xff]
      %v4247 = vld [vmem:[#allocation3 + $0x18] sm:$0xff]
      %v4248 = vld [vmem:[#allocation3 + $0x20] sm:$0xff]
      %v4249 = vld [vmem:[#allocation3 + $0x28] sm:$0xff]
      %v4250 = vld [vmem:[#allocation3 + $0x30] sm:$0xff]
      %v4251 = vld [vmem:[#allocation3 + $0x38] sm:$0xff]
      %v4252 = vld [vmem:[#allocation3 + $0x40] sm:$0xff]
      %v4253 = vld [vmem:[#allocation3 + $0x48] sm:$0xff]
      %v4254 = vld [vmem:[#allocation3 + $0x50] sm:$0xff]
      %v4255 = vld [vmem:[#allocation3 + $0x58] sm:$0xff]
      %v4256 = vld [vmem:[#allocation3 + $0x60] sm:$0xff]
      %v4257 = vld [vmem:[#allocation3 + $0x68] sm:$0xff]
      %v4258 = vld [vmem:[#allocation3 + $0x70] sm:$0xff]
      %v4259 = vld [vmem:[#allocation3 + $0x78] sm:$0xff]
      %v4260 = vld [vmem:[#allocation3 + $0x80] sm:$0xff]
      %v4261 = vld [vmem:[#allocation3 + $0x88] sm:$0xff]
      %v4262 = vld [vmem:[#allocation3 + $0x90] sm:$0xff]
      %v4263 = vld [vmem:[#allocation3 + $0x98] sm:$0x3]
      %v4265 = vshrl.u32 %v4245, 16
      %v4267 = vrot.slane %v4265, 1
      %v4268 = vshll.u32 %v4245, 16
      %v4270 = vrot.slane %v4268, 2
      %v4271 = vor.u32 %v4267, %v4270
      %v4273 = vshrl.u32 %v4246, 16
      %v4275 = vrot.slane %v4273, 1
      %v4276 = vshll.u32 %v4246, 16
      %v4278 = vrot.slane %v4276, 2
      %v4279 = vor.u32 %v4275, %v4278
      %v4280 = vsel %vm1436, %v4271, %v4279
      %v4282 = vshrl.u32 %v4247, 16
      %v4284 = vrot.slane %v4282, 1
      %v4285 = vshll.u32 %v4247, 16
      %v4287 = vrot.slane %v4285, 2
      %v4288 = vor.u32 %v4284, %v4287
      %v4289 = vsel %vm1436, %v4279, %v4288
      %v4291 = vshrl.u32 %v4248, 16
      %v4293 = vrot.slane %v4291, 1
      %v4294 = vshll.u32 %v4248, 16
      %v4296 = vrot.slane %v4294, 2
      %v4297 = vor.u32 %v4293, %v4296
      %v4298 = vsel %vm1436, %v4288, %v4297
      %v4300 = vshrl.u32 %v4249, 16
      %v4302 = vrot.slane %v4300, 1
      %v4303 = vshll.u32 %v4249, 16
      %v4305 = vrot.slane %v4303, 2
      %v4306 = vor.u32 %v4302, %v4305
      %v4307 = vsel %vm1436, %v4297, %v4306
      %v4309 = vshrl.u32 %v4250, 16
      %v4311 = vrot.slane %v4309, 1
      %v4312 = vshll.u32 %v4250, 16
      %v4314 = vrot.slane %v4312, 2
      %v4315 = vor.u32 %v4311, %v4314
      %v4316 = vsel %vm1436, %v4306, %v4315
      %v4318 = vshrl.u32 %v4251, 16
      %v4320 = vrot.slane %v4318, 1
      %v4321 = vshll.u32 %v4251, 16
      %v4323 = vrot.slane %v4321, 2
      %v4324 = vor.u32 %v4320, %v4323
      %v4325 = vsel %vm1436, %v4315, %v4324
      %v4327 = vshrl.u32 %v4252, 16
      %v4329 = vrot.slane %v4327, 1
      %v4330 = vshll.u32 %v4252, 16
      %v4332 = vrot.slane %v4330, 2
      %v4333 = vor.u32 %v4329, %v4332
      %v4334 = vsel %vm1436, %v4324, %v4333
      %v4336 = vshrl.u32 %v4253, 16
      %v4338 = vrot.slane %v4336, 1
      %v4339 = vshll.u32 %v4253, 16
      %v4341 = vrot.slane %v4339, 2
      %v4342 = vor.u32 %v4338, %v4341
      %v4343 = vsel %vm1436, %v4333, %v4342
      %v4345 = vshrl.u32 %v4254, 16
      %v4347 = vrot.slane %v4345, 1
      %v4348 = vshll.u32 %v4254, 16
      %v4350 = vrot.slane %v4348, 2
      %v4351 = vor.u32 %v4347, %v4350
      %v4352 = vsel %vm1436, %v4342, %v4351
      %v4354 = vshrl.u32 %v4255, 16
      %v4356 = vrot.slane %v4354, 1
      %v4357 = vshll.u32 %v4255, 16
      %v4359 = vrot.slane %v4357, 2
      %v4360 = vor.u32 %v4356, %v4359
      %v4361 = vsel %vm1436, %v4351, %v4360
      %v4363 = vshrl.u32 %v4256, 16
      %v4365 = vrot.slane %v4363, 1
      %v4366 = vshll.u32 %v4256, 16
      %v4368 = vrot.slane %v4366, 2
      %v4369 = vor.u32 %v4365, %v4368
      %v4370 = vsel %vm1436, %v4360, %v4369
      %v4372 = vshrl.u32 %v4257, 16
      %v4374 = vrot.slane %v4372, 1
      %v4375 = vshll.u32 %v4257, 16
      %v4377 = vrot.slane %v4375, 2
      %v4378 = vor.u32 %v4374, %v4377
      %v4379 = vsel %vm1436, %v4369, %v4378
      %v4381 = vshrl.u32 %v4258, 16
      %v4383 = vrot.slane %v4381, 1
      %v4384 = vshll.u32 %v4258, 16
      %v4386 = vrot.slane %v4384, 2
      %v4387 = vor.u32 %v4383, %v4386
      %v4388 = vsel %vm1436, %v4378, %v4387
      %v4390 = vshrl.u32 %v4259, 16
      %v4392 = vrot.slane %v4390, 1
      %v4393 = vshll.u32 %v4259, 16
      %v4395 = vrot.slane %v4393, 2
      %v4396 = vor.u32 %v4392, %v4395
      %v4397 = vsel %vm1436, %v4387, %v4396
      %v4399 = vshrl.u32 %v4260, 16
      %v4401 = vrot.slane %v4399, 1
      %v4402 = vshll.u32 %v4260, 16
      %v4404 = vrot.slane %v4402, 2
      %v4405 = vor.u32 %v4401, %v4404
      %v4406 = vsel %vm1436, %v4396, %v4405
      %v4408 = vshrl.u32 %v4261, 16
      %v4410 = vrot.slane %v4408, 1
      %v4411 = vshll.u32 %v4261, 16
      %v4413 = vrot.slane %v4411, 2
      %v4414 = vor.u32 %v4410, %v4413
      %v4415 = vsel %vm1436, %v4405, %v4414
      %v4417 = vshrl.u32 %v4262, 16
      %v4419 = vrot.slane %v4417, 1
      %v4420 = vshll.u32 %v4262, 16
      %v4422 = vrot.slane %v4420, 2
      %v4423 = vor.u32 %v4419, %v4422
      %v4424 = vsel %vm1436, %v4414, %v4423
      %v4426 = vshrl.u32 %v4263, 16
      %v4428 = vrot.slane %v4426, 1
      %v4429 = vshll.u32 %v4263, 16
      %v4431 = vrot.slane %v4429, 2
      %v4432 = vor.u32 %v4428, %v4431
      %v4433 = vsel %vm1436, %v4423, %v4432
      %4434 = vrot.lane.b32.xlu0 %v4280, 32
      %v4435 = vpop.permute.xlu0 %4434
      %4436 = vrot.lane.b32.xlu0 %v4289, 32
      %v4437 = vpop.permute.xlu0 %4436
      %4438 = vrot.lane.b32.xlu0 %v4298, 32
      %v4439 = vpop.permute.xlu0 %4438
      %4440 = vrot.lane.b32.xlu0 %v4307, 32
      %v4441 = vpop.permute.xlu0 %4440
      %4442 = vrot.lane.b32.xlu0 %v4316, 32
      %v4443 = vpop.permute.xlu0 %4442
      %4444 = vrot.lane.b32.xlu0 %v4325, 32
      %v4445 = vpop.permute.xlu0 %4444
      %4446 = vrot.lane.b32.xlu0 %v4334, 32
      %v4447 = vpop.permute.xlu0 %4446
      %4448 = vrot.lane.b32.xlu0 %v4343, 32
      %v4449 = vpop.permute.xlu0 %4448
      %4450 = vrot.lane.b32.xlu0 %v4352, 32
      %v4451 = vpop.permute.xlu0 %4450
      %4452 = vrot.lane.b32.xlu0 %v4361, 32
      %v4453 = vpop.permute.xlu0 %4452
      %4454 = vrot.lane.b32.xlu0 %v4370, 32
      %v4455 = vpop.permute.xlu0 %4454
      %4456 = vrot.lane.b32.xlu0 %v4379, 32
      %v4457 = vpop.permute.xlu0 %4456
      %4458 = vrot.lane.b32.xlu0 %v4388, 32
      %v4459 = vpop.permute.xlu0 %4458
      %4460 = vrot.lane.b32.xlu0 %v4397, 32
      %v4461 = vpop.permute.xlu0 %4460
      %4462 = vrot.lane.b32.xlu0 %v4406, 32
      %v4463 = vpop.permute.xlu0 %4462
      %4464 = vrot.lane.b32.xlu0 %v4415, 32
      %v4465 = vpop.permute.xlu0 %4464
      %4466 = vrot.lane.b32.xlu0 %v4424, 32
      %v4467 = vpop.permute.xlu0 %4466
      %4468 = vrot.lane.b32.xlu0 %v4433, 32
      %v4469 = vpop.permute.xlu0 %4468
      %vm4488 = vcmask 326912
      %4489 = vst.msk [vmem:[#allocation4] sm:$0xff] %vm4488, %v4435
      %4490 = vst.msk [vmem:[#allocation4 + $0x8] sm:$0xff] %vm4488, %v4437
      %4491 = vst.msk [vmem:[#allocation4 + $0x10] sm:$0xff] %vm4488, %v4439
      %4492 = vst.msk [vmem:[#allocation4 + $0x18] sm:$0xff] %vm4488, %v4441
      %4493 = vst.msk [vmem:[#allocation4 + $0x20] sm:$0xff] %vm4488, %v4443
      %4494 = vst.msk [vmem:[#allocation4 + $0x28] sm:$0xff] %vm4488, %v4445
      %4495 = vst.msk [vmem:[#allocation4 + $0x30] sm:$0xff] %vm4488, %v4447
      %4496 = vst.msk [vmem:[#allocation4 + $0x38] sm:$0xff] %vm4488, %v4449
      %4497 = vst.msk [vmem:[#allocation4 + $0x40] sm:$0xff] %vm4488, %v4451
      %4498 = vst.msk [vmem:[#allocation4 + $0x48] sm:$0xff] %vm4488, %v4453
      %4499 = vst.msk [vmem:[#allocation4 + $0x50] sm:$0xff] %vm4488, %v4455
      %4500 = vst.msk [vmem:[#allocation4 + $0x58] sm:$0xff] %vm4488, %v4457
      %4501 = vst.msk [vmem:[#allocation4 + $0x60] sm:$0xff] %vm4488, %v4459
      %4502 = vst.msk [vmem:[#allocation4 + $0x68] sm:$0xff] %vm4488, %v4461
      %4503 = vst.msk [vmem:[#allocation4 + $0x70] sm:$0xff] %vm4488, %v4463
      %4504 = vst.msk [vmem:[#allocation4 + $0x78] sm:$0xff] %vm4488, %v4465
      %4505 = vst.msk [vmem:[#allocation4 + $0x80] sm:$0xff] %vm4488, %v4467
      %4506 = vst.msk [vmem:[#allocation4 + $0x88] sm:$0xff] %vm4488, %v4469
      %v4507 = vld [vmem:[#allocation3 + $0x8] sm:$0xfc]
      %v4508 = vld [vmem:[#allocation3 + $0x10] sm:$0xff]
      %v4509 = vld [vmem:[#allocation3 + $0x18] sm:$0xff]
      %v4510 = vld [vmem:[#allocation3 + $0x20] sm:$0xff]
      %v4511 = vld [vmem:[#allocation3 + $0x28] sm:$0xff]
      %v4512 = vld [vmem:[#allocation3 + $0x30] sm:$0xff]
      %v4513 = vld [vmem:[#allocation3 + $0x38] sm:$0xff]
      %v4514 = vld [vmem:[#allocation3 + $0x40] sm:$0xff]
      %v4515 = vld [vmem:[#allocation3 + $0x48] sm:$0xff]
      %v4516 = vld [vmem:[#allocation3 + $0x50] sm:$0xff]
      %v4517 = vld [vmem:[#allocation3 + $0x58] sm:$0xff]
      %v4518 = vld [vmem:[#allocation3 + $0x60] sm:$0xff]
      %v4519 = vld [vmem:[#allocation3 + $0x68] sm:$0xff]
      %v4520 = vld [vmem:[#allocation3 + $0x70] sm:$0xff]
      %v4521 = vld [vmem:[#allocation3 + $0x78] sm:$0xff]
      %v4522 = vld [vmem:[#allocation3 + $0x80] sm:$0xff]
      %v4523 = vld [vmem:[#allocation3 + $0x88] sm:$0xff]
      %v4524 = vld [vmem:[#allocation3 + $0x90] sm:$0xff]
      %v4525 = vld [vmem:[#allocation3 + $0x98] sm:$0x3]
      %v4545 = vrot.slane %v4507, 2
      %v4546 = vrot.slane %v4508, 2
      %v4547 = vsel %vm1810, %v4545, %v4546
      %v4548 = vrot.slane %v4509, 2
      %v4549 = vsel %vm1810, %v4546, %v4548
      %v4550 = vrot.slane %v4510, 2
      %v4551 = vsel %vm1810, %v4548, %v4550
      %v4552 = vrot.slane %v4511, 2
      %v4553 = vsel %vm1810, %v4550, %v4552
      %v4554 = vrot.slane %v4512, 2
      %v4555 = vsel %vm1810, %v4552, %v4554
      %v4556 = vrot.slane %v4513, 2
      %v4557 = vsel %vm1810, %v4554, %v4556
      %v4558 = vrot.slane %v4514, 2
      %v4559 = vsel %vm1810, %v4556, %v4558
      %v4560 = vrot.slane %v4515, 2
      %v4561 = vsel %vm1810, %v4558, %v4560
      %v4562 = vrot.slane %v4516, 2
      %v4563 = vsel %vm1810, %v4560, %v4562
      %v4564 = vrot.slane %v4517, 2
      %v4565 = vsel %vm1810, %v4562, %v4564
      %v4566 = vrot.slane %v4518, 2
      %v4567 = vsel %vm1810, %v4564, %v4566
      %v4568 = vrot.slane %v4519, 2
      %v4569 = vsel %vm1810, %v4566, %v4568
      %v4570 = vrot.slane %v4520, 2
      %v4571 = vsel %vm1810, %v4568, %v4570
      %v4572 = vrot.slane %v4521, 2
      %v4573 = vsel %vm1810, %v4570, %v4572
      %v4574 = vrot.slane %v4522, 2
      %v4575 = vsel %vm1810, %v4572, %v4574
      %v4576 = vrot.slane %v4523, 2
      %v4577 = vsel %vm1810, %v4574, %v4576
      %v4578 = vrot.slane %v4524, 2
      %v4579 = vsel %vm1810, %v4576, %v4578
      %v4580 = vrot.slane %v4525, 2
      %v4581 = vsel %vm1810, %v4578, %v4580
      %4582 = vrot.lane.b32.xlu0 %v4547, 40
      %v4583 = vpop.permute.xlu0 %4582
      %4584 = vrot.lane.b32.xlu0 %v4549, 40
      %v4585 = vpop.permute.xlu0 %4584
      %4586 = vrot.lane.b32.xlu0 %v4551, 40
      %v4587 = vpop.permute.xlu0 %4586
      %4588 = vrot.lane.b32.xlu0 %v4553, 40
      %v4589 = vpop.permute.xlu0 %4588
      %4590 = vrot.lane.b32.xlu0 %v4555, 40
      %v4591 = vpop.permute.xlu0 %4590
      %4592 = vrot.lane.b32.xlu0 %v4557, 40
      %v4593 = vpop.permute.xlu0 %4592
      %4594 = vrot.lane.b32.xlu0 %v4559, 40
      %v4595 = vpop.permute.xlu0 %4594
      %4596 = vrot.lane.b32.xlu0 %v4561, 40
      %v4597 = vpop.permute.xlu0 %4596
      %4598 = vrot.lane.b32.xlu0 %v4563, 40
      %v4599 = vpop.permute.xlu0 %4598
      %4600 = vrot.lane.b32.xlu0 %v4565, 40
      %v4601 = vpop.permute.xlu0 %4600
      %4602 = vrot.lane.b32.xlu0 %v4567, 40
      %v4603 = vpop.permute.xlu0 %4602
      %4604 = vrot.lane.b32.xlu0 %v4569, 40
      %v4605 = vpop.permute.xlu0 %4604
      %4606 = vrot.lane.b32.xlu0 %v4571, 40
      %v4607 = vpop.permute.xlu0 %4606
      %4608 = vrot.lane.b32.xlu0 %v4573, 40
      %v4609 = vpop.permute.xlu0 %4608
      %4610 = vrot.lane.b32.xlu0 %v4575, 40
      %v4611 = vpop.permute.xlu0 %4610
      %4612 = vrot.lane.b32.xlu0 %v4577, 40
      %v4613 = vpop.permute.xlu0 %4612
      %4614 = vrot.lane.b32.xlu0 %v4579, 40
      %v4615 = vpop.permute.xlu0 %4614
      %4616 = vrot.lane.b32.xlu0 %v4581, 40
      %v4617 = vpop.permute.xlu0 %4616
      %vm4636 = vcmask 392512
      %4637 = vst.msk [vmem:[#allocation4] sm:$0xff] %vm4636, %v4583
      %4638 = vst.msk [vmem:[#allocation4 + $0x8] sm:$0xff] %vm4636, %v4585
      %4639 = vst.msk [vmem:[#allocation4 + $0x10] sm:$0xff] %vm4636, %v4587
      %4640 = vst.msk [vmem:[#allocation4 + $0x18] sm:$0xff] %vm4636, %v4589
      %4641 = vst.msk [vmem:[#allocation4 + $0x20] sm:$0xff] %vm4636, %v4591
      %4642 = vst.msk [vmem:[#allocation4 + $0x28] sm:$0xff] %vm4636, %v4593
      %4643 = vst.msk [vmem:[#allocation4 + $0x30] sm:$0xff] %vm4636, %v4595
      %4644 = vst.msk [vmem:[#allocation4 + $0x38] sm:$0xff] %vm4636, %v4597
      %4645 = vst.msk [vmem:[#allocation4 + $0x40] sm:$0xff] %vm4636, %v4599
      %4646 = vst.msk [vmem:[#allocation4 + $0x48] sm:$0xff] %vm4636, %v4601
      %4647 = vst.msk [vmem:[#allocation4 + $0x50] sm:$0xff] %vm4636, %v4603
      %4648 = vst.msk [vmem:[#allocation4 + $0x58] sm:$0xff] %vm4636, %v4605
      %4649 = vst.msk [vmem:[#allocation4 + $0x60] sm:$0xff] %vm4636, %v4607
      %4650 = vst.msk [vmem:[#allocation4 + $0x68] sm:$0xff] %vm4636, %v4609
      %4651 = vst.msk [vmem:[#allocation4 + $0x70] sm:$0xff] %vm4636, %v4611
      %4652 = vst.msk [vmem:[#allocation4 + $0x78] sm:$0xff] %vm4636, %v4613
      %4653 = vst.msk [vmem:[#allocation4 + $0x80] sm:$0xff] %vm4636, %v4615
      %4654 = vst.msk [vmem:[#allocation4 + $0x88] sm:$0xff] %vm4636, %v4617
      %v4655 = vld [vmem:[#allocation3 + $0x10] sm:$0xfc]
      %v4656 = vld [vmem:[#allocation3 + $0x18] sm:$0xff]
      %v4657 = vld [vmem:[#allocation3 + $0x20] sm:$0xff]
      %v4658 = vld [vmem:[#allocation3 + $0x28] sm:$0xff]
      %v4659 = vld [vmem:[#allocation3 + $0x30] sm:$0xff]
      %v4660 = vld [vmem:[#allocation3 + $0x38] sm:$0xff]
      %v4661 = vld [vmem:[#allocation3 + $0x40] sm:$0xff]
      %v4662 = vld [vmem:[#allocation3 + $0x48] sm:$0xff]
      %v4663 = vld [vmem:[#allocation3 + $0x50] sm:$0xff]
      %v4664 = vld [vmem:[#allocation3 + $0x58] sm:$0xff]
      %v4665 = vld [vmem:[#allocation3 + $0x60] sm:$0xff]
      %v4666 = vld [vmem:[#allocation3 + $0x68] sm:$0xff]
      %v4667 = vld [vmem:[#allocation3 + $0x70] sm:$0xff]
      %v4668 = vld [vmem:[#allocation3 + $0x78] sm:$0xff]
      %v4669 = vld [vmem:[#allocation3 + $0x80] sm:$0xff]
      %v4670 = vld [vmem:[#allocation3 + $0x88] sm:$0xff]
      %v4671 = vld [vmem:[#allocation3 + $0x90] sm:$0xff]
      %v4672 = vld [vmem:[#allocation3 + $0x98] sm:$0xff]
      %v4673 = vld [vmem:[#allocation3 + $0xa0] sm:$0x3]
      %v4693 = vrot.slane %v4655, 2
      %v4694 = vrot.slane %v4656, 2
      %v4695 = vsel %vm1810, %v4693, %v4694
      %v4696 = vrot.slane %v4657, 2
      %v4697 = vsel %vm1810, %v4694, %v4696
      %v4698 = vrot.slane %v4658, 2
      %v4699 = vsel %vm1810, %v4696, %v4698
      %v4700 = vrot.slane %v4659, 2
      %v4701 = vsel %vm1810, %v4698, %v4700
      %v4702 = vrot.slane %v4660, 2
      %v4703 = vsel %vm1810, %v4700, %v4702
      %v4704 = vrot.slane %v4661, 2
      %v4705 = vsel %vm1810, %v4702, %v4704
      %v4706 = vrot.slane %v4662, 2
      %v4707 = vsel %vm1810, %v4704, %v4706
      %v4708 = vrot.slane %v4663, 2
      %v4709 = vsel %vm1810, %v4706, %v4708
      %v4710 = vrot.slane %v4664, 2
      %v4711 = vsel %vm1810, %v4708, %v4710
      %v4712 = vrot.slane %v4665, 2
      %v4713 = vsel %vm1810, %v4710, %v4712
      %v4714 = vrot.slane %v4666, 2
      %v4715 = vsel %vm1810, %v4712, %v4714
      %v4716 = vrot.slane %v4667, 2
      %v4717 = vsel %vm1810, %v4714, %v4716
      %v4718 = vrot.slane %v4668, 2
      %v4719 = vsel %vm1810, %v4716, %v4718
      %v4720 = vrot.slane %v4669, 2
      %v4721 = vsel %vm1810, %v4718, %v4720
      %v4722 = vrot.slane %v4670, 2
      %v4723 = vsel %vm1810, %v4720, %v4722
      %v4724 = vrot.slane %v4671, 2
      %v4725 = vsel %vm1810, %v4722, %v4724
      %v4726 = vrot.slane %v4672, 2
      %v4727 = vsel %vm1810, %v4724, %v4726
      %v4728 = vrot.slane %v4673, 2
      %v4729 = vsel %vm1810, %v4726, %v4728
      %4730 = vrot.lane.b32.xlu0 %v4695, 48
      %v4731 = vpop.permute.xlu0 %4730
      %4732 = vrot.lane.b32.xlu0 %v4697, 48
      %v4733 = vpop.permute.xlu0 %4732
      %4734 = vrot.lane.b32.xlu0 %v4699, 48
      %v4735 = vpop.permute.xlu0 %4734
      %4736 = vrot.lane.b32.xlu0 %v4701, 48
      %v4737 = vpop.permute.xlu0 %4736
      %4738 = vrot.lane.b32.xlu0 %v4703, 48
      %v4739 = vpop.permute.xlu0 %4738
      %4740 = vrot.lane.b32.xlu0 %v4705, 48
      %v4741 = vpop.permute.xlu0 %4740
      %4742 = vrot.lane.b32.xlu0 %v4707, 48
      %v4743 = vpop.permute.xlu0 %4742
      %4744 = vrot.lane.b32.xlu0 %v4709, 48
      %v4745 = vpop.permute.xlu0 %4744
      %4746 = vrot.lane.b32.xlu0 %v4711, 48
      %v4747 = vpop.permute.xlu0 %4746
      %4748 = vrot.lane.b32.xlu0 %v4713, 48
      %v4749 = vpop.permute.xlu0 %4748
      %4750 = vrot.lane.b32.xlu0 %v4715, 48
      %v4751 = vpop.permute.xlu0 %4750
      %4752 = vrot.lane.b32.xlu0 %v4717, 48
      %v4753 = vpop.permute.xlu0 %4752
      %4754 = vrot.lane.b32.xlu0 %v4719, 48
      %v4755 = vpop.permute.xlu0 %4754
      %4756 = vrot.lane.b32.xlu0 %v4721, 48
      %v4757 = vpop.permute.xlu0 %4756
      %4758 = vrot.lane.b32.xlu0 %v4723, 48
      %v4759 = vpop.permute.xlu0 %4758
      %4760 = vrot.lane.b32.xlu0 %v4725, 48
      %v4761 = vpop.permute.xlu0 %4760
      %4762 = vrot.lane.b32.xlu0 %v4727, 48
      %v4763 = vpop.permute.xlu0 %4762
      %4764 = vrot.lane.b32.xlu0 %v4729, 48
      %v4765 = vpop.permute.xlu0 %4764
      %vm4784 = vcmask 458112
      %4785 = vst.msk [vmem:[#allocation4] sm:$0xff] %vm4784, %v4731
      %4786 = vst.msk [vmem:[#allocation4 + $0x8] sm:$0xff] %vm4784, %v4733
      %4787 = vst.msk [vmem:[#allocation4 + $0x10] sm:$0xff] %vm4784, %v4735
      %4788 = vst.msk [vmem:[#allocation4 + $0x18] sm:$0xff] %vm4784, %v4737
      %4789 = vst.msk [vmem:[#allocation4 + $0x20] sm:$0xff] %vm4784, %v4739
      %4790 = vst.msk [vmem:[#allocation4 + $0x28] sm:$0xff] %vm4784, %v4741
      %4791 = vst.msk [vmem:[#allocation4 + $0x30] sm:$0xff] %vm4784, %v4743
      %4792 = vst.msk [vmem:[#allocation4 + $0x38] sm:$0xff] %vm4784, %v4745
      %4793 = vst.msk [vmem:[#allocation4 + $0x40] sm:$0xff] %vm4784, %v4747
      %4794 = vst.msk [vmem:[#allocation4 + $0x48] sm:$0xff] %vm4784, %v4749
      %4795 = vst.msk [vmem:[#allocation4 + $0x50] sm:$0xff] %vm4784, %v4751
      %4796 = vst.msk [vmem:[#allocation4 + $0x58] sm:$0xff] %vm4784, %v4753
      %4797 = vst.msk [vmem:[#allocation4 + $0x60] sm:$0xff] %vm4784, %v4755
      %4798 = vst.msk [vmem:[#allocation4 + $0x68] sm:$0xff] %vm4784, %v4757
      %4799 = vst.msk [vmem:[#allocation4 + $0x70] sm:$0xff] %vm4784, %v4759
      %4800 = vst.msk [vmem:[#allocation4 + $0x78] sm:$0xff] %vm4784, %v4761
      %4801 = vst.msk [vmem:[#allocation4 + $0x80] sm:$0xff] %vm4784, %v4763
      %4802 = vst.msk [vmem:[#allocation4 + $0x88] sm:$0xff] %vm4784, %v4765
      %v4803 = vld [vmem:[#allocation3 + $0x10] sm:$0xfc]
      %v4804 = vld [vmem:[#allocation3 + $0x18] sm:$0xff]
      %v4805 = vld [vmem:[#allocation3 + $0x20] sm:$0xff]
      %v4806 = vld [vmem:[#allocation3 + $0x28] sm:$0xff]
      %v4807 = vld [vmem:[#allocation3 + $0x30] sm:$0xff]
      %v4808 = vld [vmem:[#allocation3 + $0x38] sm:$0xff]
      %v4809 = vld [vmem:[#allocation3 + $0x40] sm:$0xff]
      %v4810 = vld [vmem:[#allocation3 + $0x48] sm:$0xff]
      %v4811 = vld [vmem:[#allocation3 + $0x50] sm:$0xff]
      %v4812 = vld [vmem:[#allocation3 + $0x58] sm:$0xff]
      %v4813 = vld [vmem:[#allocation3 + $0x60] sm:$0xff]
      %v4814 = vld [vmem:[#allocation3 + $0x68] sm:$0xff]
      %v4815 = vld [vmem:[#allocation3 + $0x70] sm:$0xff]
      %v4816 = vld [vmem:[#allocation3 + $0x78] sm:$0xff]
      %v4817 = vld [vmem:[#allocation3 + $0x80] sm:$0xff]
      %v4818 = vld [vmem:[#allocation3 + $0x88] sm:$0xff]
      %v4819 = vld [vmem:[#allocation3 + $0x90] sm:$0xff]
      %v4820 = vld [vmem:[#allocation3 + $0x98] sm:$0xff]
      %v4821 = vld [vmem:[#allocation3 + $0xa0] sm:$0x7]
      %v4823 = vshrl.u32 %v4803, 16
      %v4825 = vrot.slane %v4823, 2
      %v4826 = vshll.u32 %v4803, 16
      %v4828 = vrot.slane %v4826, 3
      %v4829 = vor.u32 %v4825, %v4828
      %v4831 = vshrl.u32 %v4804, 16
      %v4833 = vrot.slane %v4831, 2
      %v4834 = vshll.u32 %v4804, 16
      %v4836 = vrot.slane %v4834, 3
      %v4837 = vor.u32 %v4833, %v4836
      %v4838 = vsel %vm2291, %v4829, %v4837
      %v4840 = vshrl.u32 %v4805, 16
      %v4842 = vrot.slane %v4840, 2
      %v4843 = vshll.u32 %v4805, 16
      %v4845 = vrot.slane %v4843, 3
      %v4846 = vor.u32 %v4842, %v4845
      %v4847 = vsel %vm2291, %v4837, %v4846
      %v4849 = vshrl.u32 %v4806, 16
      %v4851 = vrot.slane %v4849, 2
      %v4852 = vshll.u32 %v4806, 16
      %v4854 = vrot.slane %v4852, 3
      %v4855 = vor.u32 %v4851, %v4854
      %v4856 = vsel %vm2291, %v4846, %v4855
      %v4858 = vshrl.u32 %v4807, 16
      %v4860 = vrot.slane %v4858, 2
      %v4861 = vshll.u32 %v4807, 16
      %v4863 = vrot.slane %v4861, 3
      %v4864 = vor.u32 %v4860, %v4863
      %v4865 = vsel %vm2291, %v4855, %v4864
      %v4867 = vshrl.u32 %v4808, 16
      %v4869 = vrot.slane %v4867, 2
      %v4870 = vshll.u32 %v4808, 16
      %v4872 = vrot.slane %v4870, 3
      %v4873 = vor.u32 %v4869, %v4872
      %v4874 = vsel %vm2291, %v4864, %v4873
      %v4876 = vshrl.u32 %v4809, 16
      %v4878 = vrot.slane %v4876, 2
      %v4879 = vshll.u32 %v4809, 16
      %v4881 = vrot.slane %v4879, 3
      %v4882 = vor.u32 %v4878, %v4881
      %v4883 = vsel %vm2291, %v4873, %v4882
      %v4885 = vshrl.u32 %v4810, 16
      %v4887 = vrot.slane %v4885, 2
      %v4888 = vshll.u32 %v4810, 16
      %v4890 = vrot.slane %v4888, 3
      %v4891 = vor.u32 %v4887, %v4890
      %v4892 = vsel %vm2291, %v4882, %v4891
      %v4894 = vshrl.u32 %v4811, 16
      %v4896 = vrot.slane %v4894, 2
      %v4897 = vshll.u32 %v4811, 16
      %v4899 = vrot.slane %v4897, 3
      %v4900 = vor.u32 %v4896, %v4899
      %v4901 = vsel %vm2291, %v4891, %v4900
      %v4903 = vshrl.u32 %v4812, 16
      %v4905 = vrot.slane %v4903, 2
      %v4906 = vshll.u32 %v4812, 16
      %v4908 = vrot.slane %v4906, 3
      %v4909 = vor.u32 %v4905, %v4908
      %v4910 = vsel %vm2291, %v4900, %v4909
      %v4912 = vshrl.u32 %v4813, 16
      %v4914 = vrot.slane %v4912, 2
      %v4915 = vshll.u32 %v4813, 16
      %v4917 = vrot.slane %v4915, 3
      %v4918 = vor.u32 %v4914, %v4917
      %v4919 = vsel %vm2291, %v4909, %v4918
      %v4921 = vshrl.u32 %v4814, 16
      %v4923 = vrot.slane %v4921, 2
      %v4924 = vshll.u32 %v4814, 16
      %v4926 = vrot.slane %v4924, 3
      %v4927 = vor.u32 %v4923, %v4926
      %v4928 = vsel %vm2291, %v4918, %v4927
      %v4930 = vshrl.u32 %v4815, 16
      %v4932 = vrot.slane %v4930, 2
      %v4933 = vshll.u32 %v4815, 16
      %v4935 = vrot.slane %v4933, 3
      %v4936 = vor.u32 %v4932, %v4935
      %v4937 = vsel %vm2291, %v4927, %v4936
      %v4939 = vshrl.u32 %v4816, 16
      %v4941 = vrot.slane %v4939, 2
      %v4942 = vshll.u32 %v4816, 16
      %v4944 = vrot.slane %v4942, 3
      %v4945 = vor.u32 %v4941, %v4944
      %v4946 = vsel %vm2291, %v4936, %v4945
      %v4948 = vshrl.u32 %v4817, 16
      %v4950 = vrot.slane %v4948, 2
      %v4951 = vshll.u32 %v4817, 16
      %v4953 = vrot.slane %v4951, 3
      %v4954 = vor.u32 %v4950, %v4953
      %v4955 = vsel %vm2291, %v4945, %v4954
      %v4957 = vshrl.u32 %v4818, 16
      %v4959 = vrot.slane %v4957, 2
      %v4960 = vshll.u32 %v4818, 16
      %v4962 = vrot.slane %v4960, 3
      %v4963 = vor.u32 %v4959, %v4962
      %v4964 = vsel %vm2291, %v4954, %v4963
      %v4966 = vshrl.u32 %v4819, 16
      %v4968 = vrot.slane %v4966, 2
      %v4969 = vshll.u32 %v4819, 16
      %v4971 = vrot.slane %v4969, 3
      %v4972 = vor.u32 %v4968, %v4971
      %v4973 = vsel %vm2291, %v4963, %v4972
      %v4975 = vshrl.u32 %v4820, 16
      %v4977 = vrot.slane %v4975, 2
      %v4978 = vshll.u32 %v4820, 16
      %v4980 = vrot.slane %v4978, 3
      %v4981 = vor.u32 %v4977, %v4980
      %v4982 = vsel %vm2291, %v4972, %v4981
      %v4984 = vshrl.u32 %v4821, 16
      %v4986 = vrot.slane %v4984, 2
      %v4987 = vshll.u32 %v4821, 16
      %v4989 = vrot.slane %v4987, 3
      %v4990 = vor.u32 %v4986, %v4989
      %v4991 = vsel %vm2291, %v4981, %v4990
      %4992 = vrot.lane.b32.xlu0 %v4838, 56
      %v4993 = vpop.permute.xlu0 %4992
      %4994 = vrot.lane.b32.xlu0 %v4847, 56
      %v4995 = vpop.permute.xlu0 %4994
      %4996 = vrot.lane.b32.xlu0 %v4856, 56
      %v4997 = vpop.permute.xlu0 %4996
      %4998 = vrot.lane.b32.xlu0 %v4865, 56
      %v4999 = vpop.permute.xlu0 %4998
      %5000 = vrot.lane.b32.xlu0 %v4874, 56
      %v5001 = vpop.permute.xlu0 %5000
      %5002 = vrot.lane.b32.xlu0 %v4883, 56
      %v5003 = vpop.permute.xlu0 %5002
      %5004 = vrot.lane.b32.xlu0 %v4892, 56
      %v5005 = vpop.permute.xlu0 %5004
      %5006 = vrot.lane.b32.xlu0 %v4901, 56
      %v5007 = vpop.permute.xlu0 %5006
      %5008 = vrot.lane.b32.xlu0 %v4910, 56
      %v5009 = vpop.permute.xlu0 %5008
      %5010 = vrot.lane.b32.xlu0 %v4919, 56
      %v5011 = vpop.permute.xlu0 %5010
      %5012 = vrot.lane.b32.xlu0 %v4928, 56
      %v5013 = vpop.permute.xlu0 %5012
      %5014 = vrot.lane.b32.xlu0 %v4937, 56
      %v5015 = vpop.permute.xlu0 %5014
      %5016 = vrot.lane.b32.xlu0 %v4946, 56
      %v5017 = vpop.permute.xlu0 %5016
      %5018 = vrot.lane.b32.xlu0 %v4955, 56
      %v5019 = vpop.permute.xlu0 %5018
      %5020 = vrot.lane.b32.xlu0 %v4964, 56
      %v5021 = vpop.permute.xlu0 %5020
      %5022 = vrot.lane.b32.xlu0 %v4973, 56
      %v5023 = vpop.permute.xlu0 %5022
      %5024 = vrot.lane.b32.xlu0 %v4982, 56
      %v5025 = vpop.permute.xlu0 %5024
      %5026 = vrot.lane.b32.xlu0 %v4991, 56
      %v5027 = vpop.permute.xlu0 %5026
      %vm5046 = vcmask 523712
      %5047 = vst.msk [vmem:[#allocation4] sm:$0xff] %vm5046, %v4993
      %5048 = vst.msk [vmem:[#allocation4 + $0x8] sm:$0xff] %vm5046, %v4995
      %5049 = vst.msk [vmem:[#allocation4 + $0x10] sm:$0xff] %vm5046, %v4997
      %5050 = vst.msk [vmem:[#allocation4 + $0x18] sm:$0xff] %vm5046, %v4999
      %5051 = vst.msk [vmem:[#allocation4 + $0x20] sm:$0xff] %vm5046, %v5001
      %5052 = vst.msk [vmem:[#allocation4 + $0x28] sm:$0xff] %vm5046, %v5003
      %5053 = vst.msk [vmem:[#allocation4 + $0x30] sm:$0xff] %vm5046, %v5005
      %5054 = vst.msk [vmem:[#allocation4 + $0x38] sm:$0xff] %vm5046, %v5007
      %5055 = vst.msk [vmem:[#allocation4 + $0x40] sm:$0xff] %vm5046, %v5009
      %5056 = vst.msk [vmem:[#allocation4 + $0x48] sm:$0xff] %vm5046, %v5011
      %5057 = vst.msk [vmem:[#allocation4 + $0x50] sm:$0xff] %vm5046, %v5013
      %5058 = vst.msk [vmem:[#allocation4 + $0x58] sm:$0xff] %vm5046, %v5015
      %5059 = vst.msk [vmem:[#allocation4 + $0x60] sm:$0xff] %vm5046, %v5017
      %5060 = vst.msk [vmem:[#allocation4 + $0x68] sm:$0xff] %vm5046, %v5019
      %5061 = vst.msk [vmem:[#allocation4 + $0x70] sm:$0xff] %vm5046, %v5021
      %5062 = vst.msk [vmem:[#allocation4 + $0x78] sm:$0xff] %vm5046, %v5023
      %5063 = vst.msk [vmem:[#allocation4 + $0x80] sm:$0xff] %vm5046, %v5025
      %5064 = vst.msk [vmem:[#allocation4 + $0x88] sm:$0xff] %vm5046, %v5027
      %v5065 = vld [vmem:[#allocation3 + $0x10] sm:$0xf8]
      %v5066 = vld [vmem:[#allocation3 + $0x18] sm:$0xff]
      %v5067 = vld [vmem:[#allocation3 + $0x20] sm:$0xff]
      %v5068 = vld [vmem:[#allocation3 + $0x28] sm:$0xff]
      %v5069 = vld [vmem:[#allocation3 + $0x30] sm:$0xff]
      %v5070 = vld [vmem:[#allocation3 + $0x38] sm:$0xff]
      %v5071 = vld [vmem:[#allocation3 + $0x40] sm:$0xff]
      %v5072 = vld [vmem:[#allocation3 + $0x48] sm:$0xff]
      %v5073 = vld [vmem:[#allocation3 + $0x50] sm:$0xff]
      %v5074 = vld [vmem:[#allocation3 + $0x58] sm:$0xff]
      %v5075 = vld [vmem:[#allocation3 + $0x60] sm:$0xff]
      %v5076 = vld [vmem:[#allocation3 + $0x68] sm:$0xff]
      %v5077 = vld [vmem:[#allocation3 + $0x70] sm:$0xff]
      %v5078 = vld [vmem:[#allocation3 + $0x78] sm:$0xff]
      %v5079 = vld [vmem:[#allocation3 + $0x80] sm:$0xff]
      %v5080 = vld [vmem:[#allocation3 + $0x88] sm:$0xff]
      %v5081 = vld [vmem:[#allocation3 + $0x90] sm:$0xff]
      %v5082 = vld [vmem:[#allocation3 + $0x98] sm:$0xff]
      %v5083 = vld [vmem:[#allocation3 + $0xa0] sm:$0x7]
      %v5103 = vrot.slane %v5065, 3
      %v5104 = vrot.slane %v5066, 3
      %v5105 = vsel %vm2665, %v5103, %v5104
      %v5106 = vrot.slane %v5067, 3
      %v5107 = vsel %vm2665, %v5104, %v5106
      %v5108 = vrot.slane %v5068, 3
      %v5109 = vsel %vm2665, %v5106, %v5108
      %v5110 = vrot.slane %v5069, 3
      %v5111 = vsel %vm2665, %v5108, %v5110
      %v5112 = vrot.slane %v5070, 3
      %v5113 = vsel %vm2665, %v5110, %v5112
      %v5114 = vrot.slane %v5071, 3
      %v5115 = vsel %vm2665, %v5112, %v5114
      %v5116 = vrot.slane %v5072, 3
      %v5117 = vsel %vm2665, %v5114, %v5116
      %v5118 = vrot.slane %v5073, 3
      %v5119 = vsel %vm2665, %v5116, %v5118
      %v5120 = vrot.slane %v5074, 3
      %v5121 = vsel %vm2665, %v5118, %v5120
      %v5122 = vrot.slane %v5075, 3
      %v5123 = vsel %vm2665, %v5120, %v5122
      %v5124 = vrot.slane %v5076, 3
      %v5125 = vsel %vm2665, %v5122, %v5124
      %v5126 = vrot.slane %v5077, 3
      %v5127 = vsel %vm2665, %v5124, %v5126
      %v5128 = vrot.slane %v5078, 3
      %v5129 = vsel %vm2665, %v5126, %v5128
      %v5130 = vrot.slane %v5079, 3
      %v5131 = vsel %vm2665, %v5128, %v5130
      %v5132 = vrot.slane %v5080, 3
      %v5133 = vsel %vm2665, %v5130, %v5132
      %v5134 = vrot.slane %v5081, 3
      %v5135 = vsel %vm2665, %v5132, %v5134
      %v5136 = vrot.slane %v5082, 3
      %v5137 = vsel %vm2665, %v5134, %v5136
      %v5138 = vrot.slane %v5083, 3
      %v5139 = vsel %vm2665, %v5136, %v5138
      %5140 = vrot.lane.b32.xlu0 %v5105, 64
      %v5141 = vpop.permute.xlu0 %5140
      %5142 = vrot.lane.b32.xlu0 %v5107, 64
      %v5143 = vpop.permute.xlu0 %5142
      %5144 = vrot.lane.b32.xlu0 %v5109, 64
      %v5145 = vpop.permute.xlu0 %5144
      %5146 = vrot.lane.b32.xlu0 %v5111, 64
      %v5147 = vpop.permute.xlu0 %5146
      %5148 = vrot.lane.b32.xlu0 %v5113, 64
      %v5149 = vpop.permute.xlu0 %5148
      %5150 = vrot.lane.b32.xlu0 %v5115, 64
      %v5151 = vpop.permute.xlu0 %5150
      %5152 = vrot.lane.b32.xlu0 %v5117, 64
      %v5153 = vpop.permute.xlu0 %5152
      %5154 = vrot.lane.b32.xlu0 %v5119, 64
      %v5155 = vpop.permute.xlu0 %5154
      %5156 = vrot.lane.b32.xlu0 %v5121, 64
      %v5157 = vpop.permute.xlu0 %5156
      %5158 = vrot.lane.b32.xlu0 %v5123, 64
      %v5159 = vpop.permute.xlu0 %5158
      %5160 = vrot.lane.b32.xlu0 %v5125, 64
      %v5161 = vpop.permute.xlu0 %5160
      %5162 = vrot.lane.b32.xlu0 %v5127, 64
      %v5163 = vpop.permute.xlu0 %5162
      %5164 = vrot.lane.b32.xlu0 %v5129, 64
      %v5165 = vpop.permute.xlu0 %5164
      %5166 = vrot.lane.b32.xlu0 %v5131, 64
      %v5167 = vpop.permute.xlu0 %5166
      %5168 = vrot.lane.b32.xlu0 %v5133, 64
      %v5169 = vpop.permute.xlu0 %5168
      %5170 = vrot.lane.b32.xlu0 %v5135, 64
      %v5171 = vpop.permute.xlu0 %5170
      %5172 = vrot.lane.b32.xlu0 %v5137, 64
      %v5173 = vpop.permute.xlu0 %5172
      %5174 = vrot.lane.b32.xlu0 %v5139, 64
      %v5175 = vpop.permute.xlu0 %5174
      %vm5194 = vcmask 589312
      %5195 = vst.msk [vmem:[#allocation4] sm:$0xff] %vm5194, %v5141
      %5196 = vst.msk [vmem:[#allocation4 + $0x8] sm:$0xff] %vm5194, %v5143
      %5197 = vst.msk [vmem:[#allocation4 + $0x10] sm:$0xff] %vm5194, %v5145
      %5198 = vst.msk [vmem:[#allocation4 + $0x18] sm:$0xff] %vm5194, %v5147
      %5199 = vst.msk [vmem:[#allocation4 + $0x20] sm:$0xff] %vm5194, %v5149
      %5200 = vst.msk [vmem:[#allocation4 + $0x28] sm:$0xff] %vm5194, %v5151
      %5201 = vst.msk [vmem:[#allocation4 + $0x30] sm:$0xff] %vm5194, %v5153
      %5202 = vst.msk [vmem:[#allocation4 + $0x38] sm:$0xff] %vm5194, %v5155
      %5203 = vst.msk [vmem:[#allocation4 + $0x40] sm:$0xff] %vm5194, %v5157
      %5204 = vst.msk [vmem:[#allocation4 + $0x48] sm:$0xff] %vm5194, %v5159
      %5205 = vst.msk [vmem:[#allocation4 + $0x50] sm:$0xff] %vm5194, %v5161
      %5206 = vst.msk [vmem:[#allocation4 + $0x58] sm:$0xff] %vm5194, %v5163
      %5207 = vst.msk [vmem:[#allocation4 + $0x60] sm:$0xff] %vm5194, %v5165
      %5208 = vst.msk [vmem:[#allocation4 + $0x68] sm:$0xff] %vm5194, %v5167
      %5209 = vst.msk [vmem:[#allocation4 + $0x70] sm:$0xff] %vm5194, %v5169
      %5210 = vst.msk [vmem:[#allocation4 + $0x78] sm:$0xff] %vm5194, %v5171
      %5211 = vst.msk [vmem:[#allocation4 + $0x80] sm:$0xff] %vm5194, %v5173
      %5212 = vst.msk [vmem:[#allocation4 + $0x88] sm:$0xff] %vm5194, %v5175
      %v5213 = vld [vmem:[#allocation4] sm:$0xff]
      %v5214 = vld [vmem:[#allocation4 + $0x8] sm:$0xff]
      %v5215 = vld [vmem:[#allocation4 + $0x10] sm:$0xff]
      %v5216 = vld [vmem:[#allocation4 + $0x18] sm:$0xff]
      %v5217 = vld [vmem:[#allocation4 + $0x20] sm:$0xff]
      %v5218 = vld [vmem:[#allocation4 + $0x28] sm:$0xff]
      %v5219 = vld [vmem:[#allocation4 + $0x30] sm:$0xff]
      %v5220 = vld [vmem:[#allocation4 + $0x38] sm:$0xff]
      %v5221 = vld [vmem:[#allocation4 + $0x40] sm:$0xff]
      %v5222 = vld [vmem:[#allocation4 + $0x48] sm:$0xff]
      %v5223 = vld [vmem:[#allocation4 + $0x50] sm:$0xff]
      %v5224 = vld [vmem:[#allocation4 + $0x58] sm:$0xff]
      %v5225 = vld [vmem:[#allocation4 + $0x60] sm:$0xff]
      %v5226 = vld [vmem:[#allocation4 + $0x68] sm:$0xff]
      %v5227 = vld [vmem:[#allocation4 + $0x70] sm:$0xff]
      %v5228 = vld [vmem:[#allocation4 + $0x78] sm:$0xff]
      %v5229 = vld [vmem:[#allocation4 + $0x80] sm:$0xff]
      %v5230 = vld [vmem:[#allocation4 + $0x88] sm:$0xff]
      %v5231 = vld [vmem:[%s5] sm:$0xf]
      %v5232 = vld [vmem:[%s5 + $0x4] sm:$0xf]
      %v5233 = vld [vmem:[%s5 + $0x8] sm:$0xf]
      %v5234 = vld [vmem:[%s5 + $0xc] sm:$0xf]
      %v5235 = vld [vmem:[%s5 + $0x10] sm:$0xf]
      %v5236 = vld [vmem:[%s5 + $0x14] sm:$0xf]
      %v5237 = vld [vmem:[%s5 + $0x18] sm:$0xf]
      %v5238 = vld [vmem:[%s5 + $0x1c] sm:$0xf]
      %v5239 = vld [vmem:[%s5 + $0x20] sm:$0xf]
      %v5249 = vunpack.c.l.b16 %v5231
      %v5250 = vunpack.c.l.b16 %v5232
      %v5251 = vunpack.c.l.b16 %v5233
      %v5252 = vunpack.c.l.b16 %v5234
      %v5253 = vunpack.c.l.b16 %v5235
      %v5254 = vunpack.c.l.b16 %v5236
      %v5255 = vunpack.c.l.b16 %v5237
      %v5256 = vunpack.c.l.b16 %v5238
      %v5257 = vunpack.c.l.b16 %v5239
      %v5258 = vpack.c.b16 %v5250, %v5249
      %v5259 = vpack.c.b16 %v5252, %v5251
      %v5260 = vpack.c.b16 %v5254, %v5253
      %v5261 = vpack.c.b16 %v5256, %v5255
      %v5262 = vpack.c.b16 %v5257, %v5257
      %vm5267 = vcmask 588800
      %v5269 = vsel %vm5267, %v5213, 0
      %v5272 = vsel %vm5267, %v5214, 0
      %v5275 = vsel %vm5267, %v5215, 0
      %v5278 = vsel %vm5267, %v5216, 0
      %v5281 = vsel %vm5267, %v5217, 0
      %v5284 = vsel %vm5267, %v5218, 0
      %v5287 = vsel %vm5267, %v5219, 0
      %v5290 = vsel %vm5267, %v5220, 0
      %v5293 = vsel %vm5267, %v5221, 0
      %v5296 = vsel %vm5267, %v5222, 0
      %v5299 = vsel %vm5267, %v5223, 0
      %v5302 = vsel %vm5267, %v5224, 0
      %v5305 = vsel %vm5267, %v5225, 0
      %v5308 = vsel %vm5267, %v5226, 0
      %v5311 = vsel %vm5267, %v5227, 0
      %v5314 = vsel %vm5267, %v5228, 0
      %v5317 = vsel %vm5267, %v5229, 0
      %v5320 = vsel %vm5267, %v5230, 0
      %vm5322 = vcmask 1043456
      %v5324 = vsel %vm5322, %v5262, 0
      %5326 = vmatprep.subr.bf16.mxu0 0
      %5327 = vmatpush1.bf16.msra.mxu0 %v5258
      %5328 = vmatprep.subr.bf16.mxu0 0
      %5329 = vmatpush1.bf16.msra.mxu0 %v5259
      %5330 = vmatprep.subr.bf16.mxu0 0
      %5331 = vmatpush1.bf16.msra.mxu0 %v5260
      %5332 = vmatprep.subr.bf16.mxu0 0
      %5333 = vmatpush1.bf16.msra.mxu0 %v5261
      %5334 = vmatprep.subr.bf16.mxu0 0
      %5335 = vmatpush1.bf16.msra.mxu0 %v5324
      %5336 = vmatprep.subr.bf16.mxu0 0
      %5337 = vmatpush1.bf16.msra.mxu0 0
      %5338 = vmatprep.subr.bf16.mxu0 0
      %5339 = vmatpush1.bf16.msra.mxu0 0
      %5340 = vmatprep.subr.bf16.mxu0 0
      %5341 = vmatpush1.bf16.msra.mxu0 0
      %5342 = vmatprep.subr.bf16.mxu0 0
      %5343 = vmatpush1.bf16.msra.mxu0 0
      %5344 = vmatprep.subr.bf16.mxu0 0
      %5345 = vmatpush1.bf16.msra.mxu0 0
      %5346 = vmatprep.subr.bf16.mxu0 0
      %5347 = vmatpush1.bf16.msra.mxu0 0
      %5348 = vmatprep.subr.bf16.mxu0 0
      %5349 = vmatpush1.bf16.msra.mxu0 0
      %5350 = vmatprep.subr.bf16.mxu0 0
      %5351 = vmatpush1.bf16.msra.mxu0 0
      %5352 = vmatprep.subr.bf16.mxu0 0
      %5353 = vmatpush1.bf16.msra.mxu0 0
      %5354 = vmatprep.subr.bf16.mxu0 0
      %5355 = vmatpush1.bf16.msra.mxu0 0
      %5356 = vmatprep.subr.bf16.mxu0 0
      %5357 = vmatpush1.bf16.msra.mxu0 0
      %5358 = vmatprep.mubr.bf16.mxu0 0
      %5359 = vmatmul.mubr.bf16.gmra.mrb[0].mxu0 %v5269
      %v5360 = vpop.f32.mrb[0].mxu0
      %v5361 = vadd.f32 0.0, %v5360
      %v5362 = vpop.f32.mrb[0].mxu0
      %v5363 = vpop.f32.mrb[0].mxu0
      %v5364 = vadd.f32 0.0, %v5363
      %v5365 = vpop.f32.mrb[0].mxu0
      %5366 = vmatprep.mubr.bf16.mxu0 0
      %5367 = vmatmul.mubr.bf16.gmra.mrb[0].mxu0 %v5272
      %v5368 = vpop.f32.mrb[0].mxu0
      %v5369 = vadd.f32 0.0, %v5368
      %v5370 = vpop.f32.mrb[0].mxu0
      %v5371 = vpop.f32.mrb[0].mxu0
      %v5372 = vadd.f32 0.0, %v5371
      %v5373 = vpop.f32.mrb[0].mxu0
      %5374 = vmatprep.mubr.bf16.mxu0 0
      %5375 = vmatmul.mubr.bf16.gmra.mrb[0].mxu0 %v5275
      %v5376 = vpop.f32.mrb[0].mxu0
      %v5377 = vadd.f32 0.0, %v5376
      %v5378 = vpop.f32.mrb[0].mxu0
      %v5379 = vpop.f32.mrb[0].mxu0
      %v5380 = vadd.f32 0.0, %v5379
      %v5381 = vpop.f32.mrb[0].mxu0
      %5382 = vmatprep.mubr.bf16.mxu0 0
      %5383 = vmatmul.mubr.bf16.gmra.mrb[0].mxu0 %v5278
      %v5384 = vpop.f32.mrb[0].mxu0
      %v5385 = vadd.f32 0.0, %v5384
      %v5386 = vpop.f32.mrb[0].mxu0
      %v5387 = vpop.f32.mrb[0].mxu0
      %v5388 = vadd.f32 0.0, %v5387
      %v5389 = vpop.f32.mrb[0].mxu0
      %5390 = vmatprep.mubr.bf16.mxu0 0
      %5391 = vmatmul.mubr.bf16.gmra.mrb[0].mxu0 %v5281
      %v5392 = vpop.f32.mrb[0].mxu0
      %v5393 = vadd.f32 0.0, %v5392
      %v5394 = vpop.f32.mrb[0].mxu0
      %v5395 = vpop.f32.mrb[0].mxu0
      %v5396 = vadd.f32 0.0, %v5395
      %v5397 = vpop.f32.mrb[0].mxu0
      %5398 = vmatprep.mubr.bf16.mxu0 0
      %5399 = vmatmul.mubr.bf16.gmra.mrb[0].mxu0 %v5284
      %v5400 = vpop.f32.mrb[0].mxu0
      %v5401 = vadd.f32 0.0, %v5400
      %v5402 = vpop.f32.mrb[0].mxu0
      %v5403 = vpop.f32.mrb[0].mxu0
      %v5404 = vadd.f32 0.0, %v5403
      %v5405 = vpop.f32.mrb[0].mxu0
      %5406 = vmatprep.mubr.bf16.mxu0 0
      %5407 = vmatmul.mubr.bf16.gmra.mrb[0].mxu0 %v5287
      %v5408 = vpop.f32.mrb[0].mxu0
      %v5409 = vadd.f32 0.0, %v5408
      %v5410 = vpop.f32.mrb[0].mxu0
      %v5411 = vpop.f32.mrb[0].mxu0
      %v5412 = vadd.f32 0.0, %v5411
      %v5413 = vpop.f32.mrb[0].mxu0
      %5414 = vmatprep.mubr.bf16.mxu0 0
      %5415 = vmatmul.mubr.bf16.gmra.mrb[0].mxu0 %v5290
      %v5416 = vpop.f32.mrb[0].mxu0
      %v5417 = vadd.f32 0.0, %v5416
      %v5418 = vpop.f32.mrb[0].mxu0
      %v5419 = vpop.f32.mrb[0].mxu0
      %v5420 = vadd.f32 0.0, %v5419
      %v5421 = vpop.f32.mrb[0].mxu0
      %5422 = vmatprep.mubr.bf16.mxu0 0
      %5423 = vmatmul.mubr.bf16.gmra.mrb[0].mxu0 %v5293
      %v5424 = vpop.f32.mrb[0].mxu0
      %v5425 = vadd.f32 0.0, %v5424
      %v5426 = vpop.f32.mrb[0].mxu0
      %v5427 = vpop.f32.mrb[0].mxu0
      %v5428 = vadd.f32 0.0, %v5427
      %v5429 = vpop.f32.mrb[0].mxu0
      %5430 = vmatprep.mubr.bf16.mxu0 0
      %5431 = vmatmul.mubr.bf16.gmra.mrb[0].mxu0 %v5296
      %v5432 = vpop.f32.mrb[0].mxu0
      %v5433 = vadd.f32 0.0, %v5432
      %v5434 = vpop.f32.mrb[0].mxu0
      %v5435 = vpop.f32.mrb[0].mxu0
      %v5436 = vadd.f32 0.0, %v5435
      %v5437 = vpop.f32.mrb[0].mxu0
      %5438 = vmatprep.mubr.bf16.mxu0 0
      %5439 = vmatmul.mubr.bf16.gmra.mrb[0].mxu0 %v5299
      %v5440 = vpop.f32.mrb[0].mxu0
      %v5441 = vadd.f32 0.0, %v5440
      %v5442 = vpop.f32.mrb[0].mxu0
      %v5443 = vpop.f32.mrb[0].mxu0
      %v5444 = vadd.f32 0.0, %v5443
      %v5445 = vpop.f32.mrb[0].mxu0
      %5446 = vmatprep.mubr.bf16.mxu0 0
      %5447 = vmatmul.mubr.bf16.gmra.mrb[0].mxu0 %v5302
      %v5448 = vpop.f32.mrb[0].mxu0
      %v5449 = vadd.f32 0.0, %v5448
      %v5450 = vpop.f32.mrb[0].mxu0
      %v5451 = vpop.f32.mrb[0].mxu0
      %v5452 = vadd.f32 0.0, %v5451
      %v5453 = vpop.f32.mrb[0].mxu0
      %5454 = vmatprep.mubr.bf16.mxu0 0
      %5455 = vmatmul.mubr.bf16.gmra.mrb[0].mxu0 %v5305
      %v5456 = vpop.f32.mrb[0].mxu0
      %v5457 = vadd.f32 0.0, %v5456
      %v5458 = vpop.f32.mrb[0].mxu0
      %v5459 = vpop.f32.mrb[0].mxu0
      %v5460 = vadd.f32 0.0, %v5459
      %v5461 = vpop.f32.mrb[0].mxu0
      %5462 = vmatprep.mubr.bf16.mxu0 0
      %5463 = vmatmul.mubr.bf16.gmra.mrb[0].mxu0 %v5308
      %v5464 = vpop.f32.mrb[0].mxu0
      %v5465 = vadd.f32 0.0, %v5464
      %v5466 = vpop.f32.mrb[0].mxu0
      %v5467 = vpop.f32.mrb[0].mxu0
      %v5468 = vadd.f32 0.0, %v5467
      %v5469 = vpop.f32.mrb[0].mxu0
      %5470 = vmatprep.mubr.bf16.mxu0 0
      %5471 = vmatmul.mubr.bf16.gmra.mrb[0].mxu0 %v5311
      %v5472 = vpop.f32.mrb[0].mxu0
      %v5473 = vadd.f32 0.0, %v5472
      %v5474 = vpop.f32.mrb[0].mxu0
      %v5475 = vpop.f32.mrb[0].mxu0
      %v5476 = vadd.f32 0.0, %v5475
      %v5477 = vpop.f32.mrb[0].mxu0
      %5478 = vmatprep.mubr.bf16.mxu0 0
      %5479 = vmatmul.mubr.bf16.gmra.mrb[0].mxu0 %v5314
      %v5480 = vpop.f32.mrb[0].mxu0
      %v5481 = vadd.f32 0.0, %v5480
      %v5482 = vpop.f32.mrb[0].mxu0
      %v5483 = vpop.f32.mrb[0].mxu0
      %v5484 = vadd.f32 0.0, %v5483
      %v5485 = vpop.f32.mrb[0].mxu0
      %5486 = vmatprep.mubr.bf16.mxu0 0
      %5487 = vmatmul.mubr.bf16.gmra.mrb[0].mxu0 %v5317
      %v5488 = vpop.f32.mrb[0].mxu0
      %v5489 = vadd.f32 0.0, %v5488
      %v5490 = vpop.f32.mrb[0].mxu0
      %v5491 = vpop.f32.mrb[0].mxu0
      %v5492 = vadd.f32 0.0, %v5491
      %v5493 = vpop.f32.mrb[0].mxu0
      %5494 = vmatprep.mubr.bf16.mxu0 0
      %5495 = vmatmul.mubr.bf16.gmra.mrb[0].mxu0 %v5320
      %v5496 = vpop.f32.mrb[0].mxu0
      %v5497 = vadd.f32 0.0, %v5496
      %v5498 = vpop.f32.mrb[0].mxu0
      %v5499 = vpop.f32.mrb[0].mxu0
      %v5500 = vadd.f32 0.0, %v5499
      %v5501 = vpop.f32.mrb[0].mxu0
      %5502 = vdwg.mxu0
      %v5503 = vld [vmem:[%s6] sm:$0x1]
      %v5505 = vlaneseq
      %v5506 = vshrl.u32 %v5505, 7
      %v5507 = vsub.s32 0, %v5506
      %v5508 = vrot.slane %v5503, %v5507
      %v5510 = vmul.f32 %v5361, %v5508
      %v5511 = vmul.f32 %v5364, %v5508
      %v5512 = vmul.f32 %v5369, %v5508
      %v5513 = vmul.f32 %v5372, %v5508
      %v5514 = vmul.f32 %v5377, %v5508
      %v5515 = vmul.f32 %v5380, %v5508
      %v5516 = vmul.f32 %v5385, %v5508
      %v5517 = vmul.f32 %v5388, %v5508
      %v5518 = vmul.f32 %v5393, %v5508
      %v5519 = vmul.f32 %v5396, %v5508
      %v5520 = vmul.f32 %v5401, %v5508
      %v5521 = vmul.f32 %v5404, %v5508
      %v5522 = vmul.f32 %v5409, %v5508
      %v5523 = vmul.f32 %v5412, %v5508
      %v5524 = vmul.f32 %v5417, %v5508
      %v5525 = vmul.f32 %v5420, %v5508
      %v5526 = vmul.f32 %v5425, %v5508
      %v5527 = vmul.f32 %v5428, %v5508
      %v5528 = vmul.f32 %v5433, %v5508
      %v5529 = vmul.f32 %v5436, %v5508
      %v5530 = vmul.f32 %v5441, %v5508
      %v5531 = vmul.f32 %v5444, %v5508
      %v5532 = vmul.f32 %v5449, %v5508
      %v5533 = vmul.f32 %v5452, %v5508
      %v5534 = vmul.f32 %v5457, %v5508
      %v5535 = vmul.f32 %v5460, %v5508
      %v5536 = vmul.f32 %v5465, %v5508
      %v5537 = vmul.f32 %v5468, %v5508
      %v5538 = vmul.f32 %v5473, %v5508
      %v5539 = vmul.f32 %v5476, %v5508
      %v5540 = vmul.f32 %v5481, %v5508
      %v5541 = vmul.f32 %v5484, %v5508
      %v5542 = vmul.f32 %v5489, %v5508
      %v5543 = vmul.f32 %v5492, %v5508
      %v5544 = vmul.f32 %v5497, %v5508
      %v5545 = vmul.f32 %v5500, %v5508
      %v5546 = vld [vmem:[%s7] sm:$0x1]
      %v5548 = vlaneseq
      %v5549 = vshrl.u32 %v5548, 7
      %v5550 = vsub.s32 0, %v5549
      %v5551 = vrot.slane %v5546, %v5550
      %v5553 = vadd.f32 %v5510, %v5551
      %v5554 = vadd.f32 %v5511, %v5551
      %v5555 = vadd.f32 %v5512, %v5551
      %v5556 = vadd.f32 %v5513, %v5551
      %v5557 = vadd.f32 %v5514, %v5551
      %v5558 = vadd.f32 %v5515, %v5551
      %v5559 = vadd.f32 %v5516, %v5551
      %v5560 = vadd.f32 %v5517, %v5551
      %v5561 = vadd.f32 %v5518, %v5551
      %v5562 = vadd.f32 %v5519, %v5551
      %v5563 = vadd.f32 %v5520, %v5551
      %v5564 = vadd.f32 %v5521, %v5551
      %v5565 = vadd.f32 %v5522, %v5551
      %v5566 = vadd.f32 %v5523, %v5551
      %v5567 = vadd.f32 %v5524, %v5551
      %v5568 = vadd.f32 %v5525, %v5551
      %v5569 = vadd.f32 %v5526, %v5551
      %v5570 = vadd.f32 %v5527, %v5551
      %v5571 = vadd.f32 %v5528, %v5551
      %v5572 = vadd.f32 %v5529, %v5551
      %v5573 = vadd.f32 %v5530, %v5551
      %v5574 = vadd.f32 %v5531, %v5551
      %v5575 = vadd.f32 %v5532, %v5551
      %v5576 = vadd.f32 %v5533, %v5551
      %v5577 = vadd.f32 %v5534, %v5551
      %v5578 = vadd.f32 %v5535, %v5551
      %v5579 = vadd.f32 %v5536, %v5551
      %v5580 = vadd.f32 %v5537, %v5551
      %v5581 = vadd.f32 %v5538, %v5551
      %v5582 = vadd.f32 %v5539, %v5551
      %v5583 = vadd.f32 %v5540, %v5551
      %v5584 = vadd.f32 %v5541, %v5551
      %v5585 = vadd.f32 %v5542, %v5551
      %v5586 = vadd.f32 %v5543, %v5551
      %v5587 = vadd.f32 %v5544, %v5551
      %v5588 = vadd.f32 %v5545, %v5551
      %v5589 = vmax.f32 %v5553, 0.0
      %v5590 = vmax.f32 %v5554, 0.0
      %v5591 = vmax.f32 %v5555, 0.0
      %v5592 = vmax.f32 %v5556, 0.0
      %v5593 = vmax.f32 %v5557, 0.0
      %v5594 = vmax.f32 %v5558, 0.0
      %v5595 = vmax.f32 %v5559, 0.0
      %v5596 = vmax.f32 %v5560, 0.0
      %v5597 = vmax.f32 %v5561, 0.0
      %v5598 = vmax.f32 %v5562, 0.0
      %v5599 = vmax.f32 %v5563, 0.0
      %v5600 = vmax.f32 %v5564, 0.0
      %v5601 = vmax.f32 %v5565, 0.0
      %v5602 = vmax.f32 %v5566, 0.0
      %v5603 = vmax.f32 %v5567, 0.0
      %v5604 = vmax.f32 %v5568, 0.0
      %v5605 = vmax.f32 %v5569, 0.0
      %v5606 = vmax.f32 %v5570, 0.0
      %v5607 = vmax.f32 %v5571, 0.0
      %v5608 = vmax.f32 %v5572, 0.0
      %v5609 = vmax.f32 %v5573, 0.0
      %v5610 = vmax.f32 %v5574, 0.0
      %v5611 = vmax.f32 %v5575, 0.0
      %v5612 = vmax.f32 %v5576, 0.0
      %v5613 = vmax.f32 %v5577, 0.0
      %v5614 = vmax.f32 %v5578, 0.0
      %v5615 = vmax.f32 %v5579, 0.0
      %v5616 = vmax.f32 %v5580, 0.0
      %v5617 = vmax.f32 %v5581, 0.0
      %v5618 = vmax.f32 %v5582, 0.0
      %v5619 = vmax.f32 %v5583, 0.0
      %v5620 = vmax.f32 %v5584, 0.0
      %v5621 = vmax.f32 %v5585, 0.0
      %v5622 = vmax.f32 %v5586, 0.0
      %v5623 = vmax.f32 %v5587, 0.0
      %v5624 = vmax.f32 %v5588, 0.0
      %5625 = vst.msk [vmem:[%s307] sm:$0xff] %vm3442, %v5589
      %5626 = vst.msk [vmem:[%s307 + $0x8] sm:$0xff] %vm3442, %v5590
      %5627 = vst.msk [vmem:[%s307 + $0x10] sm:$0xff] %vm3442, %v5591
      %5628 = vst.msk [vmem:[%s307 + $0x18] sm:$0xff] %vm3442, %v5592
      %5629 = vst.msk [vmem:[%s307 + $0x20] sm:$0xff] %vm3442, %v5593
      %5630 = vst.msk [vmem:[%s307 + $0x28] sm:$0xff] %vm3442, %v5594
      %5631 = vst.msk [vmem:[%s307 + $0x30] sm:$0xff] %vm3442, %v5595
      %5632 = vst.msk [vmem:[%s307 + $0x38] sm:$0xff] %vm3442, %v5596
      %5633 = vst.msk [vmem:[%s307 + $0x40] sm:$0xff] %vm3442, %v5597
      %5634 = vst.msk [vmem:[%s307 + $0x48] sm:$0xff] %vm3442, %v5598
      %5635 = vst.msk [vmem:[%s307 + $0x50] sm:$0xff] %vm3442, %v5599
      %5636 = vst.msk [vmem:[%s307 + $0x58] sm:$0xff] %vm3442, %v5600
      %5637 = vst.msk [vmem:[%s307 + $0x60] sm:$0xff] %vm3442, %v5601
      %5638 = vst.msk [vmem:[%s307 + $0x68] sm:$0xff] %vm3442, %v5602
      %5639 = vst.msk [vmem:[%s307 + $0x70] sm:$0xff] %vm3442, %v5603
      %5640 = vst.msk [vmem:[%s307 + $0x78] sm:$0xff] %vm3442, %v5604
      %5641 = vst.msk [vmem:[%s307 + $0x80] sm:$0xff] %vm3442, %v5605
      %5642 = vst.msk [vmem:[%s307 + $0x88] sm:$0xff] %vm3442, %v5606
      %5643 = vst.msk [vmem:[%s307 + $0x90] sm:$0xff] %vm3442, %v5607
      %5644 = vst.msk [vmem:[%s307 + $0x98] sm:$0xff] %vm3442, %v5608
      %5645 = vst.msk [vmem:[%s307 + $0xa0] sm:$0xff] %vm3442, %v5609
      %5646 = vst.msk [vmem:[%s307 + $0xa8] sm:$0xff] %vm3442, %v5610
      %5647 = vst.msk [vmem:[%s307 + $0xb0] sm:$0xff] %vm3442, %v5611
      %5648 = vst.msk [vmem:[%s307 + $0xb8] sm:$0xff] %vm3442, %v5612
      %5649 = vst.msk [vmem:[%s307 + $0xc0] sm:$0xff] %vm3442, %v5613
      %5650 = vst.msk [vmem:[%s307 + $0xc8] sm:$0xff] %vm3442, %v5614
      %5651 = vst.msk [vmem:[%s307 + $0xd0] sm:$0xff] %vm3442, %v5615
      %5652 = vst.msk [vmem:[%s307 + $0xd8] sm:$0xff] %vm3442, %v5616
      %5653 = vst.msk [vmem:[%s307 + $0xe0] sm:$0xff] %vm3442, %v5617
      %5654 = vst.msk [vmem:[%s307 + $0xe8] sm:$0xff] %vm3442, %v5618
      %5655 = vst.msk [vmem:[%s307 + $0xf0] sm:$0xff] %vm3442, %v5619
      %5656 = vst.msk [vmem:[%s307 + $0xf8] sm:$0xff] %vm3442, %v5620
      %5657 = vst.msk [vmem:[%s307 + $0x100] sm:$0xff] %vm3442, %v5621
      %5658 = vst.msk [vmem:[%s307 + $0x108] sm:$0xff] %vm3442, %v5622
      %5659 = vst.msk [vmem:[%s307 + $0x110] sm:$0xff] %vm3442, %v5623
      %5660 = vst.msk [vmem:[%s307 + $0x118] sm:$0xff] %vm3442, %v5624
      %s5661 = smul.u32 36, %s19
      %p5662 = scmp.lt.s32.totalorder %s5661, 71
      %s5663 = scalar_select %p5662, %s5661, 71
      %s5664 = smul.addr %s5663, 8
      %s5665 = scalar_lea.vmem %s8, %s5664
      // Predicated region
      $region53: #{conv_block.1} parent=51 // pred_check
        %p5666 = pneg %p210
      $region54: #{conv_block.1} parent=51 // pred_check_branch
        %5668 = sbr.rel (%p5666) target = $region56
      $region55: #{conv_block.1} parent=51 // pred_region
        %s5669 = smul.u32 36, %s19
      $region56: #{conv_block.1} parent=51 // pred_fallthru
        _
    $region52: #{conv_block.1} parent=5 // pred_fallthru
      _
    %p5670 = scmp.le.s32.totalorder 2, %s14
    // Predicated region
    $region57: #{conv_block.1} parent=5 // pred_check
      %p5671 = pneg %p5670
    $region58: #{conv_block.1} parent=5 // pred_check_branch
      %5673 = sbr.rel (%p5671) target = $region60
    $region59: #{conv_block.1} parent=5 // pred_region
      %s5674 = ssub.s32 %s14, 2
      // Predicated region
      $region61: #{conv_block.1} parent=59 // pred_check
        %p5675 = pneg %p216
      $region62: #{conv_block.1} parent=59 // pred_check_branch
        %5677 = sbr.rel (%p5675) target = $region64
      $region63: #{conv_block.1} parent=59 // pred_region
        %s5678 = smul.u32 36, %s20
        %p5679 = scmp.lt.s32.totalorder %s5678, 71
        %s5680 = scalar_select %p5679, %s5678, 71
        %s5681 = smul.addr %s5680, 8
        %s5682 = scalar_lea.vmem %s8, %s5681
      $region64: #{conv_block.1} parent=59 // pred_fallthru
        _
    $region60: #{conv_block.1} parent=5 // pred_fallthru
      _
  $region6: #{conv_block.1} parent=0 // loop_footer
    %s18 = sadd.s32 1, %s14
  $region7: #{conv_block.1} parent=0 // loop_footer_branch
    %13 = sbr.rel target = $region3
  $region8: #{conv_block.1} parent=0 // loop_exit
    _

</llo_original>
